<compile_context>
chip_gen: v5e
topology: v5e:2x2
jax: 0.10.0
libtpu: 0.0.40
codegen_flags: <defaults>
</compile_context>

<pallas_src>
import jax
import jax.numpy as jnp
from jax.experimental import pallas as pl
from jax.experimental.pallas import tpu as pltpu

# ----------------------------- problem sizes --------------------------------
NUM_SEQ = 2          # number of input sequences fed to the encoder loop
B = 2                # batch size
T = 8                # source sequence length (per input sequence)
H = 32               # hidden size == embedding size
V = 32               # vocabulary size
L = 8                # max decode length
SOS = 1              # start-of-sequence token id
S = NUM_SEQ * T      # concatenated encoder memory length
BS = B * S           # flattened (time, batch) memory rows


# ------------------------------ kernel body ----------------------------------
def seq2seq_kernel(
    enc_x_ref,                       # (NUM_SEQ*T*B, H) bf16, row = (idx*T+t)*B + b
    enc_w_rz_ref, enc_w_n_ref,       # (H, 2H) / (H, H) bf16  input-side gate weights
    enc_u_rz_ref, enc_u_n_ref,       # (H, 2H) / (H, H) bf16  hidden-side gate weights
    enc_b_rz_ref,                    # (NUM_SEQ*T*B, 2H) f32  b_ir+b_hr | b_iz+b_hz
    enc_bi_n_ref,                    # (NUM_SEQ*T*B, H)  f32  b_in
    enc_bh_n_ref,                    # (B, H) f32             b_hn
    dec_w_rz_ref,                    # (V+H, 2H) bf16  [[E@Wr, E@Wz], [Ur, Uz]]
    dec_wn_in_ref,                   # (V, H)   bf16   E@Wn (embedding folded in)
    dec_u_n_ref,                     # (H, H)   bf16   Un
    dec_b_rz_ref,                    # (B, 2H) f32     pre-added r/z biases
    dec_bi_n_ref, dec_bh_n_ref,      # (B, H) f32
    attw_ctx_ref, attw_h_ref,        # (H, H) bf16 halves of att_w ([ctx;h] split)
    attb_ref,                        # (B, H) f32
    outw_ref,                        # (H, V) bf16
    outb_ref,                        # (B, V) f32
    score_mask_ref,                  # (B, B*S) f32 cross-batch -inf mask (constant)
    logp_ref,                        # out: (L, B, V) f32 log-softmax
    hidden_ref,                      # out: (B, H) f32 final decoder hidden
    sym_ref,                         # out: (L, B, 1) int32 predicted token ids
):
  f32 = jnp.float32
  bf16 = jnp.bfloat16

  # -------- load weights / constants once (tiny; stay in vregs) --------------
  e_u_rz = enc_u_rz_ref[...]
  e_u_n = enc_u_n_ref[...]
  e_bh_n = enc_bh_n_ref[...]
  d_w_rz = dec_w_rz_ref[...]
  d_wn_in = dec_wn_in_ref[...]
  d_u_n = dec_u_n_ref[...]
  d_b_rz = dec_b_rz_ref[...]
  d_bi_n = dec_bi_n_ref[...]
  d_bh_n = dec_bh_n_ref[...]
  attw_ctx = attw_ctx_ref[...]
  attw_h = attw_h_ref[...]
  att_b = attb_ref[...]
  out_w = outw_ref[...]
  out_b = outb_ref[...]
  score_mask = score_mask_ref[...]

  # ---------------- encoder ---------------------------------------------------
  # Input-side gate matmuls for ALL timesteps are hoisted out of the serial
  # recurrence: one (32,32)@(32,64) and one (32,32)@(32,32) matmul.
  x_all = enc_x_ref[...]                                                 # (32, H) bf16
  gi_rz_all = (jnp.dot(x_all, enc_w_rz_ref[...], preferred_element_type=f32)
               + enc_b_rz_ref[...])                                      # (32, 2H)
  gi_n_all = (jnp.dot(x_all, enc_w_n_ref[...], preferred_element_type=f32)
              + enc_bi_n_ref[...])                                       # (32, H)

  mems = []
  for idx in range(NUM_SEQ):
    h = jnp.zeros((B, H), f32)                    # fresh hidden per sequence
    for t in range(T):
      row = (idx * T + t) * B
      hb = h.astype(bf16)
      # only the h-dependent matmuls remain on the recurrence (2 per step)
      gh_rz = jnp.dot(hb, e_u_rz, preferred_element_type=f32)            # (B, 2H)
      gh_n = jnp.dot(hb, e_u_n, preferred_element_type=f32) + e_bh_n     # (B, H)
      rz = jax.nn.sigmoid(gi_rz_all[row:row + B, :] + gh_rz)
      r = rz[:, :H]
      z = rz[:, H:]
      n = jnp.tanh(gi_n_all[row:row + B, :] + r * gh_n)
      h = (1.0 - z) * n + z * h
      mems.append(h)                              # time order == torch.cat(dim=1)
  # h == final hidden of the *last* sequence -> decoder init (matches PyTorch)

  # concatenated encoder memory kept in registers (no VMEM scratch); row j = s*B + b
  mem_flat = jnp.concatenate(mems, axis=0)                               # (B*S, H) f32
  mem_b = mem_flat.astype(bf16)                                          # for context matmul
  memT_b = jnp.transpose(mem_flat).astype(bf16)                          # (H, B*S), hoisted

  lane_v = jax.lax.broadcasted_iota(jnp.int32, (B, V), 1)

  # ---------------- decoder: greedy decoding with attention ------------------
  y = jnp.full((B, 1), SOS, jnp.int32)            # teacher_forcing_ratio == 0
  logps = []
  syms = []
  for _ in range(L):
    onehot = (lane_v == y).astype(f32)                                   # (B, V)
    h_prev_b = h.astype(bf16)

    # fused r/z gates; embedding matmul is folded into d_w_rz / d_wn_in
    xh = jnp.concatenate([onehot, h], axis=1).astype(bf16)               # (B, V+H)
    rz = jax.nn.sigmoid(
        jnp.dot(xh, d_w_rz, preferred_element_type=f32) + d_b_rz)        # (B, 2H)
    r = rz[:, :H]
    z = rz[:, H:]
    gi_n = jnp.dot(onehot.astype(bf16), d_wn_in,
                   preferred_element_type=f32) + d_bi_n
    gh_n = jnp.dot(h_prev_b, d_u_n, preferred_element_type=f32) + d_bh_n
    n = jnp.tanh(gi_n + r * gh_n)
    h = (1.0 - z) * n + z * h                                            # (B, H)

    # de-batched dot attention over the concatenated memory (transpose hoisted)
    hb = h.astype(bf16)
    scores = jnp.dot(hb, memT_b, preferred_element_type=f32) + score_mask  # (B, B*S)
    m_s = jnp.max(scores, axis=-1, keepdims=True)
    e_s = jnp.exp(scores - m_s)
    attn = e_s * pl.reciprocal(jnp.sum(e_s, axis=-1, keepdims=True),
                               approx=True)                              # softmax
    ctx = jnp.dot(attn.astype(bf16), mem_b, preferred_element_type=f32)  # (B, H)

    # tanh(Linear([ctx; h])) without the lane-offset concatenation
    combined = jnp.tanh(
        jnp.dot(ctx.astype(bf16), attw_ctx, preferred_element_type=f32)
        + jnp.dot(hb, attw_h, preferred_element_type=f32)
        + att_b)                                                         # (B, H)

    logits = jnp.dot(combined.astype(bf16), out_w,
                     preferred_element_type=f32) + out_b                 # (B, V)

    # greedy symbol straight from logits (argmax(logits) == argmax(log_softmax));
    # keeps the exp/sum/log work off the next-token dependency chain.
    m_l = jnp.max(logits, axis=-1, keepdims=True)
    sym = jnp.min(jnp.where(logits >= m_l, lane_v, V),
                  axis=-1, keepdims=True)                                # (B, 1)
    syms.append(sym)
    y = sym

    # exact F.log_softmax for the returned outputs (off the serial path)
    lse = jnp.log(jnp.sum(jnp.exp(logits - m_l), axis=-1, keepdims=True)) + m_l
    logps.append(logits - lse)

  # single stores at the end (accumulated in registers)
  # TODO(synk): lane-dense (4,128) repack of the final logp/sym stores skipped —
  # one-time ~2 KiB writeback off the critical path, not worth the reshape risk.
  logp_ref[...] = jnp.stack(logps, axis=0)        # (L, B, V)
  sym_ref[...] = jnp.stack(syms, axis=0)          # (L, B, 1)
  hidden_ref[...] = h


# ------------------------------ host wrapper ---------------------------------
def _gate(w, g):
  """Column slice of a column-stacked [r|z|n] parameter."""
  return w[:, g * H:(g + 1) * H]


@jax.jit
def seq2seq_forward(tokens, params):
  """tokens: (NUM_SEQ, B, T) int32.  Returns (log_probs, decoder_hidden, symbols)."""
  f32 = jnp.float32
  bf16 = jnp.bfloat16

  # glue: encoder embedding lookup (static token ids) in plain JAX, flattened
  # so row (idx*T + t)*B + b of the kernel input is timestep t of sequence idx.
  enc_x = jnp.take(params["enc_embedding"], tokens, axis=0)        # (NUM_SEQ, B, T, H)
  enc_x = jnp.transpose(enc_x, (0, 2, 1, 3)).reshape(NUM_SEQ * T * B, H).astype(bf16)

  ew, eu = params["enc_w_ih"], params["enc_w_hh"]
  ebi, ebh = params["enc_b_ih"], params["enc_b_hh"]
  enc_w_rz = jnp.concatenate([_gate(ew, 0), _gate(ew, 1)], axis=1).astype(bf16)
  enc_w_n = _gate(ew, 2).astype(bf16)
  enc_u_rz = jnp.concatenate([_gate(eu, 0), _gate(eu, 1)], axis=1).astype(bf16)
  enc_u_n = _gate(eu, 2).astype(bf16)
  enc_b_rz = jnp.concatenate([_gate(ebi, 0) + _gate(ebh, 0),
                              _gate(ebi, 1) + _gate(ebh, 1)], axis=1)       # (1, 2H)
  enc_b_rz_full = jnp.broadcast_to(enc_b_rz, (NUM_SEQ * T * B, 2 * H)).astype(f32)
  enc_bi_n_full = jnp.broadcast_to(_gate(ebi, 2), (NUM_SEQ * T * B, H)).astype(f32)
  enc_bh_n = jnp.broadcast_to(_gate(ebh, 2), (B, H)).astype(f32)

  # decoder: fold the embedding into the input-side gate weights, fuse r/z.
  emb = params["dec_embedding"]                                    # (V, H)
  dw, du = params["dec_w_ih"], params["dec_w_hh"]
  dbi, dbh = params["dec_b_ih"], params["dec_b_hh"]
  top_rz = jnp.concatenate([emb @ _gate(dw, 0), emb @ _gate(dw, 1)], axis=1)  # (V, 2H)
  bot_rz = jnp.concatenate([_gate(du, 0), _gate(du, 1)], axis=1)              # (H, 2H)
  dec_w_rz = jnp.concatenate([top_rz, bot_rz], axis=0).astype(bf16)           # (V+H, 2H)
  dec_wn_in = (emb @ _gate(dw, 2)).astype(bf16)                               # (V, H)
  dec_u_n = _gate(du, 2).astype(bf16)
  dec_b_rz = jnp.broadcast_to(
      jnp.concatenate([_gate(dbi, 0) + _gate(dbh, 0),
                       _gate(dbi, 1) + _gate(dbh, 1)], axis=1),
      (B, 2 * H)).astype(f32)
  dec_bi_n = jnp.broadcast_to(_gate(dbi, 2), (B, H)).astype(f32)
  dec_bh_n = jnp.broadcast_to(_gate(dbh, 2), (B, H)).astype(f32)

  attw_ctx = params["att_w"][:H, :].astype(bf16)                   # (H, H)
  attw_h = params["att_w"][H:, :].astype(bf16)                     # (H, H)
  att_b = jnp.broadcast_to(params["att_b"], (B, H)).astype(f32)
  out_w = params["out_w"].astype(bf16)
  out_b = jnp.broadcast_to(params["out_b"], (B, V)).astype(f32)

  # constant cross-batch mask for the de-batched attention scores
  j = jnp.arange(B * S)[None, :]                                   # memory row j = s*B + b
  b_idx = jnp.arange(B)[:, None]
  score_mask = jnp.where((j % B) == b_idx, 0.0, -1e30).astype(f32)  # (B, B*S)

  vmem = pl.BlockSpec(memory_space=pltpu.MemorySpace.VMEM)
  logp, hidden, syms = pl.pallas_call(
      seq2seq_kernel,
      out_shape=(
          jax.ShapeDtypeStruct((L, B, V), jnp.float32),
          jax.ShapeDtypeStruct((B, H), jnp.float32),
          jax.ShapeDtypeStruct((L, B, 1), jnp.int32),
      ),
      in_specs=[vmem] * 20,
      out_specs=(vmem, vmem, vmem),
  )(
      enc_x,
      enc_w_rz, enc_w_n, enc_u_rz, enc_u_n,
      enc_b_rz_full, enc_bi_n_full, enc_bh_n,
      dec_w_rz, dec_wn_in, dec_u_n,
      dec_b_rz, dec_bi_n, dec_bh_n,
      attw_ctx, attw_h, att_b,
      out_w, out_b,
      score_mask,
  )
  # decoder_hidden has PyTorch shape (num_layers * num_directions, B, H) = (1, B, H)
  return logp, hidden[None, :, :], syms[..., 0]


def init_params(key):
  k = 1.0 / jnp.sqrt(jnp.float32(H))
  names_shapes = [
      ("enc_embedding", (V, H)),
      ("enc_w_ih", (H, 3 * H)), ("enc_w_hh", (H, 3 * H)),
      ("enc_b_ih", (1, 3 * H)), ("enc_b_hh", (1, 3 * H)),
      ("dec_embedding", (V, H)),
      ("dec_w_ih", (H, 3 * H)), ("dec_w_hh", (H, 3 * H)),
      ("dec_b_ih", (1, 3 * H)), ("dec_b_hh", (1, 3 * H)),
      ("att_w", (2 * H, H)), ("att_b", (1, H)),
      ("out_w", (H, V)), ("out_b", (1, V)),
  ]
  keys = jax.random.split(key, len(names_shapes))
  return {
      name: jax.random.uniform(kk, shape, jnp.float32, -k, k)
      for kk, (name, shape) in zip(keys, names_shapes)
  }


if __name__ == "__main__":
  root = jax.random.PRNGKey(0)
  k_tok, k_par = jax.random.split(root)

  tokens = jax.random.randint(k_tok, (NUM_SEQ, B, T), 0, V, dtype=jnp.int32)
  params = init_params(k_par)

  logp, dec_hidden, symbols = seq2seq_forward(tokens, params)
  jax.block_until_ready((logp, dec_hidden, symbols))

  assert logp.shape == (L, B, V)
  assert dec_hidden.shape == (1, B, H)
  assert symbols.shape == (L, B)
  assert bool(jnp.all(jnp.isfinite(logp)))
  # log_softmax rows must sum to ~1 in prob space (log_softmax is exact f32)
  assert bool(jnp.allclose(jnp.sum(jnp.exp(logp), axis=-1), 1.0, atol=1e-4))
  assert bool(jnp.all((symbols >= 0) & (symbols < V)))

  print("KERNEL_OK")
</pallas_src>

<mosaic_0001>
module attributes {stable_mosaic.version = 11 : i64} {
  func.func @seq2seq_kernel(%arg0: memref<32x32xbf16, #tpu.memory_space<vmem>>, %arg1: memref<32x64xbf16, #tpu.memory_space<vmem>>, %arg2: memref<32x32xbf16, #tpu.memory_space<vmem>>, %arg3: memref<32x64xbf16, #tpu.memory_space<vmem>>, %arg4: memref<32x32xbf16, #tpu.memory_space<vmem>>, %arg5: memref<32x64xf32, #tpu.memory_space<vmem>>, %arg6: memref<32x32xf32, #tpu.memory_space<vmem>>, %arg7: memref<2x32xf32, #tpu.memory_space<vmem>>, %arg8: memref<64x64xbf16, #tpu.memory_space<vmem>>, %arg9: memref<32x32xbf16, #tpu.memory_space<vmem>>, %arg10: memref<32x32xbf16, #tpu.memory_space<vmem>>, %arg11: memref<2x64xf32, #tpu.memory_space<vmem>>, %arg12: memref<2x32xf32, #tpu.memory_space<vmem>>, %arg13: memref<2x32xf32, #tpu.memory_space<vmem>>, %arg14: memref<32x32xbf16, #tpu.memory_space<vmem>>, %arg15: memref<32x32xbf16, #tpu.memory_space<vmem>>, %arg16: memref<2x32xf32, #tpu.memory_space<vmem>>, %arg17: memref<32x32xbf16, #tpu.memory_space<vmem>>, %arg18: memref<2x32xf32, #tpu.memory_space<vmem>>, %arg19: memref<2x32xf32, #tpu.memory_space<vmem>>, %arg20: memref<8x2x32xf32, #tpu.memory_space<vmem>>, %arg21: memref<2x32xf32, #tpu.memory_space<vmem>>, %arg22: memref<8x2x1xi32, #tpu.memory_space<vmem>>) attributes {dimension_semantics = [], scalar_prefetch = 0 : i64, scratch_operands = 0 : i64, tpu.core_type = #tpu.core_type<tc>} {
    %c0 = arith.constant 0 : index
    %c0_0 = arith.constant 0 : index
    %0 = vector.load %arg3[%c0, %c0_0] : memref<32x64xbf16, #tpu.memory_space<vmem>>, vector<32x64xbf16>
    %c0_1 = arith.constant 0 : index
    %c0_2 = arith.constant 0 : index
    %1 = vector.load %arg4[%c0_1, %c0_2] : memref<32x32xbf16, #tpu.memory_space<vmem>>, vector<32x32xbf16>
    %c0_3 = arith.constant 0 : index
    %c0_4 = arith.constant 0 : index
    %2 = vector.load %arg7[%c0_3, %c0_4] : memref<2x32xf32, #tpu.memory_space<vmem>>, vector<2x32xf32>
    %c0_5 = arith.constant 0 : index
    %c0_6 = arith.constant 0 : index
    %3 = vector.load %arg8[%c0_5, %c0_6] : memref<64x64xbf16, #tpu.memory_space<vmem>>, vector<64x64xbf16>
    %c0_7 = arith.constant 0 : index
    %c0_8 = arith.constant 0 : index
    %4 = vector.load %arg9[%c0_7, %c0_8] : memref<32x32xbf16, #tpu.memory_space<vmem>>, vector<32x32xbf16>
    %c0_9 = arith.constant 0 : index
    %c0_10 = arith.constant 0 : index
    %5 = vector.load %arg10[%c0_9, %c0_10] : memref<32x32xbf16, #tpu.memory_space<vmem>>, vector<32x32xbf16>
    %c0_11 = arith.constant 0 : index
    %c0_12 = arith.constant 0 : index
    %6 = vector.load %arg11[%c0_11, %c0_12] : memref<2x64xf32, #tpu.memory_space<vmem>>, vector<2x64xf32>
    %c0_13 = arith.constant 0 : index
    %c0_14 = arith.constant 0 : index
    %7 = vector.load %arg12[%c0_13, %c0_14] : memref<2x32xf32, #tpu.memory_space<vmem>>, vector<2x32xf32>
    %c0_15 = arith.constant 0 : index
    %c0_16 = arith.constant 0 : index
    %8 = vector.load %arg13[%c0_15, %c0_16] : memref<2x32xf32, #tpu.memory_space<vmem>>, vector<2x32xf32>
    %c0_17 = arith.constant 0 : index
    %c0_18 = arith.constant 0 : index
    %9 = vector.load %arg14[%c0_17, %c0_18] : memref<32x32xbf16, #tpu.memory_space<vmem>>, vector<32x32xbf16>
    %c0_19 = arith.constant 0 : index
    %c0_20 = arith.constant 0 : index
    %10 = vector.load %arg15[%c0_19, %c0_20] : memref<32x32xbf16, #tpu.memory_space<vmem>>, vector<32x32xbf16>
    %c0_21 = arith.constant 0 : index
    %c0_22 = arith.constant 0 : index
    %11 = vector.load %arg16[%c0_21, %c0_22] : memref<2x32xf32, #tpu.memory_space<vmem>>, vector<2x32xf32>
    %c0_23 = arith.constant 0 : index
    %c0_24 = arith.constant 0 : index
    %12 = vector.load %arg17[%c0_23, %c0_24] : memref<32x32xbf16, #tpu.memory_space<vmem>>, vector<32x32xbf16>
    %c0_25 = arith.constant 0 : index
    %c0_26 = arith.constant 0 : index
    %13 = vector.load %arg18[%c0_25, %c0_26] : memref<2x32xf32, #tpu.memory_space<vmem>>, vector<2x32xf32>
    %c0_27 = arith.constant 0 : index
    %c0_28 = arith.constant 0 : index
    %14 = vector.load %arg19[%c0_27, %c0_28] : memref<2x32xf32, #tpu.memory_space<vmem>>, vector<2x32xf32>
    %c0_29 = arith.constant 0 : index
    %c0_30 = arith.constant 0 : index
    %15 = vector.load %arg0[%c0_29, %c0_30] : memref<32x32xbf16, #tpu.memory_space<vmem>>, vector<32x32xbf16>
    %c0_31 = arith.constant 0 : index
    %c0_32 = arith.constant 0 : index
    %16 = vector.load %arg1[%c0_31, %c0_32] : memref<32x64xbf16, #tpu.memory_space<vmem>>, vector<32x64xbf16>
    %cst = arith.constant dense<0.000000e+00> : vector<32x64xf32>
    %17 = tpu.matmul %15, %16, %cst {dimension_numbers = #tpu.dot_dimension_numbers<[1], [0], [0], [1], [0, 0, 1, 1], [], []>} : vector<32x32xbf16>, vector<32x64xbf16>, vector<32x64xf32> -> vector<32x64xf32>
    %c0_33 = arith.constant 0 : index
    %c0_34 = arith.constant 0 : index
    %18 = vector.load %arg5[%c0_33, %c0_34] : memref<32x64xf32, #tpu.memory_space<vmem>>, vector<32x64xf32>
    %19 = arith.addf %17, %18 : vector<32x64xf32>
    %c0_35 = arith.constant 0 : index
    %c0_36 = arith.constant 0 : index
    %20 = vector.load %arg2[%c0_35, %c0_36] : memref<32x32xbf16, #tpu.memory_space<vmem>>, vector<32x32xbf16>
    %cst_37 = arith.constant dense<0.000000e+00> : vector<32x32xf32>
    %21 = tpu.matmul %15, %20, %cst_37 {dimension_numbers = #tpu.dot_dimension_numbers<[1], [0], [0], [1], [0, 0, 1, 1], [], []>} : vector<32x32xbf16>, vector<32x32xbf16>, vector<32x32xf32> -> vector<32x32xf32>
    %c0_38 = arith.constant 0 : index
    %c0_39 = arith.constant 0 : index
    %22 = vector.load %arg6[%c0_38, %c0_39] : memref<32x32xf32, #tpu.memory_space<vmem>>, vector<32x32xf32>
    %23 = arith.addf %21, %22 : vector<32x32xf32>
    %cst_40 = arith.constant 0.000000e+00 : f32
    %24 = vector.broadcast %cst_40 : f32 to vector<2x32xf32>
    %25 = arith.truncf %24 : vector<2x32xf32> to vector<2x32xbf16>
    %cst_41 = arith.constant dense<0.000000e+00> : vector<2x64xf32>
    %26 = tpu.matmul %25, %0, %cst_41 {dimension_numbers = #tpu.dot_dimension_numbers<[1], [0], [0], [1], [0, 0, 1, 1], [], []>} : vector<2x32xbf16>, vector<32x64xbf16>, vector<2x64xf32> -> vector<2x64xf32>
    %cst_42 = arith.constant dense<0.000000e+00> : vector<2x32xf32>
    %27 = tpu.matmul %25, %1, %cst_42 {dimension_numbers = #tpu.dot_dimension_numbers<[1], [0], [0], [1], [0, 0, 1, 1], [], []>} : vector<2x32xbf16>, vector<32x32xbf16>, vector<2x32xf32> -> vector<2x32xf32>
    %28 = arith.addf %27, %2 : vector<2x32xf32>
    %29 = vector.extract_strided_slice %19 {offsets = [0, 0], sizes = [2, 64], strides = [1, 1]} : vector<32x64xf32> to vector<2x64xf32>
    %30 = arith.addf %29, %26 : vector<2x64xf32>
    %31 = arith.negf %30 : vector<2x64xf32>
    %32 = math.exp %31 : vector<2x64xf32>
    %cst_43 = arith.constant 1.000000e+00 : f32
    %33 = vector.broadcast %cst_43 : f32 to vector<2x64xf32>
    %34 = arith.addf %33, %32 : vector<2x64xf32>
    %35 = arith.divf %33, %34 : vector<2x64xf32>
    %36 = vector.extract_strided_slice %35 {offsets = [0, 0], sizes = [2, 32], strides = [1, 1]} : vector<2x64xf32> to vector<2x32xf32>
    %37 = vector.extract_strided_slice %35 {offsets = [0, 32], sizes = [2, 32], strides = [1, 1]} : vector<2x64xf32> to vector<2x32xf32>
    %38 = vector.extract_strided_slice %23 {offsets = [0, 0], sizes = [2, 32], strides = [1, 1]} : vector<32x32xf32> to vector<2x32xf32>
    %39 = arith.mulf %36, %28 : vector<2x32xf32>
    %40 = arith.addf %38, %39 : vector<2x32xf32>
    %41 = math.tanh %40 : vector<2x32xf32>
    %cst_44 = arith.constant 1.000000e+00 : f32
    %42 = vector.broadcast %cst_44 : f32 to vector<2x32xf32>
    %43 = arith.subf %42, %37 : vector<2x32xf32>
    %44 = arith.mulf %43, %41 : vector<2x32xf32>
    %45 = arith.mulf %37, %24 : vector<2x32xf32>
    %46 = arith.addf %44, %45 : vector<2x32xf32>
    %47 = arith.truncf %46 : vector<2x32xf32> to vector<2x32xbf16>
    %cst_45 = arith.constant dense<0.000000e+00> : vector<2x64xf32>
    %48 = tpu.matmul %47, %0, %cst_45 {dimension_numbers = #tpu.dot_dimension_numbers<[1], [0], [0], [1], [0, 0, 1, 1], [], []>} : vector<2x32xbf16>, vector<32x64xbf16>, vector<2x64xf32> -> vector<2x64xf32>
    %cst_46 = arith.constant dense<0.000000e+00> : vector<2x32xf32>
    %49 = tpu.matmul %47, %1, %cst_46 {dimension_numbers = #tpu.dot_dimension_numbers<[1], [0], [0], [1], [0, 0, 1, 1], [], []>} : vector<2x32xbf16>, vector<32x32xbf16>, vector<2x32xf32> -> vector<2x32xf32>
    %50 = arith.addf %49, %2 : vector<2x32xf32>
    %51 = vector.extract_strided_slice %19 {offsets = [2, 0], sizes = [2, 64], strides = [1, 1]} : vector<32x64xf32> to vector<2x64xf32>
    %52 = arith.addf %51, %48 : vector<2x64xf32>
    %53 = arith.negf %52 : vector<2x64xf32>
    %54 = math.exp %53 : vector<2x64xf32>
    %cst_47 = arith.constant 1.000000e+00 : f32
    %55 = vector.broadcast %cst_47 : f32 to vector<2x64xf32>
    %56 = arith.addf %55, %54 : vector<2x64xf32>
    %57 = arith.divf %55, %56 : vector<2x64xf32>
    %58 = vector.extract_strided_slice %57 {offsets = [0, 0], sizes = [2, 32], strides = [1, 1]} : vector<2x64xf32> to vector<2x32xf32>
    %59 = vector.extract_strided_slice %57 {offsets = [0, 32], sizes = [2, 32], strides = [1, 1]} : vector<2x64xf32> to vector<2x32xf32>
    %60 = vector.extract_strided_slice %23 {offsets = [2, 0], sizes = [2, 32], strides = [1, 1]} : vector<32x32xf32> to vector<2x32xf32>
    %61 = arith.mulf %58, %50 : vector<2x32xf32>
    %62 = arith.addf %60, %61 : vector<2x32xf32>
    %63 = math.tanh %62 : vector<2x32xf32>
    %cst_48 = arith.constant 1.000000e+00 : f32
    %64 = vector.broadcast %cst_48 : f32 to vector<2x32xf32>
    %65 = arith.subf %64, %59 : vector<2x32xf32>
    %66 = arith.mulf %65, %63 : vector<2x32xf32>
    %67 = arith.mulf %59, %46 : vector<2x32xf32>
    %68 = arith.addf %66, %67 : vector<2x32xf32>
    %69 = arith.truncf %68 : vector<2x32xf32> to vector<2x32xbf16>
    %cst_49 = arith.constant dense<0.000000e+00> : vector<2x64xf32>
    %70 = tpu.matmul %69, %0, %cst_49 {dimension_numbers = #tpu.dot_dimension_numbers<[1], [0], [0], [1], [0, 0, 1, 1], [], []>} : vector<2x32xbf16>, vector<32x64xbf16>, vector<2x64xf32> -> vector<2x64xf32>
    %cst_50 = arith.constant dense<0.000000e+00> : vector<2x32xf32>
    %71 = tpu.matmul %69, %1, %cst_50 {dimension_numbers = #tpu.dot_dimension_numbers<[1], [0], [0], [1], [0, 0, 1, 1], [], []>} : vector<2x32xbf16>, vector<32x32xbf16>, vector<2x32xf32> -> vector<2x32xf32>
    %72 = arith.addf %71, %2 : vector<2x32xf32>
    %73 = vector.extract_strided_slice %19 {offsets = [4, 0], sizes = [2, 64], strides = [1, 1]} : vector<32x64xf32> to vector<2x64xf32>
    %74 = arith.addf %73, %70 : vector<2x64xf32>
    %75 = arith.negf %74 : vector<2x64xf32>
    %76 = math.exp %75 : vector<2x64xf32>
    %cst_51 = arith.constant 1.000000e+00 : f32
    %77 = vector.broadcast %cst_51 : f32 to vector<2x64xf32>
    %78 = arith.addf %77, %76 : vector<2x64xf32>
    %79 = arith.divf %77, %78 : vector<2x64xf32>
    %80 = vector.extract_strided_slice %79 {offsets = [0, 0], sizes = [2, 32], strides = [1, 1]} : vector<2x64xf32> to vector<2x32xf32>
    %81 = vector.extract_strided_slice %79 {offsets = [0, 32], sizes = [2, 32], strides = [1, 1]} : vector<2x64xf32> to vector<2x32xf32>
    %82 = vector.extract_strided_slice %23 {offsets = [4, 0], sizes = [2, 32], strides = [1, 1]} : vector<32x32xf32> to vector<2x32xf32>
    %83 = arith.mulf %80, %72 : vector<2x32xf32>
    %84 = arith.addf %82, %83 : vector<2x32xf32>
    %85 = math.tanh %84 : vector<2x32xf32>
    %cst_52 = arith.constant 1.000000e+00 : f32
    %86 = vector.broadcast %cst_52 : f32 to vector<2x32xf32>
    %87 = arith.subf %86, %81 : vector<2x32xf32>
    %88 = arith.mulf %87, %85 : vector<2x32xf32>
    %89 = arith.mulf %81, %68 : vector<2x32xf32>
    %90 = arith.addf %88, %89 : vector<2x32xf32>
    %91 = arith.truncf %90 : vector<2x32xf32> to vector<2x32xbf16>
    %cst_53 = arith.constant dense<0.000000e+00> : vector<2x64xf32>
    %92 = tpu.matmul %91, %0, %cst_53 {dimension_numbers = #tpu.dot_dimension_numbers<[1], [0], [0], [1], [0, 0, 1, 1], [], []>} : vector<2x32xbf16>, vector<32x64xbf16>, vector<2x64xf32> -> vector<2x64xf32>
    %cst_54 = arith.constant dense<0.000000e+00> : vector<2x32xf32>
    %93 = tpu.matmul %91, %1, %cst_54 {dimension_numbers = #tpu.dot_dimension_numbers<[1], [0], [0], [1], [0, 0, 1, 1], [], []>} : vector<2x32xbf16>, vector<32x32xbf16>, vector<2x32xf32> -> vector<2x32xf32>
    %94 = arith.addf %93, %2 : vector<2x32xf32>
    %95 = vector.extract_strided_slice %19 {offsets = [6, 0], sizes = [2, 64], strides = [1, 1]} : vector<32x64xf32> to vector<2x64xf32>
    %96 = arith.addf %95, %92 : vector<2x64xf32>
    %97 = arith.negf %96 : vector<2x64xf32>
    %98 = math.exp %97 : vector<2x64xf32>
    %cst_55 = arith.constant 1.000000e+00 : f32
    %99 = vector.broadcast %cst_55 : f32 to vector<2x64xf32>
    %100 = arith.addf %99, %98 : vector<2x64xf32>
    %101 = arith.divf %99, %100 : vector<2x64xf32>
    %102 = vector.extract_strided_slice %101 {offsets = [0, 0], sizes = [2, 32], strides = [1, 1]} : vector<2x64xf32> to vector<2x32xf32>
    %103 = vector.extract_strided_slice %101 {offsets = [0, 32], sizes = [2, 32], strides = [1, 1]} : vector<2x64xf32> to vector<2x32xf32>
    %104 = vector.extract_strided_slice %23 {offsets = [6, 0], sizes = [2, 32], strides = [1, 1]} : vector<32x32xf32> to vector<2x32xf32>
    %105 = arith.mulf %102, %94 : vector<2x32xf32>
    %106 = arith.addf %104, %105 : vector<2x32xf32>
    %107 = math.tanh %106 : vector<2x32xf32>
    %cst_56 = arith.constant 1.000000e+00 : f32
    %108 = vector.broadcast %cst_56 : f32 to vector<2x32xf32>
    %109 = arith.subf %108, %103 : vector<2x32xf32>
    %110 = arith.mulf %109, %107 : vector<2x32xf32>
    %111 = arith.mulf %103, %90 : vector<2x32xf32>
    %112 = arith.addf %110, %111 : vector<2x32xf32>
    %113 = arith.truncf %112 : vector<2x32xf32> to vector<2x32xbf16>
    %cst_57 = arith.constant dense<0.000000e+00> : vector<2x64xf32>
    %114 = tpu.matmul %113, %0, %cst_57 {dimension_numbers = #tpu.dot_dimension_numbers<[1], [0], [0], [1], [0, 0, 1, 1], [], []>} : vector<2x32xbf16>, vector<32x64xbf16>, vector<2x64xf32> -> vector<2x64xf32>
    %cst_58 = arith.constant dense<0.000000e+00> : vector<2x32xf32>
    %115 = tpu.matmul %113, %1, %cst_58 {dimension_numbers = #tpu.dot_dimension_numbers<[1], [0], [0], [1], [0, 0, 1, 1], [], []>} : vector<2x32xbf16>, vector<32x32xbf16>, vector<2x32xf32> -> vector<2x32xf32>
    %116 = arith.addf %115, %2 : vector<2x32xf32>
    %117 = vector.extract_strided_slice %19 {offsets = [8, 0], sizes = [2, 64], strides = [1, 1]} : vector<32x64xf32> to vector<2x64xf32>
    %118 = arith.addf %117, %114 : vector<2x64xf32>
    %119 = arith.negf %118 : vector<2x64xf32>
    %120 = math.exp %119 : vector<2x64xf32>
    %cst_59 = arith.constant 1.000000e+00 : f32
    %121 = vector.broadcast %cst_59 : f32 to vector<2x64xf32>
    %122 = arith.addf %121, %120 : vector<2x64xf32>
    %123 = arith.divf %121, %122 : vector<2x64xf32>
    %124 = vector.extract_strided_slice %123 {offsets = [0, 0], sizes = [2, 32], strides = [1, 1]} : vector<2x64xf32> to vector<2x32xf32>
    %125 = vector.extract_strided_slice %123 {offsets = [0, 32], sizes = [2, 32], strides = [1, 1]} : vector<2x64xf32> to vector<2x32xf32>
    %126 = vector.extract_strided_slice %23 {offsets = [8, 0], sizes = [2, 32], strides = [1, 1]} : vector<32x32xf32> to vector<2x32xf32>
    %127 = arith.mulf %124, %116 : vector<2x32xf32>
    %128 = arith.addf %126, %127 : vector<2x32xf32>
    %129 = math.tanh %128 : vector<2x32xf32>
    %cst_60 = arith.constant 1.000000e+00 : f32
    %130 = vector.broadcast %cst_60 : f32 to vector<2x32xf32>
    %131 = arith.subf %130, %125 : vector<2x32xf32>
    %132 = arith.mulf %131, %129 : vector<2x32xf32>
    %133 = arith.mulf %125, %112 : vector<2x32xf32>
    %134 = arith.addf %132, %133 : vector<2x32xf32>
    %135 = arith.truncf %134 : vector<2x32xf32> to vector<2x32xbf16>
    %cst_61 = arith.constant dense<0.000000e+00> : vector<2x64xf32>
    %136 = tpu.matmul %135, %0, %cst_61 {dimension_numbers = #tpu.dot_dimension_numbers<[1], [0], [0], [1], [0, 0, 1, 1], [], []>} : vector<2x32xbf16>, vector<32x64xbf16>, vector<2x64xf32> -> vector<2x64xf32>
    %cst_62 = arith.constant dense<0.000000e+00> : vector<2x32xf32>
    %137 = tpu.matmul %135, %1, %cst_62 {dimension_numbers = #tpu.dot_dimension_numbers<[1], [0], [0], [1], [0, 0, 1, 1], [], []>} : vector<2x32xbf16>, vector<32x32xbf16>, vector<2x32xf32> -> vector<2x32xf32>
    %138 = arith.addf %137, %2 : vector<2x32xf32>
    %139 = vector.extract_strided_slice %19 {offsets = [10, 0], sizes = [2, 64], strides = [1, 1]} : vector<32x64xf32> to vector<2x64xf32>
    %140 = arith.addf %139, %136 : vector<2x64xf32>
    %141 = arith.negf %140 : vector<2x64xf32>
    %142 = math.exp %141 : vector<2x64xf32>
    %cst_63 = arith.constant 1.000000e+00 : f32
    %143 = vector.broadcast %cst_63 : f32 to vector<2x64xf32>
    %144 = arith.addf %143, %142 : vector<2x64xf32>
    %145 = arith.divf %143, %144 : vector<2x64xf32>
    %146 = vector.extract_strided_slice %145 {offsets = [0, 0], sizes = [2, 32], strides = [1, 1]} : vector<2x64xf32> to vector<2x32xf32>
    %147 = vector.extract_strided_slice %145 {offsets = [0, 32], sizes = [2, 32], strides = [1, 1]} : vector<2x64xf32> to vector<2x32xf32>
    %148 = vector.extract_strided_slice %23 {offsets = [10, 0], sizes = [2, 32], strides = [1, 1]} : vector<32x32xf32> to vector<2x32xf32>
    %149 = arith.mulf %146, %138 : vector<2x32xf32>
    %150 = arith.addf %148, %149 : vector<2x32xf32>
    %151 = math.tanh %150 : vector<2x32xf32>
    %cst_64 = arith.constant 1.000000e+00 : f32
    %152 = vector.broadcast %cst_64 : f32 to vector<2x32xf32>
    %153 = arith.subf %152, %147 : vector<2x32xf32>
    %154 = arith.mulf %153, %151 : vector<2x32xf32>
    %155 = arith.mulf %147, %134 : vector<2x32xf32>
    %156 = arith.addf %154, %155 : vector<2x32xf32>
    %157 = arith.truncf %156 : vector<2x32xf32> to vector<2x32xbf16>
    %cst_65 = arith.constant dense<0.000000e+00> : vector<2x64xf32>
    %158 = tpu.matmul %157, %0, %cst_65 {dimension_numbers = #tpu.dot_dimension_numbers<[1], [0], [0], [1], [0, 0, 1, 1], [], []>} : vector<2x32xbf16>, vector<32x64xbf16>, vector<2x64xf32> -> vector<2x64xf32>
    %cst_66 = arith.constant dense<0.000000e+00> : vector<2x32xf32>
    %159 = tpu.matmul %157, %1, %cst_66 {dimension_numbers = #tpu.dot_dimension_numbers<[1], [0], [0], [1], [0, 0, 1, 1], [], []>} : vector<2x32xbf16>, vector<32x32xbf16>, vector<2x32xf32> -> vector<2x32xf32>
    %160 = arith.addf %159, %2 : vector<2x32xf32>
    %161 = vector.extract_strided_slice %19 {offsets = [12, 0], sizes = [2, 64], strides = [1, 1]} : vector<32x64xf32> to vector<2x64xf32>
    %162 = arith.addf %161, %158 : vector<2x64xf32>
    %163 = arith.negf %162 : vector<2x64xf32>
    %164 = math.exp %163 : vector<2x64xf32>
    %cst_67 = arith.constant 1.000000e+00 : f32
    %165 = vector.broadcast %cst_67 : f32 to vector<2x64xf32>
    %166 = arith.addf %165, %164 : vector<2x64xf32>
    %167 = arith.divf %165, %166 : vector<2x64xf32>
    %168 = vector.extract_strided_slice %167 {offsets = [0, 0], sizes = [2, 32], strides = [1, 1]} : vector<2x64xf32> to vector<2x32xf32>
    %169 = vector.extract_strided_slice %167 {offsets = [0, 32], sizes = [2, 32], strides = [1, 1]} : vector<2x64xf32> to vector<2x32xf32>
    %170 = vector.extract_strided_slice %23 {offsets = [12, 0], sizes = [2, 32], strides = [1, 1]} : vector<32x32xf32> to vector<2x32xf32>
    %171 = arith.mulf %168, %160 : vector<2x32xf32>
    %172 = arith.addf %170, %171 : vector<2x32xf32>
    %173 = math.tanh %172 : vector<2x32xf32>
    %cst_68 = arith.constant 1.000000e+00 : f32
    %174 = vector.broadcast %cst_68 : f32 to vector<2x32xf32>
    %175 = arith.subf %174, %169 : vector<2x32xf32>
    %176 = arith.mulf %175, %173 : vector<2x32xf32>
    %177 = arith.mulf %169, %156 : vector<2x32xf32>
    %178 = arith.addf %176, %177 : vector<2x32xf32>
    %179 = arith.truncf %178 : vector<2x32xf32> to vector<2x32xbf16>
    %cst_69 = arith.constant dense<0.000000e+00> : vector<2x64xf32>
    %180 = tpu.matmul %179, %0, %cst_69 {dimension_numbers = #tpu.dot_dimension_numbers<[1], [0], [0], [1], [0, 0, 1, 1], [], []>} : vector<2x32xbf16>, vector<32x64xbf16>, vector<2x64xf32> -> vector<2x64xf32>
    %cst_70 = arith.constant dense<0.000000e+00> : vector<2x32xf32>
    %181 = tpu.matmul %179, %1, %cst_70 {dimension_numbers = #tpu.dot_dimension_numbers<[1], [0], [0], [1], [0, 0, 1, 1], [], []>} : vector<2x32xbf16>, vector<32x32xbf16>, vector<2x32xf32> -> vector<2x32xf32>
    %182 = arith.addf %181, %2 : vector<2x32xf32>
    %183 = vector.extract_strided_slice %19 {offsets = [14, 0], sizes = [2, 64], strides = [1, 1]} : vector<32x64xf32> to vector<2x64xf32>
    %184 = arith.addf %183, %180 : vector<2x64xf32>
    %185 = arith.negf %184 : vector<2x64xf32>
    %186 = math.exp %185 : vector<2x64xf32>
    %cst_71 = arith.constant 1.000000e+00 : f32
    %187 = vector.broadcast %cst_71 : f32 to vector<2x64xf32>
    %188 = arith.addf %187, %186 : vector<2x64xf32>
    %189 = arith.divf %187, %188 : vector<2x64xf32>
    %190 = vector.extract_strided_slice %189 {offsets = [0, 0], sizes = [2, 32], strides = [1, 1]} : vector<2x64xf32> to vector<2x32xf32>
    %191 = vector.extract_strided_slice %189 {offsets = [0, 32], sizes = [2, 32], strides = [1, 1]} : vector<2x64xf32> to vector<2x32xf32>
    %192 = vector.extract_strided_slice %23 {offsets = [14, 0], sizes = [2, 32], strides = [1, 1]} : vector<32x32xf32> to vector<2x32xf32>
    %193 = arith.mulf %190, %182 : vector<2x32xf32>
    %194 = arith.addf %192, %193 : vector<2x32xf32>
    %195 = math.tanh %194 : vector<2x32xf32>
    %cst_72 = arith.constant 1.000000e+00 : f32
    %196 = vector.broadcast %cst_72 : f32 to vector<2x32xf32>
    %197 = arith.subf %196, %191 : vector<2x32xf32>
    %198 = arith.mulf %197, %195 : vector<2x32xf32>
    %199 = arith.mulf %191, %178 : vector<2x32xf32>
    %200 = arith.addf %198, %199 : vector<2x32xf32>
    %cst_73 = arith.constant 0.000000e+00 : f32
    %201 = vector.broadcast %cst_73 : f32 to vector<2x32xf32>
    %202 = arith.truncf %201 : vector<2x32xf32> to vector<2x32xbf16>
    %cst_74 = arith.constant dense<0.000000e+00> : vector<2x64xf32>
    %203 = tpu.matmul %202, %0, %cst_74 {dimension_numbers = #tpu.dot_dimension_numbers<[1], [0], [0], [1], [0, 0, 1, 1], [], []>} : vector<2x32xbf16>, vector<32x64xbf16>, vector<2x64xf32> -> vector<2x64xf32>
    %cst_75 = arith.constant dense<0.000000e+00> : vector<2x32xf32>
    %204 = tpu.matmul %202, %1, %cst_75 {dimension_numbers = #tpu.dot_dimension_numbers<[1], [0], [0], [1], [0, 0, 1, 1], [], []>} : vector<2x32xbf16>, vector<32x32xbf16>, vector<2x32xf32> -> vector<2x32xf32>
    %205 = arith.addf %204, %2 : vector<2x32xf32>
    %206 = vector.extract_strided_slice %19 {offsets = [16, 0], sizes = [2, 64], strides = [1, 1]} : vector<32x64xf32> to vector<2x64xf32>
    %207 = arith.addf %206, %203 : vector<2x64xf32>
    %208 = arith.negf %207 : vector<2x64xf32>
    %209 = math.exp %208 : vector<2x64xf32>
    %cst_76 = arith.constant 1.000000e+00 : f32
    %210 = vector.broadcast %cst_76 : f32 to vector<2x64xf32>
    %211 = arith.addf %210, %209 : vector<2x64xf32>
    %212 = arith.divf %210, %211 : vector<2x64xf32>
    %213 = vector.extract_strided_slice %212 {offsets = [0, 0], sizes = [2, 32], strides = [1, 1]} : vector<2x64xf32> to vector<2x32xf32>
    %214 = vector.extract_strided_slice %212 {offsets = [0, 32], sizes = [2, 32], strides = [1, 1]} : vector<2x64xf32> to vector<2x32xf32>
    %215 = vector.extract_strided_slice %23 {offsets = [16, 0], sizes = [2, 32], strides = [1, 1]} : vector<32x32xf32> to vector<2x32xf32>
    %216 = arith.mulf %213, %205 : vector<2x32xf32>
    %217 = arith.addf %215, %216 : vector<2x32xf32>
    %218 = math.tanh %217 : vector<2x32xf32>
    %cst_77 = arith.constant 1.000000e+00 : f32
    %219 = vector.broadcast %cst_77 : f32 to vector<2x32xf32>
    %220 = arith.subf %219, %214 : vector<2x32xf32>
    %221 = arith.mulf %220, %218 : vector<2x32xf32>
    %222 = arith.mulf %214, %201 : vector<2x32xf32>
    %223 = arith.addf %221, %222 : vector<2x32xf32>
    %224 = arith.truncf %223 : vector<2x32xf32> to vector<2x32xbf16>
    %cst_78 = arith.constant dense<0.000000e+00> : vector<2x64xf32>
    %225 = tpu.matmul %224, %0, %cst_78 {dimension_numbers = #tpu.dot_dimension_numbers<[1], [0], [0], [1], [0, 0, 1, 1], [], []>} : vector<2x32xbf16>, vector<32x64xbf16>, vector<2x64xf32> -> vector<2x64xf32>
    %cst_79 = arith.constant dense<0.000000e+00> : vector<2x32xf32>
    %226 = tpu.matmul %224, %1, %cst_79 {dimension_numbers = #tpu.dot_dimension_numbers<[1], [0], [0], [1], [0, 0, 1, 1], [], []>} : vector<2x32xbf16>, vector<32x32xbf16>, vector<2x32xf32> -> vector<2x32xf32>
    %227 = arith.addf %226, %2 : vector<2x32xf32>
    %228 = vector.extract_strided_slice %19 {offsets = [18, 0], sizes = [2, 64], strides = [1, 1]} : vector<32x64xf32> to vector<2x64xf32>
    %229 = arith.addf %228, %225 : vector<2x64xf32>
    %230 = arith.negf %229 : vector<2x64xf32>
    %231 = math.exp %230 : vector<2x64xf32>
    %cst_80 = arith.constant 1.000000e+00 : f32
    %232 = vector.broadcast %cst_80 : f32 to vector<2x64xf32>
    %233 = arith.addf %232, %231 : vector<2x64xf32>
    %234 = arith.divf %232, %233 : vector<2x64xf32>
    %235 = vector.extract_strided_slice %234 {offsets = [0, 0], sizes = [2, 32], strides = [1, 1]} : vector<2x64xf32> to vector<2x32xf32>
    %236 = vector.extract_strided_slice %234 {offsets = [0, 32], sizes = [2, 32], strides = [1, 1]} : vector<2x64xf32> to vector<2x32xf32>
    %237 = vector.extract_strided_slice %23 {offsets = [18, 0], sizes = [2, 32], strides = [1, 1]} : vector<32x32xf32> to vector<2x32xf32>
    %238 = arith.mulf %235, %227 : vector<2x32xf32>
    %239 = arith.addf %237, %238 : vector<2x32xf32>
    %240 = math.tanh %239 : vector<2x32xf32>
    %cst_81 = arith.constant 1.000000e+00 : f32
    %241 = vector.broadcast %cst_81 : f32 to vector<2x32xf32>
    %242 = arith.subf %241, %236 : vector<2x32xf32>
    %243 = arith.mulf %242, %240 : vector<2x32xf32>
    %244 = arith.mulf %236, %223 : vector<2x32xf32>
    %245 = arith.addf %243, %244 : vector<2x32xf32>
    %246 = arith.truncf %245 : vector<2x32xf32> to vector<2x32xbf16>
    %cst_82 = arith.constant dense<0.000000e+00> : vector<2x64xf32>
    %247 = tpu.matmul %246, %0, %cst_82 {dimension_numbers = #tpu.dot_dimension_numbers<[1], [0], [0], [1], [0, 0, 1, 1], [], []>} : vector<2x32xbf16>, vector<32x64xbf16>, vector<2x64xf32> -> vector<2x64xf32>
    %cst_83 = arith.constant dense<0.000000e+00> : vector<2x32xf32>
    %248 = tpu.matmul %246, %1, %cst_83 {dimension_numbers = #tpu.dot_dimension_numbers<[1], [0], [0], [1], [0, 0, 1, 1], [], []>} : vector<2x32xbf16>, vector<32x32xbf16>, vector<2x32xf32> -> vector<2x32xf32>
    %249 = arith.addf %248, %2 : vector<2x32xf32>
    %250 = vector.extract_strided_slice %19 {offsets = [20, 0], sizes = [2, 64], strides = [1, 1]} : vector<32x64xf32> to vector<2x64xf32>
    %251 = arith.addf %250, %247 : vector<2x64xf32>
    %252 = arith.negf %251 : vector<2x64xf32>
    %253 = math.exp %252 : vector<2x64xf32>
    %cst_84 = arith.constant 1.000000e+00 : f32
    %254 = vector.broadcast %cst_84 : f32 to vector<2x64xf32>
    %255 = arith.addf %254, %253 : vector<2x64xf32>
    %256 = arith.divf %254, %255 : vector<2x64xf32>
    %257 = vector.extract_strided_slice %256 {offsets = [0, 0], sizes = [2, 32], strides = [1, 1]} : vector<2x64xf32> to vector<2x32xf32>
    %258 = vector.extract_strided_slice %256 {offsets = [0, 32], sizes = [2, 32], strides = [1, 1]} : vector<2x64xf32> to vector<2x32xf32>
    %259 = vector.extract_strided_slice %23 {offsets = [20, 0], sizes = [2, 32], strides = [1, 1]} : vector<32x32xf32> to vector<2x32xf32>
    %260 = arith.mulf %257, %249 : vector<2x32xf32>
    %261 = arith.addf %259, %260 : vector<2x32xf32>
    %262 = math.tanh %261 : vector<2x32xf32>
    %cst_85 = arith.constant 1.000000e+00 : f32
    %263 = vector.broadcast %cst_85 : f32 to vector<2x32xf32>
    %264 = arith.subf %263, %258 : vector<2x32xf32>
    %265 = arith.mulf %264, %262 : vector<2x32xf32>
    %266 = arith.mulf %258, %245 : vector<2x32xf32>
    %267 = arith.addf %265, %266 : vector<2x32xf32>
    %268 = arith.truncf %267 : vector<2x32xf32> to vector<2x32xbf16>
    %cst_86 = arith.constant dense<0.000000e+00> : vector<2x64xf32>
    %269 = tpu.matmul %268, %0, %cst_86 {dimension_numbers = #tpu.dot_dimension_numbers<[1], [0], [0], [1], [0, 0, 1, 1], [], []>} : vector<2x32xbf16>, vector<32x64xbf16>, vector<2x64xf32> -> vector<2x64xf32>
    %cst_87 = arith.constant dense<0.000000e+00> : vector<2x32xf32>
    %270 = tpu.matmul %268, %1, %cst_87 {dimension_numbers = #tpu.dot_dimension_numbers<[1], [0], [0], [1], [0, 0, 1, 1], [], []>} : vector<2x32xbf16>, vector<32x32xbf16>, vector<2x32xf32> -> vector<2x32xf32>
    %271 = arith.addf %270, %2 : vector<2x32xf32>
    %272 = vector.extract_strided_slice %19 {offsets = [22, 0], sizes = [2, 64], strides = [1, 1]} : vector<32x64xf32> to vector<2x64xf32>
    %273 = arith.addf %272, %269 : vector<2x64xf32>
    %274 = arith.negf %273 : vector<2x64xf32>
    %275 = math.exp %274 : vector<2x64xf32>
    %cst_88 = arith.constant 1.000000e+00 : f32
    %276 = vector.broadcast %cst_88 : f32 to vector<2x64xf32>
    %277 = arith.addf %276, %275 : vector<2x64xf32>
    %278 = arith.divf %276, %277 : vector<2x64xf32>
    %279 = vector.extract_strided_slice %278 {offsets = [0, 0], sizes = [2, 32], strides = [1, 1]} : vector<2x64xf32> to vector<2x32xf32>
    %280 = vector.extract_strided_slice %278 {offsets = [0, 32], sizes = [2, 32], strides = [1, 1]} : vector<2x64xf32> to vector<2x32xf32>
    %281 = vector.extract_strided_slice %23 {offsets = [22, 0], sizes = [2, 32], strides = [1, 1]} : vector<32x32xf32> to vector<2x32xf32>
    %282 = arith.mulf %279, %271 : vector<2x32xf32>
    %283 = arith.addf %281, %282 : vector<2x32xf32>
    %284 = math.tanh %283 : vector<2x32xf32>
    %cst_89 = arith.constant 1.000000e+00 : f32
    %285 = vector.broadcast %cst_89 : f32 to vector<2x32xf32>
    %286 = arith.subf %285, %280 : vector<2x32xf32>
    %287 = arith.mulf %286, %284 : vector<2x32xf32>
    %288 = arith.mulf %280, %267 : vector<2x32xf32>
    %289 = arith.addf %287, %288 : vector<2x32xf32>
    %290 = arith.truncf %289 : vector<2x32xf32> to vector<2x32xbf16>
    %cst_90 = arith.constant dense<0.000000e+00> : vector<2x64xf32>
    %291 = tpu.matmul %290, %0, %cst_90 {dimension_numbers = #tpu.dot_dimension_numbers<[1], [0], [0], [1], [0, 0, 1, 1], [], []>} : vector<2x32xbf16>, vector<32x64xbf16>, vector<2x64xf32> -> vector<2x64xf32>
    %cst_91 = arith.constant dense<0.000000e+00> : vector<2x32xf32>
    %292 = tpu.matmul %290, %1, %cst_91 {dimension_numbers = #tpu.dot_dimension_numbers<[1], [0], [0], [1], [0, 0, 1, 1], [], []>} : vector<2x32xbf16>, vector<32x32xbf16>, vector<2x32xf32> -> vector<2x32xf32>
    %293 = arith.addf %292, %2 : vector<2x32xf32>
    %294 = vector.extract_strided_slice %19 {offsets = [24, 0], sizes = [2, 64], strides = [1, 1]} : vector<32x64xf32> to vector<2x64xf32>
    %295 = arith.addf %294, %291 : vector<2x64xf32>
    %296 = arith.negf %295 : vector<2x64xf32>
    %297 = math.exp %296 : vector<2x64xf32>
    %cst_92 = arith.constant 1.000000e+00 : f32
    %298 = vector.broadcast %cst_92 : f32 to vector<2x64xf32>
    %299 = arith.addf %298, %297 : vector<2x64xf32>
    %300 = arith.divf %298, %299 : vector<2x64xf32>
    %301 = vector.extract_strided_slice %300 {offsets = [0, 0], sizes = [2, 32], strides = [1, 1]} : vector<2x64xf32> to vector<2x32xf32>
    %302 = vector.extract_strided_slice %300 {offsets = [0, 32], sizes = [2, 32], strides = [1, 1]} : vector<2x64xf32> to vector<2x32xf32>
    %303 = vector.extract_strided_slice %23 {offsets = [24, 0], sizes = [2, 32], strides = [1, 1]} : vector<32x32xf32> to vector<2x32xf32>
    %304 = arith.mulf %301, %293 : vector<2x32xf32>
    %305 = arith.addf %303, %304 : vector<2x32xf32>
    %306 = math.tanh %305 : vector<2x32xf32>
    %cst_93 = arith.constant 1.000000e+00 : f32
    %307 = vector.broadcast %cst_93 : f32 to vector<2x32xf32>
    %308 = arith.subf %307, %302 : vector<2x32xf32>
    %309 = arith.mulf %308, %306 : vector<2x32xf32>
    %310 = arith.mulf %302, %289 : vector<2x32xf32>
    %311 = arith.addf %309, %310 : vector<2x32xf32>
    %312 = arith.truncf %311 : vector<2x32xf32> to vector<2x32xbf16>
    %cst_94 = arith.constant dense<0.000000e+00> : vector<2x64xf32>
    %313 = tpu.matmul %312, %0, %cst_94 {dimension_numbers = #tpu.dot_dimension_numbers<[1], [0], [0], [1], [0, 0, 1, 1], [], []>} : vector<2x32xbf16>, vector<32x64xbf16>, vector<2x64xf32> -> vector<2x64xf32>
    %cst_95 = arith.constant dense<0.000000e+00> : vector<2x32xf32>
    %314 = tpu.matmul %312, %1, %cst_95 {dimension_numbers = #tpu.dot_dimension_numbers<[1], [0], [0], [1], [0, 0, 1, 1], [], []>} : vector<2x32xbf16>, vector<32x32xbf16>, vector<2x32xf32> -> vector<2x32xf32>
    %315 = arith.addf %314, %2 : vector<2x32xf32>
    %316 = vector.extract_strided_slice %19 {offsets = [26, 0], sizes = [2, 64], strides = [1, 1]} : vector<32x64xf32> to vector<2x64xf32>
    %317 = arith.addf %316, %313 : vector<2x64xf32>
    %318 = arith.negf %317 : vector<2x64xf32>
    %319 = math.exp %318 : vector<2x64xf32>
    %cst_96 = arith.constant 1.000000e+00 : f32
    %320 = vector.broadcast %cst_96 : f32 to vector<2x64xf32>
    %321 = arith.addf %320, %319 : vector<2x64xf32>
    %322 = arith.divf %320, %321 : vector<2x64xf32>
    %323 = vector.extract_strided_slice %322 {offsets = [0, 0], sizes = [2, 32], strides = [1, 1]} : vector<2x64xf32> to vector<2x32xf32>
    %324 = vector.extract_strided_slice %322 {offsets = [0, 32], sizes = [2, 32], strides = [1, 1]} : vector<2x64xf32> to vector<2x32xf32>
    %325 = vector.extract_strided_slice %23 {offsets = [26, 0], sizes = [2, 32], strides = [1, 1]} : vector<32x32xf32> to vector<2x32xf32>
    %326 = arith.mulf %323, %315 : vector<2x32xf32>
    %327 = arith.addf %325, %326 : vector<2x32xf32>
    %328 = math.tanh %327 : vector<2x32xf32>
    %cst_97 = arith.constant 1.000000e+00 : f32
    %329 = vector.broadcast %cst_97 : f32 to vector<2x32xf32>
    %330 = arith.subf %329, %324 : vector<2x32xf32>
    %331 = arith.mulf %330, %328 : vector<2x32xf32>
    %332 = arith.mulf %324, %311 : vector<2x32xf32>
    %333 = arith.addf %331, %332 : vector<2x32xf32>
    %334 = arith.truncf %333 : vector<2x32xf32> to vector<2x32xbf16>
    %cst_98 = arith.constant dense<0.000000e+00> : vector<2x64xf32>
    %335 = tpu.matmul %334, %0, %cst_98 {dimension_numbers = #tpu.dot_dimension_numbers<[1], [0], [0], [1], [0, 0, 1, 1], [], []>} : vector<2x32xbf16>, vector<32x64xbf16>, vector<2x64xf32> -> vector<2x64xf32>
    %cst_99 = arith.constant dense<0.000000e+00> : vector<2x32xf32>
    %336 = tpu.matmul %334, %1, %cst_99 {dimension_numbers = #tpu.dot_dimension_numbers<[1], [0], [0], [1], [0, 0, 1, 1], [], []>} : vector<2x32xbf16>, vector<32x32xbf16>, vector<2x32xf32> -> vector<2x32xf32>
    %337 = arith.addf %336, %2 : vector<2x32xf32>
    %338 = vector.extract_strided_slice %19 {offsets = [28, 0], sizes = [2, 64], strides = [1, 1]} : vector<32x64xf32> to vector<2x64xf32>
    %339 = arith.addf %338, %335 : vector<2x64xf32>
    %340 = arith.negf %339 : vector<2x64xf32>
    %341 = math.exp %340 : vector<2x64xf32>
    %cst_100 = arith.constant 1.000000e+00 : f32
    %342 = vector.broadcast %cst_100 : f32 to vector<2x64xf32>
    %343 = arith.addf %342, %341 : vector<2x64xf32>
    %344 = arith.divf %342, %343 : vector<2x64xf32>
    %345 = vector.extract_strided_slice %344 {offsets = [0, 0], sizes = [2, 32], strides = [1, 1]} : vector<2x64xf32> to vector<2x32xf32>
    %346 = vector.extract_strided_slice %344 {offsets = [0, 32], sizes = [2, 32], strides = [1, 1]} : vector<2x64xf32> to vector<2x32xf32>
    %347 = vector.extract_strided_slice %23 {offsets = [28, 0], sizes = [2, 32], strides = [1, 1]} : vector<32x32xf32> to vector<2x32xf32>
    %348 = arith.mulf %345, %337 : vector<2x32xf32>
    %349 = arith.addf %347, %348 : vector<2x32xf32>
    %350 = math.tanh %349 : vector<2x32xf32>
    %cst_101 = arith.constant 1.000000e+00 : f32
    %351 = vector.broadcast %cst_101 : f32 to vector<2x32xf32>
    %352 = arith.subf %351, %346 : vector<2x32xf32>
    %353 = arith.mulf %352, %350 : vector<2x32xf32>
    %354 = arith.mulf %346, %333 : vector<2x32xf32>
    %355 = arith.addf %353, %354 : vector<2x32xf32>
    %356 = arith.truncf %355 : vector<2x32xf32> to vector<2x32xbf16>
    %cst_102 = arith.constant dense<0.000000e+00> : vector<2x64xf32>
    %357 = tpu.matmul %356, %0, %cst_102 {dimension_numbers = #tpu.dot_dimension_numbers<[1], [0], [0], [1], [0, 0, 1, 1], [], []>} : vector<2x32xbf16>, vector<32x64xbf16>, vector<2x64xf32> -> vector<2x64xf32>
    %cst_103 = arith.constant dense<0.000000e+00> : vector<2x32xf32>
    %358 = tpu.matmul %356, %1, %cst_103 {dimension_numbers = #tpu.dot_dimension_numbers<[1], [0], [0], [1], [0, 0, 1, 1], [], []>} : vector<2x32xbf16>, vector<32x32xbf16>, vector<2x32xf32> -> vector<2x32xf32>
    %359 = arith.addf %358, %2 : vector<2x32xf32>
    %360 = vector.extract_strided_slice %19 {offsets = [30, 0], sizes = [2, 64], strides = [1, 1]} : vector<32x64xf32> to vector<2x64xf32>
    %361 = arith.addf %360, %357 : vector<2x64xf32>
    %362 = arith.negf %361 : vector<2x64xf32>
    %363 = math.exp %362 : vector<2x64xf32>
    %cst_104 = arith.constant 1.000000e+00 : f32
    %364 = vector.broadcast %cst_104 : f32 to vector<2x64xf32>
    %365 = arith.addf %364, %363 : vector<2x64xf32>
    %366 = arith.divf %364, %365 : vector<2x64xf32>
    %367 = vector.extract_strided_slice %366 {offsets = [0, 0], sizes = [2, 32], strides = [1, 1]} : vector<2x64xf32> to vector<2x32xf32>
    %368 = vector.extract_strided_slice %366 {offsets = [0, 32], sizes = [2, 32], strides = [1, 1]} : vector<2x64xf32> to vector<2x32xf32>
    %369 = vector.extract_strided_slice %23 {offsets = [30, 0], sizes = [2, 32], strides = [1, 1]} : vector<32x32xf32> to vector<2x32xf32>
    %370 = arith.mulf %367, %359 : vector<2x32xf32>
    %371 = arith.addf %369, %370 : vector<2x32xf32>
    %372 = math.tanh %371 : vector<2x32xf32>
    %cst_105 = arith.constant 1.000000e+00 : f32
    %373 = vector.broadcast %cst_105 : f32 to vector<2x32xf32>
    %374 = arith.subf %373, %368 : vector<2x32xf32>
    %375 = arith.mulf %374, %372 : vector<2x32xf32>
    %376 = arith.mulf %368, %355 : vector<2x32xf32>
    %377 = arith.addf %375, %376 : vector<2x32xf32>
    %378 = tpu.concatenate %46, %68, %90, %112, %134, %156, %178, %200, %223, %245, %267, %289, %311, %333, %355, %377 in 0 : vector<2x32xf32>, vector<2x32xf32>, vector<2x32xf32>, vector<2x32xf32>, vector<2x32xf32>, vector<2x32xf32>, vector<2x32xf32>, vector<2x32xf32>, vector<2x32xf32>, vector<2x32xf32>, vector<2x32xf32>, vector<2x32xf32>, vector<2x32xf32>, vector<2x32xf32>, vector<2x32xf32>, vector<2x32xf32> -> vector<32x32xf32>
    %379 = arith.truncf %378 : vector<32x32xf32> to vector<32x32xbf16>
    %380 = tpu.transpose %378, [1, 0] : vector<32x32xf32> -> vector<32x32xf32>
    %381 = arith.truncf %380 : vector<32x32xf32> to vector<32x32xbf16>
    %382 = tpu.iota {dimensions = array<i32: 1>} : vector<2x32xi32>
    %c1_i32 = arith.constant 1 : i32
    %383 = vector.broadcast %c1_i32 : i32 to vector<2x1xi32>
    %384 = vector.broadcast %383 : vector<2x1xi32> to vector<2x32xi32>
    %385 = arith.cmpi eq, %382, %384 : vector<2x32xi32>
    %386 = arith.extui %385 : vector<2x32xi1> to vector<2x32xi32>
    %387 = arith.sitofp %386 : vector<2x32xi32> to vector<2x32xf32>
    %388 = arith.truncf %377 : vector<2x32xf32> to vector<2x32xbf16>
    %389 = tpu.concatenate %387, %377 in 1 : vector<2x32xf32>, vector<2x32xf32> -> vector<2x64xf32>
    %390 = arith.truncf %389 : vector<2x64xf32> to vector<2x64xbf16>
    %cst_106 = arith.constant dense<0.000000e+00> : vector<2x64xf32>
    %391 = tpu.matmul %390, %3, %cst_106 {dimension_numbers = #tpu.dot_dimension_numbers<[1], [0], [0], [1], [0, 0, 1, 1], [], []>} : vector<2x64xbf16>, vector<64x64xbf16>, vector<2x64xf32> -> vector<2x64xf32>
    %392 = arith.addf %391, %6 : vector<2x64xf32>
    %393 = arith.negf %392 : vector<2x64xf32>
    %394 = math.exp %393 : vector<2x64xf32>
    %cst_107 = arith.constant 1.000000e+00 : f32
    %395 = vector.broadcast %cst_107 : f32 to vector<2x64xf32>
    %396 = arith.addf %395, %394 : vector<2x64xf32>
    %397 = arith.divf %395, %396 : vector<2x64xf32>
    %398 = vector.extract_strided_slice %397 {offsets = [0, 0], sizes = [2, 32], strides = [1, 1]} : vector<2x64xf32> to vector<2x32xf32>
    %399 = vector.extract_strided_slice %397 {offsets = [0, 32], sizes = [2, 32], strides = [1, 1]} : vector<2x64xf32> to vector<2x32xf32>
    %400 = arith.truncf %387 : vector<2x32xf32> to vector<2x32xbf16>
    %cst_108 = arith.constant dense<0.000000e+00> : vector<2x32xf32>
    %401 = tpu.matmul %400, %4, %cst_108 {dimension_numbers = #tpu.dot_dimension_numbers<[1], [0], [0], [1], [0, 0, 1, 1], [], []>} : vector<2x32xbf16>, vector<32x32xbf16>, vector<2x32xf32> -> vector<2x32xf32>
    %402 = arith.addf %401, %7 : vector<2x32xf32>
    %cst_109 = arith.constant dense<0.000000e+00> : vector<2x32xf32>
    %403 = tpu.matmul %388, %5, %cst_109 {dimension_numbers = #tpu.dot_dimension_numbers<[1], [0], [0], [1], [0, 0, 1, 1], [], []>} : vector<2x32xbf16>, vector<32x32xbf16>, vector<2x32xf32> -> vector<2x32xf32>
    %404 = arith.addf %403, %8 : vector<2x32xf32>
    %405 = arith.mulf %398, %404 : vector<2x32xf32>
    %406 = arith.addf %402, %405 : vector<2x32xf32>
    %407 = math.tanh %406 : vector<2x32xf32>
    %cst_110 = arith.constant 1.000000e+00 : f32
    %408 = vector.broadcast %cst_110 : f32 to vector<2x32xf32>
    %409 = arith.subf %408, %399 : vector<2x32xf32>
    %410 = arith.mulf %409, %407 : vector<2x32xf32>
    %411 = arith.mulf %399, %377 : vector<2x32xf32>
    %412 = arith.addf %410, %411 : vector<2x32xf32>
    %413 = arith.truncf %412 : vector<2x32xf32> to vector<2x32xbf16>
    %cst_111 = arith.constant dense<0.000000e+00> : vector<2x32xf32>
    %414 = tpu.matmul %413, %381, %cst_111 {dimension_numbers = #tpu.dot_dimension_numbers<[1], [0], [0], [1], [0, 0, 1, 1], [], []>} : vector<2x32xbf16>, vector<32x32xbf16>, vector<2x32xf32> -> vector<2x32xf32>
    %415 = arith.addf %414, %14 : vector<2x32xf32>
    %cst_112 = arith.constant dense<0xFF800000> : vector<2xf32>
    %416 = vector.multi_reduction <maximumf>, %415, %cst_112 [1] : vector<2x32xf32> to vector<2xf32>
    %417 = vector.shape_cast %416 : vector<2xf32> to vector<2x1xf32>
    %418 = vector.broadcast %417 : vector<2x1xf32> to vector<2x32xf32>
    %419 = arith.subf %415, %418 : vector<2x32xf32>
    %420 = math.exp %419 : vector<2x32xf32>
    %cst_113 = arith.constant dense<0.000000e+00> : vector<2xf32>
    %421 = vector.multi_reduction <add>, %420, %cst_113 [1] : vector<2x32xf32> to vector<2xf32>
    %422 = vector.shape_cast %421 : vector<2xf32> to vector<2x1xf32>
    %423 = tpu.reciprocal %422 {approx = true} : vector<2x1xf32> -> vector<2x1xf32>
    %424 = vector.broadcast %423 : vector<2x1xf32> to vector<2x32xf32>
    %425 = arith.mulf %420, %424 : vector<2x32xf32>
    %426 = arith.truncf %425 : vector<2x32xf32> to vector<2x32xbf16>
    %cst_114 = arith.constant dense<0.000000e+00> : vector<2x32xf32>
    %427 = tpu.matmul %426, %379, %cst_114 {dimension_numbers = #tpu.dot_dimension_numbers<[1], [0], [0], [1], [0, 0, 1, 1], [], []>} : vector<2x32xbf16>, vector<32x32xbf16>, vector<2x32xf32> -> vector<2x32xf32>
    %428 = arith.truncf %427 : vector<2x32xf32> to vector<2x32xbf16>
    %cst_115 = arith.constant dense<0.000000e+00> : vector<2x32xf32>
    %429 = tpu.matmul %428, %9, %cst_115 {dimension_numbers = #tpu.dot_dimension_numbers<[1], [0], [0], [1], [0, 0, 1, 1], [], []>} : vector<2x32xbf16>, vector<32x32xbf16>, vector<2x32xf32> -> vector<2x32xf32>
    %cst_116 = arith.constant dense<0.000000e+00> : vector<2x32xf32>
    %430 = tpu.matmul %413, %10, %cst_116 {dimension_numbers = #tpu.dot_dimension_numbers<[1], [0], [0], [1], [0, 0, 1, 1], [], []>} : vector<2x32xbf16>, vector<32x32xbf16>, vector<2x32xf32> -> vector<2x32xf32>
    %431 = arith.addf %429, %430 : vector<2x32xf32>
    %432 = arith.addf %431, %11 : vector<2x32xf32>
    %433 = math.tanh %432 : vector<2x32xf32>
    %434 = arith.truncf %433 : vector<2x32xf32> to vector<2x32xbf16>
    %cst_117 = arith.constant dense<0.000000e+00> : vector<2x32xf32>
    %435 = tpu.matmul %434, %12, %cst_117 {dimension_numbers = #tpu.dot_dimension_numbers<[1], [0], [0], [1], [0, 0, 1, 1], [], []>} : vector<2x32xbf16>, vector<32x32xbf16>, vector<2x32xf32> -> vector<2x32xf32>
    %436 = arith.addf %435, %13 : vector<2x32xf32>
    %cst_118 = arith.constant dense<0xFF800000> : vector<2xf32>
    %437 = vector.multi_reduction <maximumf>, %436, %cst_118 [1] : vector<2x32xf32> to vector<2xf32>
    %438 = vector.shape_cast %437 : vector<2xf32> to vector<2x1xf32>
    %439 = vector.broadcast %438 : vector<2x1xf32> to vector<2x32xf32>
    %440 = arith.cmpf oge, %436, %439 : vector<2x32xf32>
    %c32_i32 = arith.constant 32 : i32
    %441 = vector.broadcast %c32_i32 : i32 to vector<2x32xi32>
    %442 = arith.select %440, %382, %441 : vector<2x32xi1>, vector<2x32xi32>
    %cst_119 = arith.constant dense<2147483647> : vector<2xi32>
    %443 = vector.multi_reduction <minsi>, %442, %cst_119 [1] : vector<2x32xi32> to vector<2xi32>
    %444 = vector.shape_cast %443 : vector<2xi32> to vector<2x1xi32>
    %445 = vector.broadcast %438 : vector<2x1xf32> to vector<2x32xf32>
    %446 = arith.subf %436, %445 : vector<2x32xf32>
    %447 = math.exp %446 : vector<2x32xf32>
    %cst_120 = arith.constant dense<0.000000e+00> : vector<2xf32>
    %448 = vector.multi_reduction <add>, %447, %cst_120 [1] : vector<2x32xf32> to vector<2xf32>
    %449 = vector.shape_cast %448 : vector<2xf32> to vector<2x1xf32>
    %450 = math.log %449 : vector<2x1xf32>
    %451 = arith.addf %450, %438 : vector<2x1xf32>
    %452 = vector.broadcast %451 : vector<2x1xf32> to vector<2x32xf32>
    %453 = arith.subf %436, %452 : vector<2x32xf32>
    %454 = vector.broadcast %444 : vector<2x1xi32> to vector<2x32xi32>
    %455 = arith.cmpi eq, %382, %454 : vector<2x32xi32>
    %456 = arith.extui %455 : vector<2x32xi1> to vector<2x32xi32>
    %457 = arith.sitofp %456 : vector<2x32xi32> to vector<2x32xf32>
    %458 = arith.truncf %412 : vector<2x32xf32> to vector<2x32xbf16>
    %459 = tpu.concatenate %457, %412 in 1 : vector<2x32xf32>, vector<2x32xf32> -> vector<2x64xf32>
    %460 = arith.truncf %459 : vector<2x64xf32> to vector<2x64xbf16>
    %cst_121 = arith.constant dense<0.000000e+00> : vector<2x64xf32>
    %461 = tpu.matmul %460, %3, %cst_121 {dimension_numbers = #tpu.dot_dimension_numbers<[1], [0], [0], [1], [0, 0, 1, 1], [], []>} : vector<2x64xbf16>, vector<64x64xbf16>, vector<2x64xf32> -> vector<2x64xf32>
    %462 = arith.addf %461, %6 : vector<2x64xf32>
    %463 = arith.negf %462 : vector<2x64xf32>
    %464 = math.exp %463 : vector<2x64xf32>
    %cst_122 = arith.constant 1.000000e+00 : f32
    %465 = vector.broadcast %cst_122 : f32 to vector<2x64xf32>
    %466 = arith.addf %465, %464 : vector<2x64xf32>
    %467 = arith.divf %465, %466 : vector<2x64xf32>
    %468 = vector.extract_strided_slice %467 {offsets = [0, 0], sizes = [2, 32], strides = [1, 1]} : vector<2x64xf32> to vector<2x32xf32>
    %469 = vector.extract_strided_slice %467 {offsets = [0, 32], sizes = [2, 32], strides = [1, 1]} : vector<2x64xf32> to vector<2x32xf32>
    %470 = arith.truncf %457 : vector<2x32xf32> to vector<2x32xbf16>
    %cst_123 = arith.constant dense<0.000000e+00> : vector<2x32xf32>
    %471 = tpu.matmul %470, %4, %cst_123 {dimension_numbers = #tpu.dot_dimension_numbers<[1], [0], [0], [1], [0, 0, 1, 1], [], []>} : vector<2x32xbf16>, vector<32x32xbf16>, vector<2x32xf32> -> vector<2x32xf32>
    %472 = arith.addf %471, %7 : vector<2x32xf32>
    %cst_124 = arith.constant dense<0.000000e+00> : vector<2x32xf32>
    %473 = tpu.matmul %458, %5, %cst_124 {dimension_numbers = #tpu.dot_dimension_numbers<[1], [0], [0], [1], [0, 0, 1, 1], [], []>} : vector<2x32xbf16>, vector<32x32xbf16>, vector<2x32xf32> -> vector<2x32xf32>
    %474 = arith.addf %473, %8 : vector<2x32xf32>
    %475 = arith.mulf %468, %474 : vector<2x32xf32>
    %476 = arith.addf %472, %475 : vector<2x32xf32>
    %477 = math.tanh %476 : vector<2x32xf32>
    %cst_125 = arith.constant 1.000000e+00 : f32
    %478 = vector.broadcast %cst_125 : f32 to vector<2x32xf32>
    %479 = arith.subf %478, %469 : vector<2x32xf32>
    %480 = arith.mulf %479, %477 : vector<2x32xf32>
    %481 = arith.mulf %469, %412 : vector<2x32xf32>
    %482 = arith.addf %480, %481 : vector<2x32xf32>
    %483 = arith.truncf %482 : vector<2x32xf32> to vector<2x32xbf16>
    %cst_126 = arith.constant dense<0.000000e+00> : vector<2x32xf32>
    %484 = tpu.matmul %483, %381, %cst_126 {dimension_numbers = #tpu.dot_dimension_numbers<[1], [0], [0], [1], [0, 0, 1, 1], [], []>} : vector<2x32xbf16>, vector<32x32xbf16>, vector<2x32xf32> -> vector<2x32xf32>
    %485 = arith.addf %484, %14 : vector<2x32xf32>
    %cst_127 = arith.constant dense<0xFF800000> : vector<2xf32>
    %486 = vector.multi_reduction <maximumf>, %485, %cst_127 [1] : vector<2x32xf32> to vector<2xf32>
    %487 = vector.shape_cast %486 : vector<2xf32> to vector<2x1xf32>
    %488 = vector.broadcast %487 : vector<2x1xf32> to vector<2x32xf32>
    %489 = arith.subf %485, %488 : vector<2x32xf32>
    %490 = math.exp %489 : vector<2x32xf32>
    %cst_128 = arith.constant dense<0.000000e+00> : vector<2xf32>
    %491 = vector.multi_reduction <add>, %490, %cst_128 [1] : vector<2x32xf32> to vector<2xf32>
    %492 = vector.shape_cast %491 : vector<2xf32> to vector<2x1xf32>
    %493 = tpu.reciprocal %492 {approx = true} : vector<2x1xf32> -> vector<2x1xf32>
    %494 = vector.broadcast %493 : vector<2x1xf32> to vector<2x32xf32>
    %495 = arith.mulf %490, %494 : vector<2x32xf32>
    %496 = arith.truncf %495 : vector<2x32xf32> to vector<2x32xbf16>
    %cst_129 = arith.constant dense<0.000000e+00> : vector<2x32xf32>
    %497 = tpu.matmul %496, %379, %cst_129 {dimension_numbers = #tpu.dot_dimension_numbers<[1], [0], [0], [1], [0, 0, 1, 1], [], []>} : vector<2x32xbf16>, vector<32x32xbf16>, vector<2x32xf32> -> vector<2x32xf32>
    %498 = arith.truncf %497 : vector<2x32xf32> to vector<2x32xbf16>
    %cst_130 = arith.constant dense<0.000000e+00> : vector<2x32xf32>
    %499 = tpu.matmul %498, %9, %cst_130 {dimension_numbers = #tpu.dot_dimension_numbers<[1], [0], [0], [1], [0, 0, 1, 1], [], []>} : vector<2x32xbf16>, vector<32x32xbf16>, vector<2x32xf32> -> vector<2x32xf32>
    %cst_131 = arith.constant dense<0.000000e+00> : vector<2x32xf32>
    %500 = tpu.matmul %483, %10, %cst_131 {dimension_numbers = #tpu.dot_dimension_numbers<[1], [0], [0], [1], [0, 0, 1, 1], [], []>} : vector<2x32xbf16>, vector<32x32xbf16>, vector<2x32xf32> -> vector<2x32xf32>
    %501 = arith.addf %499, %500 : vector<2x32xf32>
    %502 = arith.addf %501, %11 : vector<2x32xf32>
    %503 = math.tanh %502 : vector<2x32xf32>
    %504 = arith.truncf %503 : vector<2x32xf32> to vector<2x32xbf16>
    %cst_132 = arith.constant dense<0.000000e+00> : vector<2x32xf32>
    %505 = tpu.matmul %504, %12, %cst_132 {dimension_numbers = #tpu.dot_dimension_numbers<[1], [0], [0], [1], [0, 0, 1, 1], [], []>} : vector<2x32xbf16>, vector<32x32xbf16>, vector<2x32xf32> -> vector<2x32xf32>
    %506 = arith.addf %505, %13 : vector<2x32xf32>
    %cst_133 = arith.constant dense<0xFF800000> : vector<2xf32>
    %507 = vector.multi_reduction <maximumf>, %506, %cst_133 [1] : vector<2x32xf32> to vector<2xf32>
    %508 = vector.shape_cast %507 : vector<2xf32> to vector<2x1xf32>
    %509 = vector.broadcast %508 : vector<2x1xf32> to vector<2x32xf32>
    %510 = arith.cmpf oge, %506, %509 : vector<2x32xf32>
    %c32_i32_134 = arith.constant 32 : i32
    %511 = vector.broadcast %c32_i32_134 : i32 to vector<2x32xi32>
    %512 = arith.select %510, %382, %511 : vector<2x32xi1>, vector<2x32xi32>
    %cst_135 = arith.constant dense<2147483647> : vector<2xi32>
    %513 = vector.multi_reduction <minsi>, %512, %cst_135 [1] : vector<2x32xi32> to vector<2xi32>
    %514 = vector.shape_cast %513 : vector<2xi32> to vector<2x1xi32>
    %515 = vector.broadcast %508 : vector<2x1xf32> to vector<2x32xf32>
    %516 = arith.subf %506, %515 : vector<2x32xf32>
    %517 = math.exp %516 : vector<2x32xf32>
    %cst_136 = arith.constant dense<0.000000e+00> : vector<2xf32>
    %518 = vector.multi_reduction <add>, %517, %cst_136 [1] : vector<2x32xf32> to vector<2xf32>
    %519 = vector.shape_cast %518 : vector<2xf32> to vector<2x1xf32>
    %520 = math.log %519 : vector<2x1xf32>
    %521 = arith.addf %520, %508 : vector<2x1xf32>
    %522 = vector.broadcast %521 : vector<2x1xf32> to vector<2x32xf32>
    %523 = arith.subf %506, %522 : vector<2x32xf32>
    %524 = vector.broadcast %514 : vector<2x1xi32> to vector<2x32xi32>
    %525 = arith.cmpi eq, %382, %524 : vector<2x32xi32>
    %526 = arith.extui %525 : vector<2x32xi1> to vector<2x32xi32>
    %527 = arith.sitofp %526 : vector<2x32xi32> to vector<2x32xf32>
    %528 = arith.truncf %482 : vector<2x32xf32> to vector<2x32xbf16>
    %529 = tpu.concatenate %527, %482 in 1 : vector<2x32xf32>, vector<2x32xf32> -> vector<2x64xf32>
    %530 = arith.truncf %529 : vector<2x64xf32> to vector<2x64xbf16>
    %cst_137 = arith.constant dense<0.000000e+00> : vector<2x64xf32>
    %531 = tpu.matmul %530, %3, %cst_137 {dimension_numbers = #tpu.dot_dimension_numbers<[1], [0], [0], [1], [0, 0, 1, 1], [], []>} : vector<2x64xbf16>, vector<64x64xbf16>, vector<2x64xf32> -> vector<2x64xf32>
    %532 = arith.addf %531, %6 : vector<2x64xf32>
    %533 = arith.negf %532 : vector<2x64xf32>
    %534 = math.exp %533 : vector<2x64xf32>
    %cst_138 = arith.constant 1.000000e+00 : f32
    %535 = vector.broadcast %cst_138 : f32 to vector<2x64xf32>
    %536 = arith.addf %535, %534 : vector<2x64xf32>
    %537 = arith.divf %535, %536 : vector<2x64xf32>
    %538 = vector.extract_strided_slice %537 {offsets = [0, 0], sizes = [2, 32], strides = [1, 1]} : vector<2x64xf32> to vector<2x32xf32>
    %539 = vector.extract_strided_slice %537 {offsets = [0, 32], sizes = [2, 32], strides = [1, 1]} : vector<2x64xf32> to vector<2x32xf32>
    %540 = arith.truncf %527 : vector<2x32xf32> to vector<2x32xbf16>
    %cst_139 = arith.constant dense<0.000000e+00> : vector<2x32xf32>
    %541 = tpu.matmul %540, %4, %cst_139 {dimension_numbers = #tpu.dot_dimension_numbers<[1], [0], [0], [1], [0, 0, 1, 1], [], []>} : vector<2x32xbf16>, vector<32x32xbf16>, vector<2x32xf32> -> vector<2x32xf32>
    %542 = arith.addf %541, %7 : vector<2x32xf32>
    %cst_140 = arith.constant dense<0.000000e+00> : vector<2x32xf32>
    %543 = tpu.matmul %528, %5, %cst_140 {dimension_numbers = #tpu.dot_dimension_numbers<[1], [0], [0], [1], [0, 0, 1, 1], [], []>} : vector<2x32xbf16>, vector<32x32xbf16>, vector<2x32xf32> -> vector<2x32xf32>
    %544 = arith.addf %543, %8 : vector<2x32xf32>
    %545 = arith.mulf %538, %544 : vector<2x32xf32>
    %546 = arith.addf %542, %545 : vector<2x32xf32>
    %547 = math.tanh %546 : vector<2x32xf32>
    %cst_141 = arith.constant 1.000000e+00 : f32
    %548 = vector.broadcast %cst_141 : f32 to vector<2x32xf32>
    %549 = arith.subf %548, %539 : vector<2x32xf32>
    %550 = arith.mulf %549, %547 : vector<2x32xf32>
    %551 = arith.mulf %539, %482 : vector<2x32xf32>
    %552 = arith.addf %550, %551 : vector<2x32xf32>
    %553 = arith.truncf %552 : vector<2x32xf32> to vector<2x32xbf16>
    %cst_142 = arith.constant dense<0.000000e+00> : vector<2x32xf32>
    %554 = tpu.matmul %553, %381, %cst_142 {dimension_numbers = #tpu.dot_dimension_numbers<[1], [0], [0], [1], [0, 0, 1, 1], [], []>} : vector<2x32xbf16>, vector<32x32xbf16>, vector<2x32xf32> -> vector<2x32xf32>
    %555 = arith.addf %554, %14 : vector<2x32xf32>
    %cst_143 = arith.constant dense<0xFF800000> : vector<2xf32>
    %556 = vector.multi_reduction <maximumf>, %555, %cst_143 [1] : vector<2x32xf32> to vector<2xf32>
    %557 = vector.shape_cast %556 : vector<2xf32> to vector<2x1xf32>
    %558 = vector.broadcast %557 : vector<2x1xf32> to vector<2x32xf32>
    %559 = arith.subf %555, %558 : vector<2x32xf32>
    %560 = math.exp %559 : vector<2x32xf32>
    %cst_144 = arith.constant dense<0.000000e+00> : vector<2xf32>
    %561 = vector.multi_reduction <add>, %560, %cst_144 [1] : vector<2x32xf32> to vector<2xf32>
    %562 = vector.shape_cast %561 : vector<2xf32> to vector<2x1xf32>
    %563 = tpu.reciprocal %562 {approx = true} : vector<2x1xf32> -> vector<2x1xf32>
    %564 = vector.broadcast %563 : vector<2x1xf32> to vector<2x32xf32>
    %565 = arith.mulf %560, %564 : vector<2x32xf32>
    %566 = arith.truncf %565 : vector<2x32xf32> to vector<2x32xbf16>
    %cst_145 = arith.constant dense<0.000000e+00> : vector<2x32xf32>
    %567 = tpu.matmul %566, %379, %cst_145 {dimension_numbers = #tpu.dot_dimension_numbers<[1], [0], [0], [1], [0, 0, 1, 1], [], []>} : vector<2x32xbf16>, vector<32x32xbf16>, vector<2x32xf32> -> vector<2x32xf32>
    %568 = arith.truncf %567 : vector<2x32xf32> to vector<2x32xbf16>
    %cst_146 = arith.constant dense<0.000000e+00> : vector<2x32xf32>
    %569 = tpu.matmul %568, %9, %cst_146 {dimension_numbers = #tpu.dot_dimension_numbers<[1], [0], [0], [1], [0, 0, 1, 1], [], []>} : vector<2x32xbf16>, vector<32x32xbf16>, vector<2x32xf32> -> vector<2x32xf32>
    %cst_147 = arith.constant dense<0.000000e+00> : vector<2x32xf32>
    %570 = tpu.matmul %553, %10, %cst_147 {dimension_numbers = #tpu.dot_dimension_numbers<[1], [0], [0], [1], [0, 0, 1, 1], [], []>} : vector<2x32xbf16>, vector<32x32xbf16>, vector<2x32xf32> -> vector<2x32xf32>
    %571 = arith.addf %569, %570 : vector<2x32xf32>
    %572 = arith.addf %571, %11 : vector<2x32xf32>
    %573 = math.tanh %572 : vector<2x32xf32>
    %574 = arith.truncf %573 : vector<2x32xf32> to vector<2x32xbf16>
    %cst_148 = arith.constant dense<0.000000e+00> : vector<2x32xf32>
    %575 = tpu.matmul %574, %12, %cst_148 {dimension_numbers = #tpu.dot_dimension_numbers<[1], [0], [0], [1], [0, 0, 1, 1], [], []>} : vector<2x32xbf16>, vector<32x32xbf16>, vector<2x32xf32> -> vector<2x32xf32>
    %576 = arith.addf %575, %13 : vector<2x32xf32>
    %cst_149 = arith.constant dense<0xFF800000> : vector<2xf32>
    %577 = vector.multi_reduction <maximumf>, %576, %cst_149 [1] : vector<2x32xf32> to vector<2xf32>
    %578 = vector.shape_cast %577 : vector<2xf32> to vector<2x1xf32>
    %579 = vector.broadcast %578 : vector<2x1xf32> to vector<2x32xf32>
    %580 = arith.cmpf oge, %576, %579 : vector<2x32xf32>
    %c32_i32_150 = arith.constant 32 : i32
    %581 = vector.broadcast %c32_i32_150 : i32 to vector<2x32xi32>
    %582 = arith.select %580, %382, %581 : vector<2x32xi1>, vector<2x32xi32>
    %cst_151 = arith.constant dense<2147483647> : vector<2xi32>
    %583 = vector.multi_reduction <minsi>, %582, %cst_151 [1] : vector<2x32xi32> to vector<2xi32>
    %584 = vector.shape_cast %583 : vector<2xi32> to vector<2x1xi32>
    %585 = vector.broadcast %578 : vector<2x1xf32> to vector<2x32xf32>
    %586 = arith.subf %576, %585 : vector<2x32xf32>
    %587 = math.exp %586 : vector<2x32xf32>
    %cst_152 = arith.constant dense<0.000000e+00> : vector<2xf32>
    %588 = vector.multi_reduction <add>, %587, %cst_152 [1] : vector<2x32xf32> to vector<2xf32>
    %589 = vector.shape_cast %588 : vector<2xf32> to vector<2x1xf32>
    %590 = math.log %589 : vector<2x1xf32>
    %591 = arith.addf %590, %578 : vector<2x1xf32>
    %592 = vector.broadcast %591 : vector<2x1xf32> to vector<2x32xf32>
    %593 = arith.subf %576, %592 : vector<2x32xf32>
    %594 = vector.broadcast %584 : vector<2x1xi32> to vector<2x32xi32>
    %595 = arith.cmpi eq, %382, %594 : vector<2x32xi32>
    %596 = arith.extui %595 : vector<2x32xi1> to vector<2x32xi32>
    %597 = arith.sitofp %596 : vector<2x32xi32> to vector<2x32xf32>
    %598 = arith.truncf %552 : vector<2x32xf32> to vector<2x32xbf16>
    %599 = tpu.concatenate %597, %552 in 1 : vector<2x32xf32>, vector<2x32xf32> -> vector<2x64xf32>
    %600 = arith.truncf %599 : vector<2x64xf32> to vector<2x64xbf16>
    %cst_153 = arith.constant dense<0.000000e+00> : vector<2x64xf32>
    %601 = tpu.matmul %600, %3, %cst_153 {dimension_numbers = #tpu.dot_dimension_numbers<[1], [0], [0], [1], [0, 0, 1, 1], [], []>} : vector<2x64xbf16>, vector<64x64xbf16>, vector<2x64xf32> -> vector<2x64xf32>
    %602 = arith.addf %601, %6 : vector<2x64xf32>
    %603 = arith.negf %602 : vector<2x64xf32>
    %604 = math.exp %603 : vector<2x64xf32>
    %cst_154 = arith.constant 1.000000e+00 : f32
    %605 = vector.broadcast %cst_154 : f32 to vector<2x64xf32>
    %606 = arith.addf %605, %604 : vector<2x64xf32>
    %607 = arith.divf %605, %606 : vector<2x64xf32>
    %608 = vector.extract_strided_slice %607 {offsets = [0, 0], sizes = [2, 32], strides = [1, 1]} : vector<2x64xf32> to vector<2x32xf32>
    %609 = vector.extract_strided_slice %607 {offsets = [0, 32], sizes = [2, 32], strides = [1, 1]} : vector<2x64xf32> to vector<2x32xf32>
    %610 = arith.truncf %597 : vector<2x32xf32> to vector<2x32xbf16>
    %cst_155 = arith.constant dense<0.000000e+00> : vector<2x32xf32>
    %611 = tpu.matmul %610, %4, %cst_155 {dimension_numbers = #tpu.dot_dimension_numbers<[1], [0], [0], [1], [0, 0, 1, 1], [], []>} : vector<2x32xbf16>, vector<32x32xbf16>, vector<2x32xf32> -> vector<2x32xf32>
    %612 = arith.addf %611, %7 : vector<2x32xf32>
    %cst_156 = arith.constant dense<0.000000e+00> : vector<2x32xf32>
    %613 = tpu.matmul %598, %5, %cst_156 {dimension_numbers = #tpu.dot_dimension_numbers<[1], [0], [0], [1], [0, 0, 1, 1], [], []>} : vector<2x32xbf16>, vector<32x32xbf16>, vector<2x32xf32> -> vector<2x32xf32>
    %614 = arith.addf %613, %8 : vector<2x32xf32>
    %615 = arith.mulf %608, %614 : vector<2x32xf32>
    %616 = arith.addf %612, %615 : vector<2x32xf32>
    %617 = math.tanh %616 : vector<2x32xf32>
    %cst_157 = arith.constant 1.000000e+00 : f32
    %618 = vector.broadcast %cst_157 : f32 to vector<2x32xf32>
    %619 = arith.subf %618, %609 : vector<2x32xf32>
    %620 = arith.mulf %619, %617 : vector<2x32xf32>
    %621 = arith.mulf %609, %552 : vector<2x32xf32>
    %622 = arith.addf %620, %621 : vector<2x32xf32>
    %623 = arith.truncf %622 : vector<2x32xf32> to vector<2x32xbf16>
    %cst_158 = arith.constant dense<0.000000e+00> : vector<2x32xf32>
    %624 = tpu.matmul %623, %381, %cst_158 {dimension_numbers = #tpu.dot_dimension_numbers<[1], [0], [0], [1], [0, 0, 1, 1], [], []>} : vector<2x32xbf16>, vector<32x32xbf16>, vector<2x32xf32> -> vector<2x32xf32>
    %625 = arith.addf %624, %14 : vector<2x32xf32>
    %cst_159 = arith.constant dense<0xFF800000> : vector<2xf32>
    %626 = vector.multi_reduction <maximumf>, %625, %cst_159 [1] : vector<2x32xf32> to vector<2xf32>
    %627 = vector.shape_cast %626 : vector<2xf32> to vector<2x1xf32>
    %628 = vector.broadcast %627 : vector<2x1xf32> to vector<2x32xf32>
    %629 = arith.subf %625, %628 : vector<2x32xf32>
    %630 = math.exp %629 : vector<2x32xf32>
    %cst_160 = arith.constant dense<0.000000e+00> : vector<2xf32>
    %631 = vector.multi_reduction <add>, %630, %cst_160 [1] : vector<2x32xf32> to vector<2xf32>
    %632 = vector.shape_cast %631 : vector<2xf32> to vector<2x1xf32>
    %633 = tpu.reciprocal %632 {approx = true} : vector<2x1xf32> -> vector<2x1xf32>
    %634 = vector.broadcast %633 : vector<2x1xf32> to vector<2x32xf32>
    %635 = arith.mulf %630, %634 : vector<2x32xf32>
    %636 = arith.truncf %635 : vector<2x32xf32> to vector<2x32xbf16>
    %cst_161 = arith.constant dense<0.000000e+00> : vector<2x32xf32>
    %637 = tpu.matmul %636, %379, %cst_161 {dimension_numbers = #tpu.dot_dimension_numbers<[1], [0], [0], [1], [0, 0, 1, 1], [], []>} : vector<2x32xbf16>, vector<32x32xbf16>, vector<2x32xf32> -> vector<2x32xf32>
    %638 = arith.truncf %637 : vector<2x32xf32> to vector<2x32xbf16>
    %cst_162 = arith.constant dense<0.000000e+00> : vector<2x32xf32>
    %639 = tpu.matmul %638, %9, %cst_162 {dimension_numbers = #tpu.dot_dimension_numbers<[1], [0], [0], [1], [0, 0, 1, 1], [], []>} : vector<2x32xbf16>, vector<32x32xbf16>, vector<2x32xf32> -> vector<2x32xf32>
    %cst_163 = arith.constant dense<0.000000e+00> : vector<2x32xf32>
    %640 = tpu.matmul %623, %10, %cst_163 {dimension_numbers = #tpu.dot_dimension_numbers<[1], [0], [0], [1], [0, 0, 1, 1], [], []>} : vector<2x32xbf16>, vector<32x32xbf16>, vector<2x32xf32> -> vector<2x32xf32>
    %641 = arith.addf %639, %640 : vector<2x32xf32>
    %642 = arith.addf %641, %11 : vector<2x32xf32>
    %643 = math.tanh %642 : vector<2x32xf32>
    %644 = arith.truncf %643 : vector<2x32xf32> to vector<2x32xbf16>
    %cst_164 = arith.constant dense<0.000000e+00> : vector<2x32xf32>
    %645 = tpu.matmul %644, %12, %cst_164 {dimension_numbers = #tpu.dot_dimension_numbers<[1], [0], [0], [1], [0, 0, 1, 1], [], []>} : vector<2x32xbf16>, vector<32x32xbf16>, vector<2x32xf32> -> vector<2x32xf32>
    %646 = arith.addf %645, %13 : vector<2x32xf32>
    %cst_165 = arith.constant dense<0xFF800000> : vector<2xf32>
    %647 = vector.multi_reduction <maximumf>, %646, %cst_165 [1] : vector<2x32xf32> to vector<2xf32>
    %648 = vector.shape_cast %647 : vector<2xf32> to vector<2x1xf32>
    %649 = vector.broadcast %648 : vector<2x1xf32> to vector<2x32xf32>
    %650 = arith.cmpf oge, %646, %649 : vector<2x32xf32>
    %c32_i32_166 = arith.constant 32 : i32
    %651 = vector.broadcast %c32_i32_166 : i32 to vector<2x32xi32>
    %652 = arith.select %650, %382, %651 : vector<2x32xi1>, vector<2x32xi32>
    %cst_167 = arith.constant dense<2147483647> : vector<2xi32>
    %653 = vector.multi_reduction <minsi>, %652, %cst_167 [1] : vector<2x32xi32> to vector<2xi32>
    %654 = vector.shape_cast %653 : vector<2xi32> to vector<2x1xi32>
    %655 = vector.broadcast %648 : vector<2x1xf32> to vector<2x32xf32>
    %656 = arith.subf %646, %655 : vector<2x32xf32>
    %657 = math.exp %656 : vector<2x32xf32>
    %cst_168 = arith.constant dense<0.000000e+00> : vector<2xf32>
    %658 = vector.multi_reduction <add>, %657, %cst_168 [1] : vector<2x32xf32> to vector<2xf32>
    %659 = vector.shape_cast %658 : vector<2xf32> to vector<2x1xf32>
    %660 = math.log %659 : vector<2x1xf32>
    %661 = arith.addf %660, %648 : vector<2x1xf32>
    %662 = vector.broadcast %661 : vector<2x1xf32> to vector<2x32xf32>
    %663 = arith.subf %646, %662 : vector<2x32xf32>
    %664 = vector.broadcast %654 : vector<2x1xi32> to vector<2x32xi32>
    %665 = arith.cmpi eq, %382, %664 : vector<2x32xi32>
    %666 = arith.extui %665 : vector<2x32xi1> to vector<2x32xi32>
    %667 = arith.sitofp %666 : vector<2x32xi32> to vector<2x32xf32>
    %668 = arith.truncf %622 : vector<2x32xf32> to vector<2x32xbf16>
    %669 = tpu.concatenate %667, %622 in 1 : vector<2x32xf32>, vector<2x32xf32> -> vector<2x64xf32>
    %670 = arith.truncf %669 : vector<2x64xf32> to vector<2x64xbf16>
    %cst_169 = arith.constant dense<0.000000e+00> : vector<2x64xf32>
    %671 = tpu.matmul %670, %3, %cst_169 {dimension_numbers = #tpu.dot_dimension_numbers<[1], [0], [0], [1], [0, 0, 1, 1], [], []>} : vector<2x64xbf16>, vector<64x64xbf16>, vector<2x64xf32> -> vector<2x64xf32>
    %672 = arith.addf %671, %6 : vector<2x64xf32>
    %673 = arith.negf %672 : vector<2x64xf32>
    %674 = math.exp %673 : vector<2x64xf32>
    %cst_170 = arith.constant 1.000000e+00 : f32
    %675 = vector.broadcast %cst_170 : f32 to vector<2x64xf32>
    %676 = arith.addf %675, %674 : vector<2x64xf32>
    %677 = arith.divf %675, %676 : vector<2x64xf32>
    %678 = vector.extract_strided_slice %677 {offsets = [0, 0], sizes = [2, 32], strides = [1, 1]} : vector<2x64xf32> to vector<2x32xf32>
    %679 = vector.extract_strided_slice %677 {offsets = [0, 32], sizes = [2, 32], strides = [1, 1]} : vector<2x64xf32> to vector<2x32xf32>
    %680 = arith.truncf %667 : vector<2x32xf32> to vector<2x32xbf16>
    %cst_171 = arith.constant dense<0.000000e+00> : vector<2x32xf32>
    %681 = tpu.matmul %680, %4, %cst_171 {dimension_numbers = #tpu.dot_dimension_numbers<[1], [0], [0], [1], [0, 0, 1, 1], [], []>} : vector<2x32xbf16>, vector<32x32xbf16>, vector<2x32xf32> -> vector<2x32xf32>
    %682 = arith.addf %681, %7 : vector<2x32xf32>
    %cst_172 = arith.constant dense<0.000000e+00> : vector<2x32xf32>
    %683 = tpu.matmul %668, %5, %cst_172 {dimension_numbers = #tpu.dot_dimension_numbers<[1], [0], [0], [1], [0, 0, 1, 1], [], []>} : vector<2x32xbf16>, vector<32x32xbf16>, vector<2x32xf32> -> vector<2x32xf32>
    %684 = arith.addf %683, %8 : vector<2x32xf32>
    %685 = arith.mulf %678, %684 : vector<2x32xf32>
    %686 = arith.addf %682, %685 : vector<2x32xf32>
    %687 = math.tanh %686 : vector<2x32xf32>
    %cst_173 = arith.constant 1.000000e+00 : f32
    %688 = vector.broadcast %cst_173 : f32 to vector<2x32xf32>
    %689 = arith.subf %688, %679 : vector<2x32xf32>
    %690 = arith.mulf %689, %687 : vector<2x32xf32>
    %691 = arith.mulf %679, %622 : vector<2x32xf32>
    %692 = arith.addf %690, %691 : vector<2x32xf32>
    %693 = arith.truncf %692 : vector<2x32xf32> to vector<2x32xbf16>
    %cst_174 = arith.constant dense<0.000000e+00> : vector<2x32xf32>
    %694 = tpu.matmul %693, %381, %cst_174 {dimension_numbers = #tpu.dot_dimension_numbers<[1], [0], [0], [1], [0, 0, 1, 1], [], []>} : vector<2x32xbf16>, vector<32x32xbf16>, vector<2x32xf32> -> vector<2x32xf32>
    %695 = arith.addf %694, %14 : vector<2x32xf32>
    %cst_175 = arith.constant dense<0xFF800000> : vector<2xf32>
    %696 = vector.multi_reduction <maximumf>, %695, %cst_175 [1] : vector<2x32xf32> to vector<2xf32>
    %697 = vector.shape_cast %696 : vector<2xf32> to vector<2x1xf32>
    %698 = vector.broadcast %697 : vector<2x1xf32> to vector<2x32xf32>
    %699 = arith.subf %695, %698 : vector<2x32xf32>
    %700 = math.exp %699 : vector<2x32xf32>
    %cst_176 = arith.constant dense<0.000000e+00> : vector<2xf32>
    %701 = vector.multi_reduction <add>, %700, %cst_176 [1] : vector<2x32xf32> to vector<2xf32>
    %702 = vector.shape_cast %701 : vector<2xf32> to vector<2x1xf32>
    %703 = tpu.reciprocal %702 {approx = true} : vector<2x1xf32> -> vector<2x1xf32>
    %704 = vector.broadcast %703 : vector<2x1xf32> to vector<2x32xf32>
    %705 = arith.mulf %700, %704 : vector<2x32xf32>
    %706 = arith.truncf %705 : vector<2x32xf32> to vector<2x32xbf16>
    %cst_177 = arith.constant dense<0.000000e+00> : vector<2x32xf32>
    %707 = tpu.matmul %706, %379, %cst_177 {dimension_numbers = #tpu.dot_dimension_numbers<[1], [0], [0], [1], [0, 0, 1, 1], [], []>} : vector<2x32xbf16>, vector<32x32xbf16>, vector<2x32xf32> -> vector<2x32xf32>
    %708 = arith.truncf %707 : vector<2x32xf32> to vector<2x32xbf16>
    %cst_178 = arith.constant dense<0.000000e+00> : vector<2x32xf32>
    %709 = tpu.matmul %708, %9, %cst_178 {dimension_numbers = #tpu.dot_dimension_numbers<[1], [0], [0], [1], [0, 0, 1, 1], [], []>} : vector<2x32xbf16>, vector<32x32xbf16>, vector<2x32xf32> -> vector<2x32xf32>
    %cst_179 = arith.constant dense<0.000000e+00> : vector<2x32xf32>
    %710 = tpu.matmul %693, %10, %cst_179 {dimension_numbers = #tpu.dot_dimension_numbers<[1], [0], [0], [1], [0, 0, 1, 1], [], []>} : vector<2x32xbf16>, vector<32x32xbf16>, vector<2x32xf32> -> vector<2x32xf32>
    %711 = arith.addf %709, %710 : vector<2x32xf32>
    %712 = arith.addf %711, %11 : vector<2x32xf32>
    %713 = math.tanh %712 : vector<2x32xf32>
    %714 = arith.truncf %713 : vector<2x32xf32> to vector<2x32xbf16>
    %cst_180 = arith.constant dense<0.000000e+00> : vector<2x32xf32>
    %715 = tpu.matmul %714, %12, %cst_180 {dimension_numbers = #tpu.dot_dimension_numbers<[1], [0], [0], [1], [0, 0, 1, 1], [], []>} : vector<2x32xbf16>, vector<32x32xbf16>, vector<2x32xf32> -> vector<2x32xf32>
    %716 = arith.addf %715, %13 : vector<2x32xf32>
    %cst_181 = arith.constant dense<0xFF800000> : vector<2xf32>
    %717 = vector.multi_reduction <maximumf>, %716, %cst_181 [1] : vector<2x32xf32> to vector<2xf32>
    %718 = vector.shape_cast %717 : vector<2xf32> to vector<2x1xf32>
    %719 = vector.broadcast %718 : vector<2x1xf32> to vector<2x32xf32>
    %720 = arith.cmpf oge, %716, %719 : vector<2x32xf32>
    %c32_i32_182 = arith.constant 32 : i32
    %721 = vector.broadcast %c32_i32_182 : i32 to vector<2x32xi32>
    %722 = arith.select %720, %382, %721 : vector<2x32xi1>, vector<2x32xi32>
    %cst_183 = arith.constant dense<2147483647> : vector<2xi32>
    %723 = vector.multi_reduction <minsi>, %722, %cst_183 [1] : vector<2x32xi32> to vector<2xi32>
    %724 = vector.shape_cast %723 : vector<2xi32> to vector<2x1xi32>
    %725 = vector.broadcast %718 : vector<2x1xf32> to vector<2x32xf32>
    %726 = arith.subf %716, %725 : vector<2x32xf32>
    %727 = math.exp %726 : vector<2x32xf32>
    %cst_184 = arith.constant dense<0.000000e+00> : vector<2xf32>
    %728 = vector.multi_reduction <add>, %727, %cst_184 [1] : vector<2x32xf32> to vector<2xf32>
    %729 = vector.shape_cast %728 : vector<2xf32> to vector<2x1xf32>
    %730 = math.log %729 : vector<2x1xf32>
    %731 = arith.addf %730, %718 : vector<2x1xf32>
    %732 = vector.broadcast %731 : vector<2x1xf32> to vector<2x32xf32>
    %733 = arith.subf %716, %732 : vector<2x32xf32>
    %734 = vector.broadcast %724 : vector<2x1xi32> to vector<2x32xi32>
    %735 = arith.cmpi eq, %382, %734 : vector<2x32xi32>
    %736 = arith.extui %735 : vector<2x32xi1> to vector<2x32xi32>
    %737 = arith.sitofp %736 : vector<2x32xi32> to vector<2x32xf32>
    %738 = arith.truncf %692 : vector<2x32xf32> to vector<2x32xbf16>
    %739 = tpu.concatenate %737, %692 in 1 : vector<2x32xf32>, vector<2x32xf32> -> vector<2x64xf32>
    %740 = arith.truncf %739 : vector<2x64xf32> to vector<2x64xbf16>
    %cst_185 = arith.constant dense<0.000000e+00> : vector<2x64xf32>
    %741 = tpu.matmul %740, %3, %cst_185 {dimension_numbers = #tpu.dot_dimension_numbers<[1], [0], [0], [1], [0, 0, 1, 1], [], []>} : vector<2x64xbf16>, vector<64x64xbf16>, vector<2x64xf32> -> vector<2x64xf32>
    %742 = arith.addf %741, %6 : vector<2x64xf32>
    %743 = arith.negf %742 : vector<2x64xf32>
    %744 = math.exp %743 : vector<2x64xf32>
    %cst_186 = arith.constant 1.000000e+00 : f32
    %745 = vector.broadcast %cst_186 : f32 to vector<2x64xf32>
    %746 = arith.addf %745, %744 : vector<2x64xf32>
    %747 = arith.divf %745, %746 : vector<2x64xf32>
    %748 = vector.extract_strided_slice %747 {offsets = [0, 0], sizes = [2, 32], strides = [1, 1]} : vector<2x64xf32> to vector<2x32xf32>
    %749 = vector.extract_strided_slice %747 {offsets = [0, 32], sizes = [2, 32], strides = [1, 1]} : vector<2x64xf32> to vector<2x32xf32>
    %750 = arith.truncf %737 : vector<2x32xf32> to vector<2x32xbf16>
    %cst_187 = arith.constant dense<0.000000e+00> : vector<2x32xf32>
    %751 = tpu.matmul %750, %4, %cst_187 {dimension_numbers = #tpu.dot_dimension_numbers<[1], [0], [0], [1], [0, 0, 1, 1], [], []>} : vector<2x32xbf16>, vector<32x32xbf16>, vector<2x32xf32> -> vector<2x32xf32>
    %752 = arith.addf %751, %7 : vector<2x32xf32>
    %cst_188 = arith.constant dense<0.000000e+00> : vector<2x32xf32>
    %753 = tpu.matmul %738, %5, %cst_188 {dimension_numbers = #tpu.dot_dimension_numbers<[1], [0], [0], [1], [0, 0, 1, 1], [], []>} : vector<2x32xbf16>, vector<32x32xbf16>, vector<2x32xf32> -> vector<2x32xf32>
    %754 = arith.addf %753, %8 : vector<2x32xf32>
    %755 = arith.mulf %748, %754 : vector<2x32xf32>
    %756 = arith.addf %752, %755 : vector<2x32xf32>
    %757 = math.tanh %756 : vector<2x32xf32>
    %cst_189 = arith.constant 1.000000e+00 : f32
    %758 = vector.broadcast %cst_189 : f32 to vector<2x32xf32>
    %759 = arith.subf %758, %749 : vector<2x32xf32>
    %760 = arith.mulf %759, %757 : vector<2x32xf32>
    %761 = arith.mulf %749, %692 : vector<2x32xf32>
    %762 = arith.addf %760, %761 : vector<2x32xf32>
    %763 = arith.truncf %762 : vector<2x32xf32> to vector<2x32xbf16>
    %cst_190 = arith.constant dense<0.000000e+00> : vector<2x32xf32>
    %764 = tpu.matmul %763, %381, %cst_190 {dimension_numbers = #tpu.dot_dimension_numbers<[1], [0], [0], [1], [0, 0, 1, 1], [], []>} : vector<2x32xbf16>, vector<32x32xbf16>, vector<2x32xf32> -> vector<2x32xf32>
    %765 = arith.addf %764, %14 : vector<2x32xf32>
    %cst_191 = arith.constant dense<0xFF800000> : vector<2xf32>
    %766 = vector.multi_reduction <maximumf>, %765, %cst_191 [1] : vector<2x32xf32> to vector<2xf32>
    %767 = vector.shape_cast %766 : vector<2xf32> to vector<2x1xf32>
    %768 = vector.broadcast %767 : vector<2x1xf32> to vector<2x32xf32>
    %769 = arith.subf %765, %768 : vector<2x32xf32>
    %770 = math.exp %769 : vector<2x32xf32>
    %cst_192 = arith.constant dense<0.000000e+00> : vector<2xf32>
    %771 = vector.multi_reduction <add>, %770, %cst_192 [1] : vector<2x32xf32> to vector<2xf32>
    %772 = vector.shape_cast %771 : vector<2xf32> to vector<2x1xf32>
    %773 = tpu.reciprocal %772 {approx = true} : vector<2x1xf32> -> vector<2x1xf32>
    %774 = vector.broadcast %773 : vector<2x1xf32> to vector<2x32xf32>
    %775 = arith.mulf %770, %774 : vector<2x32xf32>
    %776 = arith.truncf %775 : vector<2x32xf32> to vector<2x32xbf16>
    %cst_193 = arith.constant dense<0.000000e+00> : vector<2x32xf32>
    %777 = tpu.matmul %776, %379, %cst_193 {dimension_numbers = #tpu.dot_dimension_numbers<[1], [0], [0], [1], [0, 0, 1, 1], [], []>} : vector<2x32xbf16>, vector<32x32xbf16>, vector<2x32xf32> -> vector<2x32xf32>
    %778 = arith.truncf %777 : vector<2x32xf32> to vector<2x32xbf16>
    %cst_194 = arith.constant dense<0.000000e+00> : vector<2x32xf32>
    %779 = tpu.matmul %778, %9, %cst_194 {dimension_numbers = #tpu.dot_dimension_numbers<[1], [0], [0], [1], [0, 0, 1, 1], [], []>} : vector<2x32xbf16>, vector<32x32xbf16>, vector<2x32xf32> -> vector<2x32xf32>
    %cst_195 = arith.constant dense<0.000000e+00> : vector<2x32xf32>
    %780 = tpu.matmul %763, %10, %cst_195 {dimension_numbers = #tpu.dot_dimension_numbers<[1], [0], [0], [1], [0, 0, 1, 1], [], []>} : vector<2x32xbf16>, vector<32x32xbf16>, vector<2x32xf32> -> vector<2x32xf32>
    %781 = arith.addf %779, %780 : vector<2x32xf32>
    %782 = arith.addf %781, %11 : vector<2x32xf32>
    %783 = math.tanh %782 : vector<2x32xf32>
    %784 = arith.truncf %783 : vector<2x32xf32> to vector<2x32xbf16>
    %cst_196 = arith.constant dense<0.000000e+00> : vector<2x32xf32>
    %785 = tpu.matmul %784, %12, %cst_196 {dimension_numbers = #tpu.dot_dimension_numbers<[1], [0], [0], [1], [0, 0, 1, 1], [], []>} : vector<2x32xbf16>, vector<32x32xbf16>, vector<2x32xf32> -> vector<2x32xf32>
    %786 = arith.addf %785, %13 : vector<2x32xf32>
    %cst_197 = arith.constant dense<0xFF800000> : vector<2xf32>
    %787 = vector.multi_reduction <maximumf>, %786, %cst_197 [1] : vector<2x32xf32> to vector<2xf32>
    %788 = vector.shape_cast %787 : vector<2xf32> to vector<2x1xf32>
    %789 = vector.broadcast %788 : vector<2x1xf32> to vector<2x32xf32>
    %790 = arith.cmpf oge, %786, %789 : vector<2x32xf32>
    %c32_i32_198 = arith.constant 32 : i32
    %791 = vector.broadcast %c32_i32_198 : i32 to vector<2x32xi32>
    %792 = arith.select %790, %382, %791 : vector<2x32xi1>, vector<2x32xi32>
    %cst_199 = arith.constant dense<2147483647> : vector<2xi32>
    %793 = vector.multi_reduction <minsi>, %792, %cst_199 [1] : vector<2x32xi32> to vector<2xi32>
    %794 = vector.shape_cast %793 : vector<2xi32> to vector<2x1xi32>
    %795 = vector.broadcast %788 : vector<2x1xf32> to vector<2x32xf32>
    %796 = arith.subf %786, %795 : vector<2x32xf32>
    %797 = math.exp %796 : vector<2x32xf32>
    %cst_200 = arith.constant dense<0.000000e+00> : vector<2xf32>
    %798 = vector.multi_reduction <add>, %797, %cst_200 [1] : vector<2x32xf32> to vector<2xf32>
    %799 = vector.shape_cast %798 : vector<2xf32> to vector<2x1xf32>
    %800 = math.log %799 : vector<2x1xf32>
    %801 = arith.addf %800, %788 : vector<2x1xf32>
    %802 = vector.broadcast %801 : vector<2x1xf32> to vector<2x32xf32>
    %803 = arith.subf %786, %802 : vector<2x32xf32>
    %804 = vector.broadcast %794 : vector<2x1xi32> to vector<2x32xi32>
    %805 = arith.cmpi eq, %382, %804 : vector<2x32xi32>
    %806 = arith.extui %805 : vector<2x32xi1> to vector<2x32xi32>
    %807 = arith.sitofp %806 : vector<2x32xi32> to vector<2x32xf32>
    %808 = arith.truncf %762 : vector<2x32xf32> to vector<2x32xbf16>
    %809 = tpu.concatenate %807, %762 in 1 : vector<2x32xf32>, vector<2x32xf32> -> vector<2x64xf32>
    %810 = arith.truncf %809 : vector<2x64xf32> to vector<2x64xbf16>
    %cst_201 = arith.constant dense<0.000000e+00> : vector<2x64xf32>
    %811 = tpu.matmul %810, %3, %cst_201 {dimension_numbers = #tpu.dot_dimension_numbers<[1], [0], [0], [1], [0, 0, 1, 1], [], []>} : vector<2x64xbf16>, vector<64x64xbf16>, vector<2x64xf32> -> vector<2x64xf32>
    %812 = arith.addf %811, %6 : vector<2x64xf32>
    %813 = arith.negf %812 : vector<2x64xf32>
    %814 = math.exp %813 : vector<2x64xf32>
    %cst_202 = arith.constant 1.000000e+00 : f32
    %815 = vector.broadcast %cst_202 : f32 to vector<2x64xf32>
    %816 = arith.addf %815, %814 : vector<2x64xf32>
    %817 = arith.divf %815, %816 : vector<2x64xf32>
    %818 = vector.extract_strided_slice %817 {offsets = [0, 0], sizes = [2, 32], strides = [1, 1]} : vector<2x64xf32> to vector<2x32xf32>
    %819 = vector.extract_strided_slice %817 {offsets = [0, 32], sizes = [2, 32], strides = [1, 1]} : vector<2x64xf32> to vector<2x32xf32>
    %820 = arith.truncf %807 : vector<2x32xf32> to vector<2x32xbf16>
    %cst_203 = arith.constant dense<0.000000e+00> : vector<2x32xf32>
    %821 = tpu.matmul %820, %4, %cst_203 {dimension_numbers = #tpu.dot_dimension_numbers<[1], [0], [0], [1], [0, 0, 1, 1], [], []>} : vector<2x32xbf16>, vector<32x32xbf16>, vector<2x32xf32> -> vector<2x32xf32>
    %822 = arith.addf %821, %7 : vector<2x32xf32>
    %cst_204 = arith.constant dense<0.000000e+00> : vector<2x32xf32>
    %823 = tpu.matmul %808, %5, %cst_204 {dimension_numbers = #tpu.dot_dimension_numbers<[1], [0], [0], [1], [0, 0, 1, 1], [], []>} : vector<2x32xbf16>, vector<32x32xbf16>, vector<2x32xf32> -> vector<2x32xf32>
    %824 = arith.addf %823, %8 : vector<2x32xf32>
    %825 = arith.mulf %818, %824 : vector<2x32xf32>
    %826 = arith.addf %822, %825 : vector<2x32xf32>
    %827 = math.tanh %826 : vector<2x32xf32>
    %cst_205 = arith.constant 1.000000e+00 : f32
    %828 = vector.broadcast %cst_205 : f32 to vector<2x32xf32>
    %829 = arith.subf %828, %819 : vector<2x32xf32>
    %830 = arith.mulf %829, %827 : vector<2x32xf32>
    %831 = arith.mulf %819, %762 : vector<2x32xf32>
    %832 = arith.addf %830, %831 : vector<2x32xf32>
    %833 = arith.truncf %832 : vector<2x32xf32> to vector<2x32xbf16>
    %cst_206 = arith.constant dense<0.000000e+00> : vector<2x32xf32>
    %834 = tpu.matmul %833, %381, %cst_206 {dimension_numbers = #tpu.dot_dimension_numbers<[1], [0], [0], [1], [0, 0, 1, 1], [], []>} : vector<2x32xbf16>, vector<32x32xbf16>, vector<2x32xf32> -> vector<2x32xf32>
    %835 = arith.addf %834, %14 : vector<2x32xf32>
    %cst_207 = arith.constant dense<0xFF800000> : vector<2xf32>
    %836 = vector.multi_reduction <maximumf>, %835, %cst_207 [1] : vector<2x32xf32> to vector<2xf32>
    %837 = vector.shape_cast %836 : vector<2xf32> to vector<2x1xf32>
    %838 = vector.broadcast %837 : vector<2x1xf32> to vector<2x32xf32>
    %839 = arith.subf %835, %838 : vector<2x32xf32>
    %840 = math.exp %839 : vector<2x32xf32>
    %cst_208 = arith.constant dense<0.000000e+00> : vector<2xf32>
    %841 = vector.multi_reduction <add>, %840, %cst_208 [1] : vector<2x32xf32> to vector<2xf32>
    %842 = vector.shape_cast %841 : vector<2xf32> to vector<2x1xf32>
    %843 = tpu.reciprocal %842 {approx = true} : vector<2x1xf32> -> vector<2x1xf32>
    %844 = vector.broadcast %843 : vector<2x1xf32> to vector<2x32xf32>
    %845 = arith.mulf %840, %844 : vector<2x32xf32>
    %846 = arith.truncf %845 : vector<2x32xf32> to vector<2x32xbf16>
    %cst_209 = arith.constant dense<0.000000e+00> : vector<2x32xf32>
    %847 = tpu.matmul %846, %379, %cst_209 {dimension_numbers = #tpu.dot_dimension_numbers<[1], [0], [0], [1], [0, 0, 1, 1], [], []>} : vector<2x32xbf16>, vector<32x32xbf16>, vector<2x32xf32> -> vector<2x32xf32>
    %848 = arith.truncf %847 : vector<2x32xf32> to vector<2x32xbf16>
    %cst_210 = arith.constant dense<0.000000e+00> : vector<2x32xf32>
    %849 = tpu.matmul %848, %9, %cst_210 {dimension_numbers = #tpu.dot_dimension_numbers<[1], [0], [0], [1], [0, 0, 1, 1], [], []>} : vector<2x32xbf16>, vector<32x32xbf16>, vector<2x32xf32> -> vector<2x32xf32>
    %cst_211 = arith.constant dense<0.000000e+00> : vector<2x32xf32>
    %850 = tpu.matmul %833, %10, %cst_211 {dimension_numbers = #tpu.dot_dimension_numbers<[1], [0], [0], [1], [0, 0, 1, 1], [], []>} : vector<2x32xbf16>, vector<32x32xbf16>, vector<2x32xf32> -> vector<2x32xf32>
    %851 = arith.addf %849, %850 : vector<2x32xf32>
    %852 = arith.addf %851, %11 : vector<2x32xf32>
    %853 = math.tanh %852 : vector<2x32xf32>
    %854 = arith.truncf %853 : vector<2x32xf32> to vector<2x32xbf16>
    %cst_212 = arith.constant dense<0.000000e+00> : vector<2x32xf32>
    %855 = tpu.matmul %854, %12, %cst_212 {dimension_numbers = #tpu.dot_dimension_numbers<[1], [0], [0], [1], [0, 0, 1, 1], [], []>} : vector<2x32xbf16>, vector<32x32xbf16>, vector<2x32xf32> -> vector<2x32xf32>
    %856 = arith.addf %855, %13 : vector<2x32xf32>
    %cst_213 = arith.constant dense<0xFF800000> : vector<2xf32>
    %857 = vector.multi_reduction <maximumf>, %856, %cst_213 [1] : vector<2x32xf32> to vector<2xf32>
    %858 = vector.shape_cast %857 : vector<2xf32> to vector<2x1xf32>
    %859 = vector.broadcast %858 : vector<2x1xf32> to vector<2x32xf32>
    %860 = arith.cmpf oge, %856, %859 : vector<2x32xf32>
    %c32_i32_214 = arith.constant 32 : i32
    %861 = vector.broadcast %c32_i32_214 : i32 to vector<2x32xi32>
    %862 = arith.select %860, %382, %861 : vector<2x32xi1>, vector<2x32xi32>
    %cst_215 = arith.constant dense<2147483647> : vector<2xi32>
    %863 = vector.multi_reduction <minsi>, %862, %cst_215 [1] : vector<2x32xi32> to vector<2xi32>
    %864 = vector.shape_cast %863 : vector<2xi32> to vector<2x1xi32>
    %865 = vector.broadcast %858 : vector<2x1xf32> to vector<2x32xf32>
    %866 = arith.subf %856, %865 : vector<2x32xf32>
    %867 = math.exp %866 : vector<2x32xf32>
    %cst_216 = arith.constant dense<0.000000e+00> : vector<2xf32>
    %868 = vector.multi_reduction <add>, %867, %cst_216 [1] : vector<2x32xf32> to vector<2xf32>
    %869 = vector.shape_cast %868 : vector<2xf32> to vector<2x1xf32>
    %870 = math.log %869 : vector<2x1xf32>
    %871 = arith.addf %870, %858 : vector<2x1xf32>
    %872 = vector.broadcast %871 : vector<2x1xf32> to vector<2x32xf32>
    %873 = arith.subf %856, %872 : vector<2x32xf32>
    %874 = vector.broadcast %864 : vector<2x1xi32> to vector<2x32xi32>
    %875 = arith.cmpi eq, %382, %874 : vector<2x32xi32>
    %876 = arith.extui %875 : vector<2x32xi1> to vector<2x32xi32>
    %877 = arith.sitofp %876 : vector<2x32xi32> to vector<2x32xf32>
    %878 = arith.truncf %832 : vector<2x32xf32> to vector<2x32xbf16>
    %879 = tpu.concatenate %877, %832 in 1 : vector<2x32xf32>, vector<2x32xf32> -> vector<2x64xf32>
    %880 = arith.truncf %879 : vector<2x64xf32> to vector<2x64xbf16>
    %cst_217 = arith.constant dense<0.000000e+00> : vector<2x64xf32>
    %881 = tpu.matmul %880, %3, %cst_217 {dimension_numbers = #tpu.dot_dimension_numbers<[1], [0], [0], [1], [0, 0, 1, 1], [], []>} : vector<2x64xbf16>, vector<64x64xbf16>, vector<2x64xf32> -> vector<2x64xf32>
    %882 = arith.addf %881, %6 : vector<2x64xf32>
    %883 = arith.negf %882 : vector<2x64xf32>
    %884 = math.exp %883 : vector<2x64xf32>
    %cst_218 = arith.constant 1.000000e+00 : f32
    %885 = vector.broadcast %cst_218 : f32 to vector<2x64xf32>
    %886 = arith.addf %885, %884 : vector<2x64xf32>
    %887 = arith.divf %885, %886 : vector<2x64xf32>
    %888 = vector.extract_strided_slice %887 {offsets = [0, 0], sizes = [2, 32], strides = [1, 1]} : vector<2x64xf32> to vector<2x32xf32>
    %889 = vector.extract_strided_slice %887 {offsets = [0, 32], sizes = [2, 32], strides = [1, 1]} : vector<2x64xf32> to vector<2x32xf32>
    %890 = arith.truncf %877 : vector<2x32xf32> to vector<2x32xbf16>
    %cst_219 = arith.constant dense<0.000000e+00> : vector<2x32xf32>
    %891 = tpu.matmul %890, %4, %cst_219 {dimension_numbers = #tpu.dot_dimension_numbers<[1], [0], [0], [1], [0, 0, 1, 1], [], []>} : vector<2x32xbf16>, vector<32x32xbf16>, vector<2x32xf32> -> vector<2x32xf32>
    %892 = arith.addf %891, %7 : vector<2x32xf32>
    %cst_220 = arith.constant dense<0.000000e+00> : vector<2x32xf32>
    %893 = tpu.matmul %878, %5, %cst_220 {dimension_numbers = #tpu.dot_dimension_numbers<[1], [0], [0], [1], [0, 0, 1, 1], [], []>} : vector<2x32xbf16>, vector<32x32xbf16>, vector<2x32xf32> -> vector<2x32xf32>
    %894 = arith.addf %893, %8 : vector<2x32xf32>
    %895 = arith.mulf %888, %894 : vector<2x32xf32>
    %896 = arith.addf %892, %895 : vector<2x32xf32>
    %897 = math.tanh %896 : vector<2x32xf32>
    %cst_221 = arith.constant 1.000000e+00 : f32
    %898 = vector.broadcast %cst_221 : f32 to vector<2x32xf32>
    %899 = arith.subf %898, %889 : vector<2x32xf32>
    %900 = arith.mulf %899, %897 : vector<2x32xf32>
    %901 = arith.mulf %889, %832 : vector<2x32xf32>
    %902 = arith.addf %900, %901 : vector<2x32xf32>
    %903 = arith.truncf %902 : vector<2x32xf32> to vector<2x32xbf16>
    %cst_222 = arith.constant dense<0.000000e+00> : vector<2x32xf32>
    %904 = tpu.matmul %903, %381, %cst_222 {dimension_numbers = #tpu.dot_dimension_numbers<[1], [0], [0], [1], [0, 0, 1, 1], [], []>} : vector<2x32xbf16>, vector<32x32xbf16>, vector<2x32xf32> -> vector<2x32xf32>
    %905 = arith.addf %904, %14 : vector<2x32xf32>
    %cst_223 = arith.constant dense<0xFF800000> : vector<2xf32>
    %906 = vector.multi_reduction <maximumf>, %905, %cst_223 [1] : vector<2x32xf32> to vector<2xf32>
    %907 = vector.shape_cast %906 : vector<2xf32> to vector<2x1xf32>
    %908 = vector.broadcast %907 : vector<2x1xf32> to vector<2x32xf32>
    %909 = arith.subf %905, %908 : vector<2x32xf32>
    %910 = math.exp %909 : vector<2x32xf32>
    %cst_224 = arith.constant dense<0.000000e+00> : vector<2xf32>
    %911 = vector.multi_reduction <add>, %910, %cst_224 [1] : vector<2x32xf32> to vector<2xf32>
    %912 = vector.shape_cast %911 : vector<2xf32> to vector<2x1xf32>
    %913 = tpu.reciprocal %912 {approx = true} : vector<2x1xf32> -> vector<2x1xf32>
    %914 = vector.broadcast %913 : vector<2x1xf32> to vector<2x32xf32>
    %915 = arith.mulf %910, %914 : vector<2x32xf32>
    %916 = arith.truncf %915 : vector<2x32xf32> to vector<2x32xbf16>
    %cst_225 = arith.constant dense<0.000000e+00> : vector<2x32xf32>
    %917 = tpu.matmul %916, %379, %cst_225 {dimension_numbers = #tpu.dot_dimension_numbers<[1], [0], [0], [1], [0, 0, 1, 1], [], []>} : vector<2x32xbf16>, vector<32x32xbf16>, vector<2x32xf32> -> vector<2x32xf32>
    %918 = arith.truncf %917 : vector<2x32xf32> to vector<2x32xbf16>
    %cst_226 = arith.constant dense<0.000000e+00> : vector<2x32xf32>
    %919 = tpu.matmul %918, %9, %cst_226 {dimension_numbers = #tpu.dot_dimension_numbers<[1], [0], [0], [1], [0, 0, 1, 1], [], []>} : vector<2x32xbf16>, vector<32x32xbf16>, vector<2x32xf32> -> vector<2x32xf32>
    %cst_227 = arith.constant dense<0.000000e+00> : vector<2x32xf32>
    %920 = tpu.matmul %903, %10, %cst_227 {dimension_numbers = #tpu.dot_dimension_numbers<[1], [0], [0], [1], [0, 0, 1, 1], [], []>} : vector<2x32xbf16>, vector<32x32xbf16>, vector<2x32xf32> -> vector<2x32xf32>
    %921 = arith.addf %919, %920 : vector<2x32xf32>
    %922 = arith.addf %921, %11 : vector<2x32xf32>
    %923 = math.tanh %922 : vector<2x32xf32>
    %924 = arith.truncf %923 : vector<2x32xf32> to vector<2x32xbf16>
    %cst_228 = arith.constant dense<0.000000e+00> : vector<2x32xf32>
    %925 = tpu.matmul %924, %12, %cst_228 {dimension_numbers = #tpu.dot_dimension_numbers<[1], [0], [0], [1], [0, 0, 1, 1], [], []>} : vector<2x32xbf16>, vector<32x32xbf16>, vector<2x32xf32> -> vector<2x32xf32>
    %926 = arith.addf %925, %13 : vector<2x32xf32>
    %cst_229 = arith.constant dense<0xFF800000> : vector<2xf32>
    %927 = vector.multi_reduction <maximumf>, %926, %cst_229 [1] : vector<2x32xf32> to vector<2xf32>
    %928 = vector.shape_cast %927 : vector<2xf32> to vector<2x1xf32>
    %929 = vector.broadcast %928 : vector<2x1xf32> to vector<2x32xf32>
    %930 = arith.cmpf oge, %926, %929 : vector<2x32xf32>
    %c32_i32_230 = arith.constant 32 : i32
    %931 = vector.broadcast %c32_i32_230 : i32 to vector<2x32xi32>
    %932 = arith.select %930, %382, %931 : vector<2x32xi1>, vector<2x32xi32>
    %cst_231 = arith.constant dense<2147483647> : vector<2xi32>
    %933 = vector.multi_reduction <minsi>, %932, %cst_231 [1] : vector<2x32xi32> to vector<2xi32>
    %934 = vector.shape_cast %933 : vector<2xi32> to vector<2x1xi32>
    %935 = vector.broadcast %928 : vector<2x1xf32> to vector<2x32xf32>
    %936 = arith.subf %926, %935 : vector<2x32xf32>
    %937 = math.exp %936 : vector<2x32xf32>
    %cst_232 = arith.constant dense<0.000000e+00> : vector<2xf32>
    %938 = vector.multi_reduction <add>, %937, %cst_232 [1] : vector<2x32xf32> to vector<2xf32>
    %939 = vector.shape_cast %938 : vector<2xf32> to vector<2x1xf32>
    %940 = math.log %939 : vector<2x1xf32>
    %941 = arith.addf %940, %928 : vector<2x1xf32>
    %942 = vector.broadcast %941 : vector<2x1xf32> to vector<2x32xf32>
    %943 = arith.subf %926, %942 : vector<2x32xf32>
    %944 = vector.shape_cast %453 : vector<2x32xf32> to vector<1x2x32xf32>
    %945 = vector.shape_cast %523 : vector<2x32xf32> to vector<1x2x32xf32>
    %946 = vector.shape_cast %593 : vector<2x32xf32> to vector<1x2x32xf32>
    %947 = vector.shape_cast %663 : vector<2x32xf32> to vector<1x2x32xf32>
    %948 = vector.shape_cast %733 : vector<2x32xf32> to vector<1x2x32xf32>
    %949 = vector.shape_cast %803 : vector<2x32xf32> to vector<1x2x32xf32>
    %950 = vector.shape_cast %873 : vector<2x32xf32> to vector<1x2x32xf32>
    %951 = vector.shape_cast %943 : vector<2x32xf32> to vector<1x2x32xf32>
    %952 = tpu.concatenate %944, %945, %946, %947, %948, %949, %950, %951 in 0 : vector<1x2x32xf32>, vector<1x2x32xf32>, vector<1x2x32xf32>, vector<1x2x32xf32>, vector<1x2x32xf32>, vector<1x2x32xf32>, vector<1x2x32xf32>, vector<1x2x32xf32> -> vector<8x2x32xf32>
    %c0_233 = arith.constant 0 : index
    %c0_234 = arith.constant 0 : index
    %c0_235 = arith.constant 0 : index
    %953 = vector.load %arg20[%c0_233, %c0_234, %c0_235] : memref<8x2x32xf32, #tpu.memory_space<vmem>>, vector<8x2x32xf32>
    tpu.vector_store %arg20[%c0_233, %c0_234, %c0_235], %952 {strides = array<i32>} : memref<8x2x32xf32, #tpu.memory_space<vmem>>, vector<8x2x32xf32>,
    %954 = vector.shape_cast %444 : vector<2x1xi32> to vector<1x2x1xi32>
    %955 = vector.shape_cast %514 : vector<2x1xi32> to vector<1x2x1xi32>
    %956 = vector.shape_cast %584 : vector<2x1xi32> to vector<1x2x1xi32>
    %957 = vector.shape_cast %654 : vector<2x1xi32> to vector<1x2x1xi32>
    %958 = vector.shape_cast %724 : vector<2x1xi32> to vector<1x2x1xi32>
    %959 = vector.shape_cast %794 : vector<2x1xi32> to vector<1x2x1xi32>
    %960 = vector.shape_cast %864 : vector<2x1xi32> to vector<1x2x1xi32>
    %961 = vector.shape_cast %934 : vector<2x1xi32> to vector<1x2x1xi32>
    %962 = tpu.concatenate %954, %955, %956, %957, %958, %959, %960, %961 in 0 : vector<1x2x1xi32>, vector<1x2x1xi32>, vector<1x2x1xi32>, vector<1x2x1xi32>, vector<1x2x1xi32>, vector<1x2x1xi32>, vector<1x2x1xi32>, vector<1x2x1xi32> -> vector<8x2x1xi32>
    %c0_236 = arith.constant 0 : index
    %c0_237 = arith.constant 0 : index
    %c0_238 = arith.constant 0 : index
    %963 = vector.load %arg22[%c0_236, %c0_237, %c0_238] : memref<8x2x1xi32, #tpu.memory_space<vmem>>, vector<8x2x1xi32>
    tpu.vector_store %arg22[%c0_236, %c0_237, %c0_238], %962 {strides = array<i32>} : memref<8x2x1xi32, #tpu.memory_space<vmem>>, vector<8x2x1xi32>,
    %c0_239 = arith.constant 0 : index
    %c0_240 = arith.constant 0 : index
    %964 = vector.load %arg21[%c0_239, %c0_240] : memref<2x32xf32, #tpu.memory_space<vmem>>, vector<2x32xf32>
    tpu.vector_store %arg21[%c0_239, %c0_240], %902 {strides = array<i32>} : memref<2x32xf32, #tpu.memory_space<vmem>>, vector<2x32xf32>,
    return
  }
}

</mosaic_0001>

<llo_original>
// kernel: seq2seq_forward.1
$region0: #{seq2seq_forward.1}
  #allocation0 [shape = 'u32[]', space=smem, size = 0x4, offset = 0x4, fixed_abs, tag = 'smem constant byte address 0x4 - core index']
  #allocation1 [shape = 'u32[72,128]{1,0:T(1,128)}', space=vmem, size = 0x9000, scoped, tag = 'internal scratch']
  %s0 = inlined_call_operand.vmem [shape: bf16[32,32], index: 0, kind: input, shape index: {}]
  %s1 = inlined_call_operand.vmem [shape: bf16[32,64], index: 1, kind: input, shape index: {}]
  %s2 = inlined_call_operand.vmem [shape: bf16[32,32], index: 2, kind: input, shape index: {}]
  %s3 = inlined_call_operand.vmem [shape: bf16[32,64], index: 3, kind: input, shape index: {}]
  %s4 = inlined_call_operand.vmem [shape: bf16[32,32], index: 4, kind: input, shape index: {}]
  %s5 = inlined_call_operand.vmem [shape: f32[32,64], index: 5, kind: input, shape index: {}]
  %s6 = inlined_call_operand.vmem [shape: f32[32,32], index: 6, kind: input, shape index: {}]
  %s7 = inlined_call_operand.vmem [shape: f32[2,32], index: 7, kind: input, shape index: {}]
  %s8 = inlined_call_operand.vmem [shape: bf16[64,64], index: 8, kind: input, shape index: {}]
  %s9 = inlined_call_operand.vmem [shape: bf16[32,32], index: 9, kind: input, shape index: {}]
  %s10 = inlined_call_operand.vmem [shape: bf16[32,32], index: 10, kind: input, shape index: {}]
  %s11 = inlined_call_operand.vmem [shape: f32[2,64], index: 11, kind: input, shape index: {}]
  %s12 = inlined_call_operand.vmem [shape: f32[2,32], index: 12, kind: input, shape index: {}]
  %s13 = inlined_call_operand.vmem [shape: f32[2,32], index: 13, kind: input, shape index: {}]
  %s14 = inlined_call_operand.vmem [shape: bf16[32,32], index: 14, kind: input, shape index: {}]
  %s15 = inlined_call_operand.vmem [shape: bf16[32,32], index: 15, kind: input, shape index: {}]
  %s16 = inlined_call_operand.vmem [shape: f32[2,32], index: 16, kind: input, shape index: {}]
  %s17 = inlined_call_operand.vmem [shape: bf16[32,32], index: 17, kind: input, shape index: {}]
  %s18 = inlined_call_operand.vmem [shape: f32[2,32], index: 18, kind: input, shape index: {}]
  %s19 = inlined_call_operand.vmem [shape: f32[2,32], index: 19, kind: input, shape index: {}]
  %s20 = inlined_call_operand.hbm [shape: f32[8,2,32], index: 20, kind: output, shape index: {0}]
  %s21 = inlined_call_operand.hbm [shape: f32[2,32], index: 21, kind: output, shape index: {1}]
  %s22 = inlined_call_operand.vmem [shape: s32[8,2,1], index: 22, kind: output, shape index: {2}]
  %23 = xla_tuple %s20, %s21, %s22
  %s24 = sld [smem:[#allocation0]]
  $region106: #{seq2seq_forward.1} parent=0
    _
  %s26 = ssub.s32 1, %s24
  %s27 = scalar_select 0, %s26, %s24
  $region1: #{seq2seq_forward.1} parent=0
    #allocation2 [shape = 'u8[8192]{0}', space=vmem, size = 0x2000, scoped, tag = 'output window, operand 0, single buffered']
    #allocation3 [shape = 's32[1]{0}', space=sflag, size = 0x4, scoped, tag = 'scoped memory for seq2seq_forward.1']
    #allocation4 [shape = 'u8[1024]{0}', space=vmem, size = 0x400, scoped, tag = 'output window, operand 1, single buffered']
    #allocation5 [shape = 's32[1]{0}', space=sflag, size = 0x4, scoped, tag = 'scoped memory for seq2seq_forward.1']
    %28 = vsyncpa [#allocation3], 0
    %29 = vsyncpa [#allocation5], 0
    // Predicated region
    $region2: #{seq2seq_forward.1} parent=1 // pred_check
      _
    $region3: #{seq2seq_forward.1} parent=1 // pred_check_branch
      %31 = sbr.rel (0) target = $region5
    $region4: #{seq2seq_forward.1} parent=1 // pred_region
      _
    $region5: #{seq2seq_forward.1} parent=1 // pred_fallthru
      _
    // Predicated region
    $region6: #{seq2seq_forward.1} parent=1 // pred_check
      _
    $region7: #{seq2seq_forward.1} parent=1 // pred_check_branch
      %33 = sbr.rel (0) target = $region9
    $region8: #{seq2seq_forward.1} parent=1 // pred_region
      _
    $region9: #{seq2seq_forward.1} parent=1 // pred_fallthru
      _
    // Predicated region
    $region10: #{seq2seq_forward.1} parent=1 // pred_check
      _
    $region11: #{seq2seq_forward.1} parent=1 // pred_check_branch
      %35 = sbr.rel (0) target = $region13
    $region12: #{seq2seq_forward.1} parent=1 // pred_region
      _
    $region13: #{seq2seq_forward.1} parent=1 // pred_fallthru
      _
    // Predicated region
    $region14: #{seq2seq_forward.1} parent=1 // pred_check
      _
    $region15: #{seq2seq_forward.1} parent=1 // pred_check_branch
      %37 = sbr.rel (0) target = $region17
    $region16: #{seq2seq_forward.1} parent=1 // pred_region
      _
    $region17: #{seq2seq_forward.1} parent=1 // pred_fallthru
      _
    // Predicated region
    $region18: #{seq2seq_forward.1} parent=1 // pred_check
      _
    $region19: #{seq2seq_forward.1} parent=1 // pred_check_branch
      %39 = sbr.rel (0) target = $region21
    $region20: #{seq2seq_forward.1} parent=1 // pred_region
      _
    $region21: #{seq2seq_forward.1} parent=1 // pred_fallthru
      _
    // Predicated region
    $region22: #{seq2seq_forward.1} parent=1 // pred_check
      _
    $region23: #{seq2seq_forward.1} parent=1 // pred_check_branch
      %41 = sbr.rel (0) target = $region25
    $region24: #{seq2seq_forward.1} parent=1 // pred_region
      _
    $region25: #{seq2seq_forward.1} parent=1 // pred_fallthru
      _
    // Predicated region
    $region26: #{seq2seq_forward.1} parent=1 // pred_check
      _
    $region27: #{seq2seq_forward.1} parent=1 // pred_check_branch
      %43 = sbr.rel (0) target = $region29
    $region28: #{seq2seq_forward.1} parent=1 // pred_region
      _
    $region29: #{seq2seq_forward.1} parent=1 // pred_fallthru
      _
    // Predicated region
    $region30: #{seq2seq_forward.1} parent=1 // pred_check
      _
    $region31: #{seq2seq_forward.1} parent=1 // pred_check_branch
      %45 = sbr.rel (0) target = $region33
    $region32: #{seq2seq_forward.1} parent=1 // pred_region
      _
    $region33: #{seq2seq_forward.1} parent=1 // pred_fallthru
      _
    // Predicated region
    $region34: #{seq2seq_forward.1} parent=1 // pred_check
      _
    $region35: #{seq2seq_forward.1} parent=1 // pred_check_branch
      %47 = sbr.rel (0) target = $region37
    $region36: #{seq2seq_forward.1} parent=1 // pred_region
      _
    $region37: #{seq2seq_forward.1} parent=1 // pred_fallthru
      _
    // Predicated region
    $region38: #{seq2seq_forward.1} parent=1 // pred_check
      _
    $region39: #{seq2seq_forward.1} parent=1 // pred_check_branch
      %49 = sbr.rel (0) target = $region41
    $region40: #{seq2seq_forward.1} parent=1 // pred_region
      _
    $region41: #{seq2seq_forward.1} parent=1 // pred_fallthru
      _
    // Predicated region
    $region42: #{seq2seq_forward.1} parent=1 // pred_check
      _
    $region43: #{seq2seq_forward.1} parent=1 // pred_check_branch
      %51 = sbr.rel (0) target = $region45
    $region44: #{seq2seq_forward.1} parent=1 // pred_region
      _
    $region45: #{seq2seq_forward.1} parent=1 // pred_fallthru
      _
    // Predicated region
    $region46: #{seq2seq_forward.1} parent=1 // pred_check
      _
    $region47: #{seq2seq_forward.1} parent=1 // pred_check_branch
      %53 = sbr.rel (0) target = $region49
    $region48: #{seq2seq_forward.1} parent=1 // pred_region
      _
    $region49: #{seq2seq_forward.1} parent=1 // pred_fallthru
      _
    // Predicated region
    $region50: #{seq2seq_forward.1} parent=1 // pred_check
      _
    $region51: #{seq2seq_forward.1} parent=1 // pred_check_branch
      %55 = sbr.rel (0) target = $region53
    $region52: #{seq2seq_forward.1} parent=1 // pred_region
      _
    $region53: #{seq2seq_forward.1} parent=1 // pred_fallthru
      _
    // Predicated region
    $region54: #{seq2seq_forward.1} parent=1 // pred_check
      _
    $region55: #{seq2seq_forward.1} parent=1 // pred_check_branch
      %57 = sbr.rel (0) target = $region57
    $region56: #{seq2seq_forward.1} parent=1 // pred_region
      _
    $region57: #{seq2seq_forward.1} parent=1 // pred_fallthru
      _
    // Predicated region
    $region58: #{seq2seq_forward.1} parent=1 // pred_check
      _
    $region59: #{seq2seq_forward.1} parent=1 // pred_check_branch
      %59 = sbr.rel (0) target = $region61
    $region60: #{seq2seq_forward.1} parent=1 // pred_region
      _
    $region61: #{seq2seq_forward.1} parent=1 // pred_fallthru
      _
    // Predicated region
    $region62: #{seq2seq_forward.1} parent=1 // pred_check
      _
    $region63: #{seq2seq_forward.1} parent=1 // pred_check_branch
      %61 = sbr.rel (0) target = $region65
    $region64: #{seq2seq_forward.1} parent=1 // pred_region
      _
    $region65: #{seq2seq_forward.1} parent=1 // pred_fallthru
      _
    // Predicated region
    $region66: #{seq2seq_forward.1} parent=1 // pred_check
      _
    $region67: #{seq2seq_forward.1} parent=1 // pred_check_branch
      %63 = sbr.rel (0) target = $region69
    $region68: #{seq2seq_forward.1} parent=1 // pred_region
      _
    $region69: #{seq2seq_forward.1} parent=1 // pred_fallthru
      _
    // Predicated region
    $region70: #{seq2seq_forward.1} parent=1 // pred_check
      _
    $region71: #{seq2seq_forward.1} parent=1 // pred_check_branch
      %65 = sbr.rel (0) target = $region73
    $region72: #{seq2seq_forward.1} parent=1 // pred_region
      _
    $region73: #{seq2seq_forward.1} parent=1 // pred_fallthru
      _
    // Predicated region
    $region74: #{seq2seq_forward.1} parent=1 // pred_check
      _
    $region75: #{seq2seq_forward.1} parent=1 // pred_check_branch
      %67 = sbr.rel (0) target = $region77
    $region76: #{seq2seq_forward.1} parent=1 // pred_region
      _
    $region77: #{seq2seq_forward.1} parent=1 // pred_fallthru
      _
    // Predicated region
    $region78: #{seq2seq_forward.1} parent=1 // pred_check
      _
    $region79: #{seq2seq_forward.1} parent=1 // pred_check_branch
      %69 = sbr.rel (0) target = $region81
    $region80: #{seq2seq_forward.1} parent=1 // pred_region
      _
    $region81: #{seq2seq_forward.1} parent=1 // pred_fallthru
      _
    %v71 = vld [vmem:[%s3] sm:$0xf]
    %v72 = vld [vmem:[%s3 + $0x4] sm:$0xf]
    %v73 = vld [vmem:[%s3 + $0x8] sm:$0xf]
    %v74 = vld [vmem:[%s3 + $0xc] sm:$0xf]
    %v75 = vld [vmem:[%s4] sm:$0xf]
    %v76 = vld [vmem:[%s4 + $0x4] sm:$0xf]
    %v77 = vld [vmem:[%s4 + $0x8] sm:$0xf]
    %v78 = vld [vmem:[%s4 + $0xc] sm:$0xf]
    %v79 = vld [vmem:[%s7] sm:$0x3]
    %v80 = vld [vmem:[%s8] sm:$0xf]
    %v81 = vld [vmem:[%s8 + $0x4] sm:$0xf]
    %v82 = vld [vmem:[%s8 + $0x8] sm:$0xf]
    %v83 = vld [vmem:[%s8 + $0xc] sm:$0xf]
    %v84 = vld [vmem:[%s8 + $0x10] sm:$0xf]
    %v85 = vld [vmem:[%s8 + $0x14] sm:$0xf]
    %v86 = vld [vmem:[%s8 + $0x18] sm:$0xf]
    %v87 = vld [vmem:[%s8 + $0x1c] sm:$0xf]
    %v88 = vld [vmem:[%s9] sm:$0xf]
    %v89 = vld [vmem:[%s9 + $0x4] sm:$0xf]
    %v90 = vld [vmem:[%s9 + $0x8] sm:$0xf]
    %v91 = vld [vmem:[%s9 + $0xc] sm:$0xf]
    %v92 = vld [vmem:[%s10] sm:$0xf]
    %v93 = vld [vmem:[%s10 + $0x4] sm:$0xf]
    %v94 = vld [vmem:[%s10 + $0x8] sm:$0xf]
    %v95 = vld [vmem:[%s10 + $0xc] sm:$0xf]
    %v96 = vld [vmem:[%s11] sm:$0x3]
    %v97 = vld [vmem:[%s12] sm:$0x3]
    %v98 = vld [vmem:[%s13] sm:$0x3]
    %v99 = vld [vmem:[%s14] sm:$0xf]
    %v100 = vld [vmem:[%s14 + $0x4] sm:$0xf]
    %v101 = vld [vmem:[%s14 + $0x8] sm:$0xf]
    %v102 = vld [vmem:[%s14 + $0xc] sm:$0xf]
    %v103 = vld [vmem:[%s15] sm:$0xf]
    %v104 = vld [vmem:[%s15 + $0x4] sm:$0xf]
    %v105 = vld [vmem:[%s15 + $0x8] sm:$0xf]
    %v106 = vld [vmem:[%s15 + $0xc] sm:$0xf]
    %v107 = vld [vmem:[%s16] sm:$0x3]
    %v108 = vld [vmem:[%s17] sm:$0xf]
    %v109 = vld [vmem:[%s17 + $0x4] sm:$0xf]
    %v110 = vld [vmem:[%s17 + $0x8] sm:$0xf]
    %v111 = vld [vmem:[%s17 + $0xc] sm:$0xf]
    %v112 = vld [vmem:[%s18] sm:$0x3]
    %v113 = vld [vmem:[%s19] sm:$0x3]
    %v114 = vld [vmem:[%s0] sm:$0xf]
    %v115 = vld [vmem:[%s0 + $0x4] sm:$0xf]
    %v116 = vld [vmem:[%s0 + $0x8] sm:$0xf]
    %v117 = vld [vmem:[%s0 + $0xc] sm:$0xf]
    %v118 = vld [vmem:[%s1] sm:$0xf]
    %v119 = vld [vmem:[%s1 + $0x4] sm:$0xf]
    %v120 = vld [vmem:[%s1 + $0x8] sm:$0xf]
    %v121 = vld [vmem:[%s1 + $0xc] sm:$0xf]
    %v122 = vld [vmem:[%s5] sm:$0xff]
    %v123 = vld [vmem:[%s5 + $0x8] sm:$0xff]
    %v124 = vld [vmem:[%s5 + $0x10] sm:$0xff]
    %v125 = vld [vmem:[%s5 + $0x18] sm:$0xff]
    %v130 = vunpack.c.l.b16 %v114
    %v131 = vunpack.c.l.b16 %v115
    %v132 = vunpack.c.l.b16 %v116
    %v133 = vunpack.c.l.b16 %v117
    %v134 = vpack.c.b16 %v131, %v130
    %v135 = vpack.c.b16 %v133, %v132
    %v140 = vunpack.c.l.b16 %v118
    %v141 = vunpack.c.l.b16 %v119
    %v142 = vunpack.c.l.b16 %v120
    %v143 = vunpack.c.l.b16 %v121
    %v144 = vpack.c.b16 %v141, %v140
    %v145 = vpack.c.b16 %v143, %v142
    %vm148 = vcmask 261120
    %v150 = vsel %vm148, %v134, 0
    %v153 = vsel %vm148, %v135, 0
    %155 = vmatpush.bf16.msra.mxu0 0
    %156 = vmatpush.bf16.msra.mxu0 0
    %157 = vmatpush.bf16.msra.mxu0 0
    %158 = vmatpush.bf16.msra.mxu0 0
    %159 = vmatpush.bf16.msra.mxu0 0
    %160 = vmatpush.bf16.msra.mxu0 0
    %161 = vmatpush.bf16.msra.mxu0 %v145
    %162 = vmatpush.bf16.msra.mxu0 %v144
    %163 = vmatmul.bf16.gmra.mxu0 %v150
    %v164 = vpop.f32.mrf.mxu0
    %v165 = vadd.f32 %v122, %v164
    %v166 = vpop.f32.mrf.mxu0
    %v167 = vadd.f32 %v123, %v166
    %168 = vmatmul.bf16.gmra.mxu0 %v153
    %v169 = vpop.f32.mrf.mxu0
    %v170 = vadd.f32 %v124, %v169
    %v171 = vpop.f32.mrf.mxu0
    %v172 = vadd.f32 %v125, %v171
    %173 = vdwg.mxu0
    %v174 = vld [vmem:[%s2] sm:$0xf]
    %v175 = vld [vmem:[%s2 + $0x4] sm:$0xf]
    %v176 = vld [vmem:[%s2 + $0x8] sm:$0xf]
    %v177 = vld [vmem:[%s2 + $0xc] sm:$0xf]
    %v178 = vld [vmem:[%s6] sm:$0xff]
    %v179 = vld [vmem:[%s6 + $0x8] sm:$0xff]
    %v180 = vld [vmem:[%s6 + $0x10] sm:$0xff]
    %v181 = vld [vmem:[%s6 + $0x18] sm:$0xff]
    %v186 = vunpack.c.l.b16 %v174
    %v187 = vunpack.c.l.b16 %v175
    %v188 = vunpack.c.l.b16 %v176
    %v189 = vunpack.c.l.b16 %v177
    %v190 = vpack.c.b16 %v187, %v186
    %v191 = vpack.c.b16 %v189, %v188
    %194 = vmatpush.bf16.msra.mxu0 0
    %195 = vmatpush.bf16.msra.mxu0 0
    %196 = vmatpush.bf16.msra.mxu0 0
    %197 = vmatpush.bf16.msra.mxu0 0
    %198 = vmatpush.bf16.msra.mxu0 0
    %199 = vmatpush.bf16.msra.mxu0 0
    %200 = vmatpush.bf16.msra.mxu0 %v191
    %201 = vmatpush.bf16.msra.mxu0 %v190
    %202 = vmatmul.bf16.gmra.mxu0 %v150
    %v203 = vpop.f32.mrf.mxu0
    %v204 = vadd.f32 %v178, %v203
    %v205 = vpop.f32.mrf.mxu0
    %v206 = vadd.f32 %v179, %v205
    %207 = vmatmul.bf16.gmra.mxu0 %v153
    %v208 = vpop.f32.mrf.mxu0
    %v209 = vadd.f32 %v180, %v208
    %v210 = vpop.f32.mrf.mxu0
    %v211 = vadd.f32 %v181, %v210
    %212 = vdwg.mxu0
    %v217 = vunpack.c.l.b16 %v71
    %v218 = vunpack.c.l.b16 %v72
    %v219 = vunpack.c.l.b16 %v73
    %v220 = vunpack.c.l.b16 %v74
    %v221 = vpack.c.b16 %v218, %v217
    %v222 = vpack.c.b16 %v220, %v219
    %v226 = vsel %vm148, 0, 0
    %228 = vmatpush.bf16.msra.mxu0 0
    %229 = vmatpush.bf16.msra.mxu0 0
    %230 = vmatpush.bf16.msra.mxu0 0
    %231 = vmatpush.bf16.msra.mxu0 0
    %232 = vmatpush.bf16.msra.mxu0 0
    %233 = vmatpush.bf16.msra.mxu0 0
    %234 = vmatpush.bf16.msra.mxu0 %v222
    %235 = vmatpush.bf16.msra.mxu0 %v221
    %236 = vmatmul.bf16.gmra.mxu0 %v226
    %v237 = vpop.f32.mrf.mxu0
    %v238 = vadd.f32 0.0, %v237
    %v239 = vpop.f32.mrf.mxu0
    %240 = vdwg.mxu0
    %v245 = vunpack.c.l.b16 %v75
    %v246 = vunpack.c.l.b16 %v76
    %v247 = vunpack.c.l.b16 %v77
    %v248 = vunpack.c.l.b16 %v78
    %v249 = vpack.c.b16 %v246, %v245
    %v250 = vpack.c.b16 %v248, %v247
    %253 = vmatpush.bf16.msra.mxu0 0
    %254 = vmatpush.bf16.msra.mxu0 0
    %255 = vmatpush.bf16.msra.mxu0 0
    %256 = vmatpush.bf16.msra.mxu0 0
    %257 = vmatpush.bf16.msra.mxu0 0
    %258 = vmatpush.bf16.msra.mxu0 0
    %259 = vmatpush.bf16.msra.mxu0 %v250
    %260 = vmatpush.bf16.msra.mxu0 %v249
    %261 = vmatmul.bf16.gmra.mxu0 %v226
    %v262 = vpop.f32.mrf.mxu0
    %v263 = vadd.f32 %v79, %v262
    %v264 = vpop.f32.mrf.mxu0
    %265 = vdwg.mxu0
    %v266 = vadd.f32 %v165, %v238
    %v267 = vxor.u32 %v266, 2147483648
    %v268 = vmul.f32 %v267, 1.442695
    %v269 = vpow.pop %v268
    %v270 = vadd.f32 %v269, 1.0
    %v271 = vrcp.pop %v270
    %v272 = vmul.f32 %v270, %v271
    %v273 = vsub.f32 1.0, %v272
    %v274 = vmul.f32 %v271, %v273
    %v275 = vadd.f32 %v271, %v274
    %vm276 = vweird.f32 %v270
    %vm277 = vweird.f32 %v271
    %vm278 = vmor %vm276, %vm277
    %v279 = vsel %vm278, %v271, %v275
    %v280 = vand.u32 2147483647, %v270
    %vm281 = vcmp.eq.f32.partialorder %v280, 8.507059e+37
    %v282 = vand.u32 %v270, 2147483648
    %v283 = vor.u32 1.1754944e-38, %v282
    %v284 = vsel %vm281, %v283, %v279
    %v285 = vmul.f32 1.0, %v284
    %v286 = vmul.f32 %v285, %v263
    %v287 = vadd.f32 %v204, %v286
    %v288 = vtanh.pop %v287
    %v289 = vsub.f32 1.0, %v285
    %291 = vrot.lane.b32.xlu0 %v288, 32
    %v292 = vpop.permute.xlu0 %291
    %v294 = vmul.f32 %v289, %v292
    %v295 = vmul.f32 %v285, 0.0
    %v296 = vadd.f32 %v294, %v295
    %v297 = vpack.c.bf16 %v296, %v296
    %299 = vrot.lane.b32.xlu0 %v297, 96
    %v300 = vpop.permute.xlu0 %299
    %v302 = vsel %vm148, %v300, 0
    %304 = vmatpush.bf16.msra.mxu0 0
    %305 = vmatpush.bf16.msra.mxu0 0
    %306 = vmatpush.bf16.msra.mxu0 0
    %307 = vmatpush.bf16.msra.mxu0 0
    %308 = vmatpush.bf16.msra.mxu0 0
    %309 = vmatpush.bf16.msra.mxu0 0
    %310 = vmatpush.bf16.msra.mxu0 %v222
    %311 = vmatpush.bf16.msra.mxu0 %v221
    %312 = vmatmul.bf16.gmra.mxu0 %v302
    %v313 = vpop.f32.mrf.mxu0
    %v314 = vadd.f32 0.0, %v313
    %v315 = vpop.f32.mrf.mxu0
    %316 = vdwg.mxu0
    %317 = vmatpush.bf16.msra.mxu0 0
    %318 = vmatpush.bf16.msra.mxu0 0
    %319 = vmatpush.bf16.msra.mxu0 0
    %320 = vmatpush.bf16.msra.mxu0 0
    %321 = vmatpush.bf16.msra.mxu0 0
    %322 = vmatpush.bf16.msra.mxu0 0
    %323 = vmatpush.bf16.msra.mxu0 %v250
    %324 = vmatpush.bf16.msra.mxu0 %v249
    %325 = vmatmul.bf16.gmra.mxu0 %v302
    %v326 = vpop.f32.mrf.mxu0
    %v327 = vadd.f32 %v79, %v326
    %v328 = vpop.f32.mrf.mxu0
    %329 = vdwg.mxu0
    %v331 = vrot.slane %v314, 6
    %v333 = vadd.f32 %v165, %v331
    %v334 = vxor.u32 %v333, 2147483648
    %v335 = vmul.f32 %v334, 1.442695
    %v336 = vpow.pop %v335
    %v337 = vadd.f32 %v336, 1.0
    %v338 = vrcp.pop %v337
    %v339 = vmul.f32 %v337, %v338
    %v340 = vsub.f32 1.0, %v339
    %v341 = vmul.f32 %v338, %v340
    %v342 = vadd.f32 %v338, %v341
    %vm343 = vweird.f32 %v337
    %vm344 = vweird.f32 %v338
    %vm345 = vmor %vm343, %vm344
    %v346 = vsel %vm345, %v338, %v342
    %v347 = vand.u32 2147483647, %v337
    %vm348 = vcmp.eq.f32.partialorder %v347, 8.507059e+37
    %v349 = vand.u32 %v337, 2147483648
    %v350 = vor.u32 1.1754944e-38, %v349
    %v351 = vsel %vm348, %v350, %v346
    %v352 = vmul.f32 1.0, %v351
    %v354 = vrot.slane %v327, 6
    %v356 = vmul.f32 %v352, %v354
    %v357 = vadd.f32 %v204, %v356
    %v358 = vtanh.pop %v357
    %v359 = vsub.f32 1.0, %v352
    %361 = vrot.lane.b32.xlu0 %v358, 32
    %v362 = vpop.permute.xlu0 %361
    %v364 = vmul.f32 %v359, %v362
    %v366 = vrot.slane %v296, 6
    %v368 = vmul.f32 %v352, %v366
    %v369 = vadd.f32 %v364, %v368
    %v370 = vpack.c.bf16 %v369, %v369
    %v372 = vrot.slane %v370, 1
    %373 = vrot.lane.b32.xlu0 %v372, 96
    %v374 = vpop.permute.xlu0 %373
    %v376 = vsel %vm148, %v374, 0
    %378 = vmatpush.bf16.msra.mxu0 0
    %379 = vmatpush.bf16.msra.mxu0 0
    %380 = vmatpush.bf16.msra.mxu0 0
    %381 = vmatpush.bf16.msra.mxu0 0
    %382 = vmatpush.bf16.msra.mxu0 0
    %383 = vmatpush.bf16.msra.mxu0 0
    %384 = vmatpush.bf16.msra.mxu0 %v222
    %385 = vmatpush.bf16.msra.mxu0 %v221
    %386 = vmatmul.bf16.gmra.mxu0 %v376
    %v387 = vpop.f32.mrf.mxu0
    %v388 = vadd.f32 0.0, %v387
    %v389 = vpop.f32.mrf.mxu0
    %390 = vdwg.mxu0
    %391 = vmatpush.bf16.msra.mxu0 0
    %392 = vmatpush.bf16.msra.mxu0 0
    %393 = vmatpush.bf16.msra.mxu0 0
    %394 = vmatpush.bf16.msra.mxu0 0
    %395 = vmatpush.bf16.msra.mxu0 0
    %396 = vmatpush.bf16.msra.mxu0 0
    %397 = vmatpush.bf16.msra.mxu0 %v250
    %398 = vmatpush.bf16.msra.mxu0 %v249
    %399 = vmatmul.bf16.gmra.mxu0 %v376
    %v400 = vpop.f32.mrf.mxu0
    %v401 = vadd.f32 %v79, %v400
    %v402 = vpop.f32.mrf.mxu0
    %403 = vdwg.mxu0
    %v405 = vrot.slane %v388, 4
    %v407 = vadd.f32 %v165, %v405
    %v408 = vxor.u32 %v407, 2147483648
    %v409 = vmul.f32 %v408, 1.442695
    %v410 = vpow.pop %v409
    %v411 = vadd.f32 %v410, 1.0
    %v412 = vrcp.pop %v411
    %v413 = vmul.f32 %v411, %v412
    %v414 = vsub.f32 1.0, %v413
    %v415 = vmul.f32 %v412, %v414
    %v416 = vadd.f32 %v412, %v415
    %vm417 = vweird.f32 %v411
    %vm418 = vweird.f32 %v412
    %vm419 = vmor %vm417, %vm418
    %v420 = vsel %vm419, %v412, %v416
    %v421 = vand.u32 2147483647, %v411
    %vm422 = vcmp.eq.f32.partialorder %v421, 8.507059e+37
    %v423 = vand.u32 %v411, 2147483648
    %v424 = vor.u32 1.1754944e-38, %v423
    %v425 = vsel %vm422, %v424, %v420
    %v426 = vmul.f32 1.0, %v425
    %v428 = vrot.slane %v401, 4
    %v430 = vmul.f32 %v426, %v428
    %v431 = vadd.f32 %v204, %v430
    %v432 = vtanh.pop %v431
    %v433 = vsub.f32 1.0, %v426
    %435 = vrot.lane.b32.xlu0 %v432, 32
    %v436 = vpop.permute.xlu0 %435
    %v438 = vmul.f32 %v433, %v436
    %v440 = vrot.slane %v369, 6
    %v442 = vmul.f32 %v426, %v440
    %v443 = vadd.f32 %v438, %v442
    %v444 = vpack.c.bf16 %v443, %v443
    %v446 = vrot.slane %v444, 2
    %447 = vrot.lane.b32.xlu0 %v446, 96
    %v448 = vpop.permute.xlu0 %447
    %v450 = vsel %vm148, %v448, 0
    %452 = vmatpush.bf16.msra.mxu0 0
    %453 = vmatpush.bf16.msra.mxu0 0
    %454 = vmatpush.bf16.msra.mxu0 0
    %455 = vmatpush.bf16.msra.mxu0 0
    %456 = vmatpush.bf16.msra.mxu0 0
    %457 = vmatpush.bf16.msra.mxu0 0
    %458 = vmatpush.bf16.msra.mxu0 %v222
    %459 = vmatpush.bf16.msra.mxu0 %v221
    %460 = vmatmul.bf16.gmra.mxu0 %v450
    %v461 = vpop.f32.mrf.mxu0
    %v462 = vadd.f32 0.0, %v461
    %v463 = vpop.f32.mrf.mxu0
    %464 = vdwg.mxu0
    %465 = vmatpush.bf16.msra.mxu0 0
    %466 = vmatpush.bf16.msra.mxu0 0
    %467 = vmatpush.bf16.msra.mxu0 0
    %468 = vmatpush.bf16.msra.mxu0 0
    %469 = vmatpush.bf16.msra.mxu0 0
    %470 = vmatpush.bf16.msra.mxu0 0
    %471 = vmatpush.bf16.msra.mxu0 %v250
    %472 = vmatpush.bf16.msra.mxu0 %v249
    %473 = vmatmul.bf16.gmra.mxu0 %v450
    %v474 = vpop.f32.mrf.mxu0
    %v475 = vadd.f32 %v79, %v474
    %v476 = vpop.f32.mrf.mxu0
    %477 = vdwg.mxu0
    %v479 = vrot.slane %v462, 2
    %v481 = vadd.f32 %v165, %v479
    %v482 = vxor.u32 %v481, 2147483648
    %v483 = vmul.f32 %v482, 1.442695
    %v484 = vpow.pop %v483
    %v485 = vadd.f32 %v484, 1.0
    %v486 = vrcp.pop %v485
    %v487 = vmul.f32 %v485, %v486
    %v488 = vsub.f32 1.0, %v487
    %v489 = vmul.f32 %v486, %v488
    %v490 = vadd.f32 %v486, %v489
    %vm491 = vweird.f32 %v485
    %vm492 = vweird.f32 %v486
    %vm493 = vmor %vm491, %vm492
    %v494 = vsel %vm493, %v486, %v490
    %v495 = vand.u32 2147483647, %v485
    %vm496 = vcmp.eq.f32.partialorder %v495, 8.507059e+37
    %v497 = vand.u32 %v485, 2147483648
    %v498 = vor.u32 1.1754944e-38, %v497
    %v499 = vsel %vm496, %v498, %v494
    %v500 = vmul.f32 1.0, %v499
    %v502 = vrot.slane %v475, 2
    %v504 = vmul.f32 %v500, %v502
    %v505 = vadd.f32 %v204, %v504
    %v506 = vtanh.pop %v505
    %v507 = vsub.f32 1.0, %v500
    %509 = vrot.lane.b32.xlu0 %v506, 32
    %v510 = vpop.permute.xlu0 %509
    %v512 = vmul.f32 %v507, %v510
    %v514 = vrot.slane %v443, 6
    %v516 = vmul.f32 %v500, %v514
    %v517 = vadd.f32 %v512, %v516
    %v518 = vpack.c.bf16 %v517, %v517
    %v520 = vrot.slane %v518, 3
    %521 = vrot.lane.b32.xlu0 %v520, 96
    %v522 = vpop.permute.xlu0 %521
    %v524 = vsel %vm148, %v522, 0
    %526 = vmatpush.bf16.msra.mxu0 0
    %527 = vmatpush.bf16.msra.mxu0 0
    %528 = vmatpush.bf16.msra.mxu0 0
    %529 = vmatpush.bf16.msra.mxu0 0
    %530 = vmatpush.bf16.msra.mxu0 0
    %531 = vmatpush.bf16.msra.mxu0 0
    %532 = vmatpush.bf16.msra.mxu0 %v222
    %533 = vmatpush.bf16.msra.mxu0 %v221
    %534 = vmatmul.bf16.gmra.mxu0 %v524
    %v535 = vpop.f32.mrf.mxu0
    %v536 = vadd.f32 0.0, %v535
    %v537 = vpop.f32.mrf.mxu0
    %538 = vdwg.mxu0
    %539 = vmatpush.bf16.msra.mxu0 0
    %540 = vmatpush.bf16.msra.mxu0 0
    %541 = vmatpush.bf16.msra.mxu0 0
    %542 = vmatpush.bf16.msra.mxu0 0
    %543 = vmatpush.bf16.msra.mxu0 0
    %544 = vmatpush.bf16.msra.mxu0 0
    %545 = vmatpush.bf16.msra.mxu0 %v250
    %546 = vmatpush.bf16.msra.mxu0 %v249
    %547 = vmatmul.bf16.gmra.mxu0 %v524
    %v548 = vpop.f32.mrf.mxu0
    %v549 = vadd.f32 %v79, %v548
    %v550 = vpop.f32.mrf.mxu0
    %551 = vdwg.mxu0
    %v552 = vadd.f32 %v167, %v536
    %v553 = vxor.u32 %v552, 2147483648
    %v554 = vmul.f32 %v553, 1.442695
    %v555 = vpow.pop %v554
    %v556 = vadd.f32 %v555, 1.0
    %v557 = vrcp.pop %v556
    %v558 = vmul.f32 %v556, %v557
    %v559 = vsub.f32 1.0, %v558
    %v560 = vmul.f32 %v557, %v559
    %v561 = vadd.f32 %v557, %v560
    %vm562 = vweird.f32 %v556
    %vm563 = vweird.f32 %v557
    %vm564 = vmor %vm562, %vm563
    %v565 = vsel %vm564, %v557, %v561
    %v566 = vand.u32 2147483647, %v556
    %vm567 = vcmp.eq.f32.partialorder %v566, 8.507059e+37
    %v568 = vand.u32 %v556, 2147483648
    %v569 = vor.u32 1.1754944e-38, %v568
    %v570 = vsel %vm567, %v569, %v565
    %v571 = vmul.f32 1.0, %v570
    %v572 = vmul.f32 %v571, %v549
    %v573 = vadd.f32 %v206, %v572
    %v574 = vtanh.pop %v573
    %v575 = vsub.f32 1.0, %v571
    %577 = vrot.lane.b32.xlu0 %v574, 32
    %v578 = vpop.permute.xlu0 %577
    %v580 = vmul.f32 %v575, %v578
    %v582 = vrot.slane %v517, 6
    %v584 = vmul.f32 %v571, %v582
    %v585 = vadd.f32 %v580, %v584
    %v586 = vpack.c.bf16 %v585, %v585
    %588 = vrot.lane.b32.xlu0 %v586, 96
    %v589 = vpop.permute.xlu0 %588
    %v591 = vsel %vm148, %v589, 0
    %593 = vmatpush.bf16.msra.mxu0 0
    %594 = vmatpush.bf16.msra.mxu0 0
    %595 = vmatpush.bf16.msra.mxu0 0
    %596 = vmatpush.bf16.msra.mxu0 0
    %597 = vmatpush.bf16.msra.mxu0 0
    %598 = vmatpush.bf16.msra.mxu0 0
    %599 = vmatpush.bf16.msra.mxu0 %v222
    %600 = vmatpush.bf16.msra.mxu0 %v221
    %601 = vmatmul.bf16.gmra.mxu0 %v591
    %v602 = vpop.f32.mrf.mxu0
    %v603 = vadd.f32 0.0, %v602
    %v604 = vpop.f32.mrf.mxu0
    %605 = vdwg.mxu0
    %606 = vmatpush.bf16.msra.mxu0 0
    %607 = vmatpush.bf16.msra.mxu0 0
    %608 = vmatpush.bf16.msra.mxu0 0
    %609 = vmatpush.bf16.msra.mxu0 0
    %610 = vmatpush.bf16.msra.mxu0 0
    %611 = vmatpush.bf16.msra.mxu0 0
    %612 = vmatpush.bf16.msra.mxu0 %v250
    %613 = vmatpush.bf16.msra.mxu0 %v249
    %614 = vmatmul.bf16.gmra.mxu0 %v591
    %v615 = vpop.f32.mrf.mxu0
    %v616 = vadd.f32 %v79, %v615
    %v617 = vpop.f32.mrf.mxu0
    %618 = vdwg.mxu0
    %v620 = vrot.slane %v603, 6
    %v622 = vadd.f32 %v167, %v620
    %v623 = vxor.u32 %v622, 2147483648
    %v624 = vmul.f32 %v623, 1.442695
    %v625 = vpow.pop %v624
    %v626 = vadd.f32 %v625, 1.0
    %v627 = vrcp.pop %v626
    %v628 = vmul.f32 %v626, %v627
    %v629 = vsub.f32 1.0, %v628
    %v630 = vmul.f32 %v627, %v629
    %v631 = vadd.f32 %v627, %v630
    %vm632 = vweird.f32 %v626
    %vm633 = vweird.f32 %v627
    %vm634 = vmor %vm632, %vm633
    %v635 = vsel %vm634, %v627, %v631
    %v636 = vand.u32 2147483647, %v626
    %vm637 = vcmp.eq.f32.partialorder %v636, 8.507059e+37
    %v638 = vand.u32 %v626, 2147483648
    %v639 = vor.u32 1.1754944e-38, %v638
    %v640 = vsel %vm637, %v639, %v635
    %v641 = vmul.f32 1.0, %v640
    %v643 = vrot.slane %v616, 6
    %v645 = vmul.f32 %v641, %v643
    %v646 = vadd.f32 %v206, %v645
    %v647 = vtanh.pop %v646
    %v648 = vsub.f32 1.0, %v641
    %650 = vrot.lane.b32.xlu0 %v647, 32
    %v651 = vpop.permute.xlu0 %650
    %v653 = vmul.f32 %v648, %v651
    %v655 = vrot.slane %v585, 6
    %v657 = vmul.f32 %v641, %v655
    %v658 = vadd.f32 %v653, %v657
    %v659 = vpack.c.bf16 %v658, %v658
    %v661 = vrot.slane %v659, 1
    %662 = vrot.lane.b32.xlu0 %v661, 96
    %v663 = vpop.permute.xlu0 %662
    %v665 = vsel %vm148, %v663, 0
    %667 = vmatpush.bf16.msra.mxu0 0
    %668 = vmatpush.bf16.msra.mxu0 0
    %669 = vmatpush.bf16.msra.mxu0 0
    %670 = vmatpush.bf16.msra.mxu0 0
    %671 = vmatpush.bf16.msra.mxu0 0
    %672 = vmatpush.bf16.msra.mxu0 0
    %673 = vmatpush.bf16.msra.mxu0 %v222
    %674 = vmatpush.bf16.msra.mxu0 %v221
    %675 = vmatmul.bf16.gmra.mxu0 %v665
    %v676 = vpop.f32.mrf.mxu0
    %v677 = vadd.f32 0.0, %v676
    %v678 = vpop.f32.mrf.mxu0
    %679 = vdwg.mxu0
    %680 = vmatpush.bf16.msra.mxu0 0
    %681 = vmatpush.bf16.msra.mxu0 0
    %682 = vmatpush.bf16.msra.mxu0 0
    %683 = vmatpush.bf16.msra.mxu0 0
    %684 = vmatpush.bf16.msra.mxu0 0
    %685 = vmatpush.bf16.msra.mxu0 0
    %686 = vmatpush.bf16.msra.mxu0 %v250
    %687 = vmatpush.bf16.msra.mxu0 %v249
    %688 = vmatmul.bf16.gmra.mxu0 %v665
    %v689 = vpop.f32.mrf.mxu0
    %v690 = vadd.f32 %v79, %v689
    %v691 = vpop.f32.mrf.mxu0
    %692 = vdwg.mxu0
    %v694 = vrot.slane %v677, 4
    %v696 = vadd.f32 %v167, %v694
    %v697 = vxor.u32 %v696, 2147483648
    %v698 = vmul.f32 %v697, 1.442695
    %v699 = vpow.pop %v698
    %v700 = vadd.f32 %v699, 1.0
    %v701 = vrcp.pop %v700
    %v702 = vmul.f32 %v700, %v701
    %v703 = vsub.f32 1.0, %v702
    %v704 = vmul.f32 %v701, %v703
    %v705 = vadd.f32 %v701, %v704
    %vm706 = vweird.f32 %v700
    %vm707 = vweird.f32 %v701
    %vm708 = vmor %vm706, %vm707
    %v709 = vsel %vm708, %v701, %v705
    %v710 = vand.u32 2147483647, %v700
    %vm711 = vcmp.eq.f32.partialorder %v710, 8.507059e+37
    %v712 = vand.u32 %v700, 2147483648
    %v713 = vor.u32 1.1754944e-38, %v712
    %v714 = vsel %vm711, %v713, %v709
    %v715 = vmul.f32 1.0, %v714
    %v717 = vrot.slane %v690, 4
    %v719 = vmul.f32 %v715, %v717
    %v720 = vadd.f32 %v206, %v719
    %v721 = vtanh.pop %v720
    %v722 = vsub.f32 1.0, %v715
    %724 = vrot.lane.b32.xlu0 %v721, 32
    %v725 = vpop.permute.xlu0 %724
    %v727 = vmul.f32 %v722, %v725
    %v729 = vrot.slane %v658, 6
    %v731 = vmul.f32 %v715, %v729
    %v732 = vadd.f32 %v727, %v731
    %v733 = vpack.c.bf16 %v732, %v732
    %v735 = vrot.slane %v733, 2
    %736 = vrot.lane.b32.xlu0 %v735, 96
    %v737 = vpop.permute.xlu0 %736
    %v739 = vsel %vm148, %v737, 0
    %741 = vmatpush.bf16.msra.mxu0 0
    %742 = vmatpush.bf16.msra.mxu0 0
    %743 = vmatpush.bf16.msra.mxu0 0
    %744 = vmatpush.bf16.msra.mxu0 0
    %745 = vmatpush.bf16.msra.mxu0 0
    %746 = vmatpush.bf16.msra.mxu0 0
    %747 = vmatpush.bf16.msra.mxu0 %v222
    %748 = vmatpush.bf16.msra.mxu0 %v221
    %749 = vmatmul.bf16.gmra.mxu0 %v739
    %v750 = vpop.f32.mrf.mxu0
    %v751 = vadd.f32 0.0, %v750
    %v752 = vpop.f32.mrf.mxu0
    %753 = vdwg.mxu0
    %754 = vmatpush.bf16.msra.mxu0 0
    %755 = vmatpush.bf16.msra.mxu0 0
    %756 = vmatpush.bf16.msra.mxu0 0
    %757 = vmatpush.bf16.msra.mxu0 0
    %758 = vmatpush.bf16.msra.mxu0 0
    %759 = vmatpush.bf16.msra.mxu0 0
    %760 = vmatpush.bf16.msra.mxu0 %v250
    %761 = vmatpush.bf16.msra.mxu0 %v249
    %762 = vmatmul.bf16.gmra.mxu0 %v739
    %v763 = vpop.f32.mrf.mxu0
    %v764 = vadd.f32 %v79, %v763
    %v765 = vpop.f32.mrf.mxu0
    %766 = vdwg.mxu0
    %v768 = vrot.slane %v751, 2
    %v770 = vadd.f32 %v167, %v768
    %v771 = vxor.u32 %v770, 2147483648
    %v772 = vmul.f32 %v771, 1.442695
    %v773 = vpow.pop %v772
    %v774 = vadd.f32 %v773, 1.0
    %v775 = vrcp.pop %v774
    %v776 = vmul.f32 %v774, %v775
    %v777 = vsub.f32 1.0, %v776
    %v778 = vmul.f32 %v775, %v777
    %v779 = vadd.f32 %v775, %v778
    %vm780 = vweird.f32 %v774
    %vm781 = vweird.f32 %v775
    %vm782 = vmor %vm780, %vm781
    %v783 = vsel %vm782, %v775, %v779
    %v784 = vand.u32 2147483647, %v774
    %vm785 = vcmp.eq.f32.partialorder %v784, 8.507059e+37
    %v786 = vand.u32 %v774, 2147483648
    %v787 = vor.u32 1.1754944e-38, %v786
    %v788 = vsel %vm785, %v787, %v783
    %v789 = vmul.f32 1.0, %v788
    %v791 = vrot.slane %v764, 2
    %v793 = vmul.f32 %v789, %v791
    %v794 = vadd.f32 %v206, %v793
    %v795 = vtanh.pop %v794
    %v796 = vsub.f32 1.0, %v789
    %798 = vrot.lane.b32.xlu0 %v795, 32
    %v799 = vpop.permute.xlu0 %798
    %v801 = vmul.f32 %v796, %v799
    %v803 = vrot.slane %v732, 6
    %v805 = vmul.f32 %v789, %v803
    %v806 = vadd.f32 %v801, %v805
    %v807 = vadd.f32 %v170, %v238
    %v808 = vxor.u32 %v807, 2147483648
    %v809 = vmul.f32 %v808, 1.442695
    %v810 = vpow.pop %v809
    %v811 = vadd.f32 %v810, 1.0
    %v812 = vrcp.pop %v811
    %v813 = vmul.f32 %v811, %v812
    %v814 = vsub.f32 1.0, %v813
    %v815 = vmul.f32 %v812, %v814
    %v816 = vadd.f32 %v812, %v815
    %vm817 = vweird.f32 %v811
    %vm818 = vweird.f32 %v812
    %vm819 = vmor %vm817, %vm818
    %v820 = vsel %vm819, %v812, %v816
    %v821 = vand.u32 2147483647, %v811
    %vm822 = vcmp.eq.f32.partialorder %v821, 8.507059e+37
    %v823 = vand.u32 %v811, 2147483648
    %v824 = vor.u32 1.1754944e-38, %v823
    %v825 = vsel %vm822, %v824, %v820
    %v826 = vmul.f32 1.0, %v825
    %v827 = vmul.f32 %v826, %v263
    %v828 = vadd.f32 %v209, %v827
    %v829 = vtanh.pop %v828
    %v830 = vsub.f32 1.0, %v826
    %832 = vrot.lane.b32.xlu0 %v829, 32
    %v833 = vpop.permute.xlu0 %832
    %v835 = vmul.f32 %v830, %v833
    %v836 = vmul.f32 %v826, 0.0
    %v837 = vadd.f32 %v835, %v836
    %v838 = vpack.c.bf16 %v837, %v837
    %840 = vrot.lane.b32.xlu0 %v838, 96
    %v841 = vpop.permute.xlu0 %840
    %v843 = vsel %vm148, %v841, 0
    %845 = vmatpush.bf16.msra.mxu0 0
    %846 = vmatpush.bf16.msra.mxu0 0
    %847 = vmatpush.bf16.msra.mxu0 0
    %848 = vmatpush.bf16.msra.mxu0 0
    %849 = vmatpush.bf16.msra.mxu0 0
    %850 = vmatpush.bf16.msra.mxu0 0
    %851 = vmatpush.bf16.msra.mxu0 %v222
    %852 = vmatpush.bf16.msra.mxu0 %v221
    %853 = vmatmul.bf16.gmra.mxu0 %v843
    %v854 = vpop.f32.mrf.mxu0
    %v855 = vadd.f32 0.0, %v854
    %v856 = vpop.f32.mrf.mxu0
    %857 = vdwg.mxu0
    %858 = vmatpush.bf16.msra.mxu0 0
    %859 = vmatpush.bf16.msra.mxu0 0
    %860 = vmatpush.bf16.msra.mxu0 0
    %861 = vmatpush.bf16.msra.mxu0 0
    %862 = vmatpush.bf16.msra.mxu0 0
    %863 = vmatpush.bf16.msra.mxu0 0
    %864 = vmatpush.bf16.msra.mxu0 %v250
    %865 = vmatpush.bf16.msra.mxu0 %v249
    %866 = vmatmul.bf16.gmra.mxu0 %v843
    %v867 = vpop.f32.mrf.mxu0
    %v868 = vadd.f32 %v79, %v867
    %v869 = vpop.f32.mrf.mxu0
    %870 = vdwg.mxu0
    %v872 = vrot.slane %v855, 6
    %v874 = vadd.f32 %v170, %v872
    %v875 = vxor.u32 %v874, 2147483648
    %v876 = vmul.f32 %v875, 1.442695
    %v877 = vpow.pop %v876
    %v878 = vadd.f32 %v877, 1.0
    %v879 = vrcp.pop %v878
    %v880 = vmul.f32 %v878, %v879
    %v881 = vsub.f32 1.0, %v880
    %v882 = vmul.f32 %v879, %v881
    %v883 = vadd.f32 %v879, %v882
    %vm884 = vweird.f32 %v878
    %vm885 = vweird.f32 %v879
    %vm886 = vmor %vm884, %vm885
    %v887 = vsel %vm886, %v879, %v883
    %v888 = vand.u32 2147483647, %v878
    %vm889 = vcmp.eq.f32.partialorder %v888, 8.507059e+37
    %v890 = vand.u32 %v878, 2147483648
    %v891 = vor.u32 1.1754944e-38, %v890
    %v892 = vsel %vm889, %v891, %v887
    %v893 = vmul.f32 1.0, %v892
    %v895 = vrot.slane %v868, 6
    %v897 = vmul.f32 %v893, %v895
    %v898 = vadd.f32 %v209, %v897
    %v899 = vtanh.pop %v898
    %v900 = vsub.f32 1.0, %v893
    %902 = vrot.lane.b32.xlu0 %v899, 32
    %v903 = vpop.permute.xlu0 %902
    %v905 = vmul.f32 %v900, %v903
    %v907 = vrot.slane %v837, 6
    %v909 = vmul.f32 %v893, %v907
    %v910 = vadd.f32 %v905, %v909
    %v911 = vpack.c.bf16 %v910, %v910
    %v913 = vrot.slane %v911, 1
    %914 = vrot.lane.b32.xlu0 %v913, 96
    %v915 = vpop.permute.xlu0 %914
    %v917 = vsel %vm148, %v915, 0
    %919 = vmatpush.bf16.msra.mxu0 0
    %920 = vmatpush.bf16.msra.mxu0 0
    %921 = vmatpush.bf16.msra.mxu0 0
    %922 = vmatpush.bf16.msra.mxu0 0
    %923 = vmatpush.bf16.msra.mxu0 0
    %924 = vmatpush.bf16.msra.mxu0 0
    %925 = vmatpush.bf16.msra.mxu0 %v222
    %926 = vmatpush.bf16.msra.mxu0 %v221
    %927 = vmatmul.bf16.gmra.mxu0 %v917
    %v928 = vpop.f32.mrf.mxu0
    %v929 = vadd.f32 0.0, %v928
    %v930 = vpop.f32.mrf.mxu0
    %931 = vdwg.mxu0
    %932 = vmatpush.bf16.msra.mxu0 0
    %933 = vmatpush.bf16.msra.mxu0 0
    %934 = vmatpush.bf16.msra.mxu0 0
    %935 = vmatpush.bf16.msra.mxu0 0
    %936 = vmatpush.bf16.msra.mxu0 0
    %937 = vmatpush.bf16.msra.mxu0 0
    %938 = vmatpush.bf16.msra.mxu0 %v250
    %939 = vmatpush.bf16.msra.mxu0 %v249
    %940 = vmatmul.bf16.gmra.mxu0 %v917
    %v941 = vpop.f32.mrf.mxu0
    %v942 = vadd.f32 %v79, %v941
    %v943 = vpop.f32.mrf.mxu0
    %944 = vdwg.mxu0
    %v946 = vrot.slane %v929, 4
    %v948 = vadd.f32 %v170, %v946
    %v949 = vxor.u32 %v948, 2147483648
    %v950 = vmul.f32 %v949, 1.442695
    %v951 = vpow.pop %v950
    %v952 = vadd.f32 %v951, 1.0
    %v953 = vrcp.pop %v952
    %v954 = vmul.f32 %v952, %v953
    %v955 = vsub.f32 1.0, %v954
    %v956 = vmul.f32 %v953, %v955
    %v957 = vadd.f32 %v953, %v956
    %vm958 = vweird.f32 %v952
    %vm959 = vweird.f32 %v953
    %vm960 = vmor %vm958, %vm959
    %v961 = vsel %vm960, %v953, %v957
    %v962 = vand.u32 2147483647, %v952
    %vm963 = vcmp.eq.f32.partialorder %v962, 8.507059e+37
    %v964 = vand.u32 %v952, 2147483648
    %v965 = vor.u32 1.1754944e-38, %v964
    %v966 = vsel %vm963, %v965, %v961
    %v967 = vmul.f32 1.0, %v966
    %v969 = vrot.slane %v942, 4
    %v971 = vmul.f32 %v967, %v969
    %v972 = vadd.f32 %v209, %v971
    %v973 = vtanh.pop %v972
    %v974 = vsub.f32 1.0, %v967
    %976 = vrot.lane.b32.xlu0 %v973, 32
    %v977 = vpop.permute.xlu0 %976
    %v979 = vmul.f32 %v974, %v977
    %v981 = vrot.slane %v910, 6
    %v983 = vmul.f32 %v967, %v981
    %v984 = vadd.f32 %v979, %v983
    %v985 = vpack.c.bf16 %v984, %v984
    %v987 = vrot.slane %v985, 2
    %988 = vrot.lane.b32.xlu0 %v987, 96
    %v989 = vpop.permute.xlu0 %988
    %v991 = vsel %vm148, %v989, 0
    %993 = vmatpush.bf16.msra.mxu0 0
    %994 = vmatpush.bf16.msra.mxu0 0
    %995 = vmatpush.bf16.msra.mxu0 0
    %996 = vmatpush.bf16.msra.mxu0 0
    %997 = vmatpush.bf16.msra.mxu0 0
    %998 = vmatpush.bf16.msra.mxu0 0
    %999 = vmatpush.bf16.msra.mxu0 %v222
    %1000 = vmatpush.bf16.msra.mxu0 %v221
    %1001 = vmatmul.bf16.gmra.mxu0 %v991
    %v1002 = vpop.f32.mrf.mxu0
    %v1003 = vadd.f32 0.0, %v1002
    %v1004 = vpop.f32.mrf.mxu0
    %1005 = vdwg.mxu0
    %1006 = vmatpush.bf16.msra.mxu0 0
    %1007 = vmatpush.bf16.msra.mxu0 0
    %1008 = vmatpush.bf16.msra.mxu0 0
    %1009 = vmatpush.bf16.msra.mxu0 0
    %1010 = vmatpush.bf16.msra.mxu0 0
    %1011 = vmatpush.bf16.msra.mxu0 0
    %1012 = vmatpush.bf16.msra.mxu0 %v250
    %1013 = vmatpush.bf16.msra.mxu0 %v249
    %1014 = vmatmul.bf16.gmra.mxu0 %v991
    %v1015 = vpop.f32.mrf.mxu0
    %v1016 = vadd.f32 %v79, %v1015
    %v1017 = vpop.f32.mrf.mxu0
    %1018 = vdwg.mxu0
    %v1020 = vrot.slane %v1003, 2
    %v1022 = vadd.f32 %v170, %v1020
    %v1023 = vxor.u32 %v1022, 2147483648
    %v1024 = vmul.f32 %v1023, 1.442695
    %v1025 = vpow.pop %v1024
    %v1026 = vadd.f32 %v1025, 1.0
    %v1027 = vrcp.pop %v1026
    %v1028 = vmul.f32 %v1026, %v1027
    %v1029 = vsub.f32 1.0, %v1028
    %v1030 = vmul.f32 %v1027, %v1029
    %v1031 = vadd.f32 %v1027, %v1030
    %vm1032 = vweird.f32 %v1026
    %vm1033 = vweird.f32 %v1027
    %vm1034 = vmor %vm1032, %vm1033
    %v1035 = vsel %vm1034, %v1027, %v1031
    %v1036 = vand.u32 2147483647, %v1026
    %vm1037 = vcmp.eq.f32.partialorder %v1036, 8.507059e+37
    %v1038 = vand.u32 %v1026, 2147483648
    %v1039 = vor.u32 1.1754944e-38, %v1038
    %v1040 = vsel %vm1037, %v1039, %v1035
    %v1041 = vmul.f32 1.0, %v1040
    %v1043 = vrot.slane %v1016, 2
    %v1045 = vmul.f32 %v1041, %v1043
    %v1046 = vadd.f32 %v209, %v1045
    %v1047 = vtanh.pop %v1046
    %v1048 = vsub.f32 1.0, %v1041
    %1050 = vrot.lane.b32.xlu0 %v1047, 32
    %v1051 = vpop.permute.xlu0 %1050
    %v1053 = vmul.f32 %v1048, %v1051
    %v1055 = vrot.slane %v984, 6
    %v1057 = vmul.f32 %v1041, %v1055
    %v1058 = vadd.f32 %v1053, %v1057
    %v1059 = vpack.c.bf16 %v1058, %v1058
    %v1061 = vrot.slane %v1059, 3
    %1062 = vrot.lane.b32.xlu0 %v1061, 96
    %v1063 = vpop.permute.xlu0 %1062
    %v1065 = vsel %vm148, %v1063, 0
    %1067 = vmatpush.bf16.msra.mxu0 0
    %1068 = vmatpush.bf16.msra.mxu0 0
    %1069 = vmatpush.bf16.msra.mxu0 0
    %1070 = vmatpush.bf16.msra.mxu0 0
    %1071 = vmatpush.bf16.msra.mxu0 0
    %1072 = vmatpush.bf16.msra.mxu0 0
    %1073 = vmatpush.bf16.msra.mxu0 %v222
    %1074 = vmatpush.bf16.msra.mxu0 %v221
    %1075 = vmatmul.bf16.gmra.mxu0 %v1065
    %v1076 = vpop.f32.mrf.mxu0
    %v1077 = vadd.f32 0.0, %v1076
    %v1078 = vpop.f32.mrf.mxu0
    %1079 = vdwg.mxu0
    %1080 = vmatpush.bf16.msra.mxu0 0
    %1081 = vmatpush.bf16.msra.mxu0 0
    %1082 = vmatpush.bf16.msra.mxu0 0
    %1083 = vmatpush.bf16.msra.mxu0 0
    %1084 = vmatpush.bf16.msra.mxu0 0
    %1085 = vmatpush.bf16.msra.mxu0 0
    %1086 = vmatpush.bf16.msra.mxu0 %v250
    %1087 = vmatpush.bf16.msra.mxu0 %v249
    %1088 = vmatmul.bf16.gmra.mxu0 %v1065
    %v1089 = vpop.f32.mrf.mxu0
    %v1090 = vadd.f32 %v79, %v1089
    %v1091 = vpop.f32.mrf.mxu0
    %1092 = vdwg.mxu0
    %v1093 = vadd.f32 %v172, %v1077
    %v1094 = vxor.u32 %v1093, 2147483648
    %v1095 = vmul.f32 %v1094, 1.442695
    %v1096 = vpow.pop %v1095
    %v1097 = vadd.f32 %v1096, 1.0
    %v1098 = vrcp.pop %v1097
    %v1099 = vmul.f32 %v1097, %v1098
    %v1100 = vsub.f32 1.0, %v1099
    %v1101 = vmul.f32 %v1098, %v1100
    %v1102 = vadd.f32 %v1098, %v1101
    %vm1103 = vweird.f32 %v1097
    %vm1104 = vweird.f32 %v1098
    %vm1105 = vmor %vm1103, %vm1104
    %v1106 = vsel %vm1105, %v1098, %v1102
    %v1107 = vand.u32 2147483647, %v1097
    %vm1108 = vcmp.eq.f32.partialorder %v1107, 8.507059e+37
    %v1109 = vand.u32 %v1097, 2147483648
    %v1110 = vor.u32 1.1754944e-38, %v1109
    %v1111 = vsel %vm1108, %v1110, %v1106
    %v1112 = vmul.f32 1.0, %v1111
    %v1113 = vmul.f32 %v1112, %v1090
    %v1114 = vadd.f32 %v211, %v1113
    %v1115 = vtanh.pop %v1114
    %v1116 = vsub.f32 1.0, %v1112
    %1118 = vrot.lane.b32.xlu0 %v1115, 32
    %v1119 = vpop.permute.xlu0 %1118
    %v1121 = vmul.f32 %v1116, %v1119
    %v1123 = vrot.slane %v1058, 6
    %v1125 = vmul.f32 %v1112, %v1123
    %v1126 = vadd.f32 %v1121, %v1125
    %v1127 = vpack.c.bf16 %v1126, %v1126
    %1129 = vrot.lane.b32.xlu0 %v1127, 96
    %v1130 = vpop.permute.xlu0 %1129
    %v1132 = vsel %vm148, %v1130, 0
    %1134 = vmatpush.bf16.msra.mxu0 0
    %1135 = vmatpush.bf16.msra.mxu0 0
    %1136 = vmatpush.bf16.msra.mxu0 0
    %1137 = vmatpush.bf16.msra.mxu0 0
    %1138 = vmatpush.bf16.msra.mxu0 0
    %1139 = vmatpush.bf16.msra.mxu0 0
    %1140 = vmatpush.bf16.msra.mxu0 %v222
    %1141 = vmatpush.bf16.msra.mxu0 %v221
    %1142 = vmatmul.bf16.gmra.mxu0 %v1132
    %v1143 = vpop.f32.mrf.mxu0
    %v1144 = vadd.f32 0.0, %v1143
    %v1145 = vpop.f32.mrf.mxu0
    %1146 = vdwg.mxu0
    %1147 = vmatpush.bf16.msra.mxu0 0
    %1148 = vmatpush.bf16.msra.mxu0 0
    %1149 = vmatpush.bf16.msra.mxu0 0
    %1150 = vmatpush.bf16.msra.mxu0 0
    %1151 = vmatpush.bf16.msra.mxu0 0
    %1152 = vmatpush.bf16.msra.mxu0 0
    %1153 = vmatpush.bf16.msra.mxu0 %v250
    %1154 = vmatpush.bf16.msra.mxu0 %v249
    %1155 = vmatmul.bf16.gmra.mxu0 %v1132
    %v1156 = vpop.f32.mrf.mxu0
    %v1157 = vadd.f32 %v79, %v1156
    %v1158 = vpop.f32.mrf.mxu0
    %1159 = vdwg.mxu0
    %v1161 = vrot.slane %v1144, 6
    %v1163 = vadd.f32 %v172, %v1161
    %v1164 = vxor.u32 %v1163, 2147483648
    %v1165 = vmul.f32 %v1164, 1.442695
    %v1166 = vpow.pop %v1165
    %v1167 = vadd.f32 %v1166, 1.0
    %v1168 = vrcp.pop %v1167
    %v1169 = vmul.f32 %v1167, %v1168
    %v1170 = vsub.f32 1.0, %v1169
    %v1171 = vmul.f32 %v1168, %v1170
    %v1172 = vadd.f32 %v1168, %v1171
    %vm1173 = vweird.f32 %v1167
    %vm1174 = vweird.f32 %v1168
    %vm1175 = vmor %vm1173, %vm1174
    %v1176 = vsel %vm1175, %v1168, %v1172
    %v1177 = vand.u32 2147483647, %v1167
    %vm1178 = vcmp.eq.f32.partialorder %v1177, 8.507059e+37
    %v1179 = vand.u32 %v1167, 2147483648
    %v1180 = vor.u32 1.1754944e-38, %v1179
    %v1181 = vsel %vm1178, %v1180, %v1176
    %v1182 = vmul.f32 1.0, %v1181
    %v1184 = vrot.slane %v1157, 6
    %v1186 = vmul.f32 %v1182, %v1184
    %v1187 = vadd.f32 %v211, %v1186
    %v1188 = vtanh.pop %v1187
    %v1189 = vsub.f32 1.0, %v1182
    %1191 = vrot.lane.b32.xlu0 %v1188, 32
    %v1192 = vpop.permute.xlu0 %1191
    %v1194 = vmul.f32 %v1189, %v1192
    %v1196 = vrot.slane %v1126, 6
    %v1198 = vmul.f32 %v1182, %v1196
    %v1199 = vadd.f32 %v1194, %v1198
    %v1200 = vpack.c.bf16 %v1199, %v1199
    %v1202 = vrot.slane %v1200, 1
    %1203 = vrot.lane.b32.xlu0 %v1202, 96
    %v1204 = vpop.permute.xlu0 %1203
    %v1206 = vsel %vm148, %v1204, 0
    %1208 = vmatpush.bf16.msra.mxu0 0
    %1209 = vmatpush.bf16.msra.mxu0 0
    %1210 = vmatpush.bf16.msra.mxu0 0
    %1211 = vmatpush.bf16.msra.mxu0 0
    %1212 = vmatpush.bf16.msra.mxu0 0
    %1213 = vmatpush.bf16.msra.mxu0 0
    %1214 = vmatpush.bf16.msra.mxu0 %v222
    %1215 = vmatpush.bf16.msra.mxu0 %v221
    %1216 = vmatmul.bf16.gmra.mxu0 %v1206
    %v1217 = vpop.f32.mrf.mxu0
    %v1218 = vadd.f32 0.0, %v1217
    %v1219 = vpop.f32.mrf.mxu0
    %1220 = vdwg.mxu0
    %1221 = vmatpush.bf16.msra.mxu0 0
    %1222 = vmatpush.bf16.msra.mxu0 0
    %1223 = vmatpush.bf16.msra.mxu0 0
    %1224 = vmatpush.bf16.msra.mxu0 0
    %1225 = vmatpush.bf16.msra.mxu0 0
    %1226 = vmatpush.bf16.msra.mxu0 0
    %1227 = vmatpush.bf16.msra.mxu0 %v250
    %1228 = vmatpush.bf16.msra.mxu0 %v249
    %1229 = vmatmul.bf16.gmra.mxu0 %v1206
    %v1230 = vpop.f32.mrf.mxu0
    %v1231 = vadd.f32 %v79, %v1230
    %v1232 = vpop.f32.mrf.mxu0
    %1233 = vdwg.mxu0
    %v1235 = vrot.slane %v1218, 4
    %v1237 = vadd.f32 %v172, %v1235
    %v1238 = vxor.u32 %v1237, 2147483648
    %v1239 = vmul.f32 %v1238, 1.442695
    %v1240 = vpow.pop %v1239
    %v1241 = vadd.f32 %v1240, 1.0
    %v1242 = vrcp.pop %v1241
    %v1243 = vmul.f32 %v1241, %v1242
    %v1244 = vsub.f32 1.0, %v1243
    %v1245 = vmul.f32 %v1242, %v1244
    %v1246 = vadd.f32 %v1242, %v1245
    %vm1247 = vweird.f32 %v1241
    %vm1248 = vweird.f32 %v1242
    %vm1249 = vmor %vm1247, %vm1248
    %v1250 = vsel %vm1249, %v1242, %v1246
    %v1251 = vand.u32 2147483647, %v1241
    %vm1252 = vcmp.eq.f32.partialorder %v1251, 8.507059e+37
    %v1253 = vand.u32 %v1241, 2147483648
    %v1254 = vor.u32 1.1754944e-38, %v1253
    %v1255 = vsel %vm1252, %v1254, %v1250
    %v1256 = vmul.f32 1.0, %v1255
    %v1258 = vrot.slane %v1231, 4
    %v1260 = vmul.f32 %v1256, %v1258
    %v1261 = vadd.f32 %v211, %v1260
    %v1262 = vtanh.pop %v1261
    %v1263 = vsub.f32 1.0, %v1256
    %1265 = vrot.lane.b32.xlu0 %v1262, 32
    %v1266 = vpop.permute.xlu0 %1265
    %v1268 = vmul.f32 %v1263, %v1266
    %v1270 = vrot.slane %v1199, 6
    %v1272 = vmul.f32 %v1256, %v1270
    %v1273 = vadd.f32 %v1268, %v1272
    %v1274 = vpack.c.bf16 %v1273, %v1273
    %v1276 = vrot.slane %v1274, 2
    %1277 = vrot.lane.b32.xlu0 %v1276, 96
    %v1278 = vpop.permute.xlu0 %1277
    %v1280 = vsel %vm148, %v1278, 0
    %1282 = vmatpush.bf16.msra.mxu0 0
    %1283 = vmatpush.bf16.msra.mxu0 0
    %1284 = vmatpush.bf16.msra.mxu0 0
    %1285 = vmatpush.bf16.msra.mxu0 0
    %1286 = vmatpush.bf16.msra.mxu0 0
    %1287 = vmatpush.bf16.msra.mxu0 0
    %1288 = vmatpush.bf16.msra.mxu0 %v222
    %1289 = vmatpush.bf16.msra.mxu0 %v221
    %1290 = vmatmul.bf16.gmra.mxu0 %v1280
    %v1291 = vpop.f32.mrf.mxu0
    %v1292 = vadd.f32 0.0, %v1291
    %v1293 = vpop.f32.mrf.mxu0
    %1294 = vdwg.mxu0
    %1295 = vmatpush.bf16.msra.mxu0 0
    %1296 = vmatpush.bf16.msra.mxu0 0
    %1297 = vmatpush.bf16.msra.mxu0 0
    %1298 = vmatpush.bf16.msra.mxu0 0
    %1299 = vmatpush.bf16.msra.mxu0 0
    %1300 = vmatpush.bf16.msra.mxu0 0
    %1301 = vmatpush.bf16.msra.mxu0 %v250
    %1302 = vmatpush.bf16.msra.mxu0 %v249
    %1303 = vmatmul.bf16.gmra.mxu0 %v1280
    %v1304 = vpop.f32.mrf.mxu0
    %v1305 = vadd.f32 %v79, %v1304
    %v1306 = vpop.f32.mrf.mxu0
    %1307 = vdwg.mxu0
    %v1309 = vrot.slane %v1292, 2
    %v1311 = vadd.f32 %v172, %v1309
    %v1312 = vxor.u32 %v1311, 2147483648
    %v1313 = vmul.f32 %v1312, 1.442695
    %v1314 = vpow.pop %v1313
    %v1315 = vadd.f32 %v1314, 1.0
    %v1316 = vrcp.pop %v1315
    %v1317 = vmul.f32 %v1315, %v1316
    %v1318 = vsub.f32 1.0, %v1317
    %v1319 = vmul.f32 %v1316, %v1318
    %v1320 = vadd.f32 %v1316, %v1319
    %vm1321 = vweird.f32 %v1315
    %vm1322 = vweird.f32 %v1316
    %vm1323 = vmor %vm1321, %vm1322
    %v1324 = vsel %vm1323, %v1316, %v1320
    %v1325 = vand.u32 2147483647, %v1315
    %vm1326 = vcmp.eq.f32.partialorder %v1325, 8.507059e+37
    %v1327 = vand.u32 %v1315, 2147483648
    %v1328 = vor.u32 1.1754944e-38, %v1327
    %v1329 = vsel %vm1326, %v1328, %v1324
    %v1330 = vmul.f32 1.0, %v1329
    %v1332 = vrot.slane %v1305, 2
    %v1334 = vmul.f32 %v1330, %v1332
    %v1335 = vadd.f32 %v211, %v1334
    %v1336 = vtanh.pop %v1335
    %v1337 = vsub.f32 1.0, %v1330
    %1339 = vrot.lane.b32.xlu0 %v1336, 32
    %v1340 = vpop.permute.xlu0 %1339
    %v1342 = vmul.f32 %v1337, %v1340
    %v1344 = vrot.slane %v1273, 6
    %v1346 = vmul.f32 %v1330, %v1344
    %v1347 = vadd.f32 %v1342, %v1346
    %vm1348 = vcmask 1041408
    %v1349 = vsel %vm1348, %v296, %v369
    %vm1350 = vcmask 1043456
    %v1351 = vsel %vm1350, %v1349, %v443
    %vm1352 = vcmask 1045504
    %v1353 = vsel %vm1352, %v1351, %v517
    %v1354 = vsel %vm1348, %v585, %v658
    %v1355 = vsel %vm1350, %v1354, %v732
    %v1356 = vsel %vm1352, %v1355, %v806
    %v1357 = vsel %vm1348, %v837, %v910
    %v1358 = vsel %vm1350, %v1357, %v984
    %v1359 = vsel %vm1352, %v1358, %v1058
    %v1360 = vsel %vm1348, %v1126, %v1199
    %v1361 = vsel %vm1350, %v1360, %v1273
    %v1362 = vsel %vm1352, %v1361, %v1347
    %v1363 = vpack.c.bf16 %v1356, %v1353
    %v1364 = vpack.c.bf16 %v1362, %v1359
    %1369 = vrot.lane.b32.xlu0 %v1353, 96
    %v1370 = vpop.permute.xlu0 %1369
    %1371 = vrot.lane.b32.xlu0 %v1356, 96
    %v1372 = vpop.permute.xlu0 %1371
    %1373 = vrot.lane.b32.xlu0 %v1359, 96
    %v1374 = vpop.permute.xlu0 %1373
    %1375 = vrot.lane.b32.xlu0 %v1362, 96
    %v1376 = vpop.permute.xlu0 %1375
    %1381 = vxpose.xlu0.b32.start [1/16] %v1370, 128
    %1382 = vxpose.xlu0.b32.cont [2/16] %v1372, 128
    %1383 = vxpose.xlu0.b32.cont [3/16] %v1374, 128
    %1384 = vxpose.xlu0.b32.cont [4/16] %v1376, 128
    %1385 = vxpose.xlu0.b32.cont [5/16] 0.0, 128
    %1386 = vxpose.xlu0.b32.cont [6/16] 0.0, 128
    %1387 = vxpose.xlu0.b32.cont [7/16] 0.0, 128
    %1388 = vxpose.xlu0.b32.cont [8/16] 0.0, 128
    %1389 = vxpose.xlu0.b32.cont [9/16] 0.0, 128
    %1390 = vxpose.xlu0.b32.cont [10/16] 0.0, 128
    %1391 = vxpose.xlu0.b32.cont [11/16] 0.0, 128
    %1392 = vxpose.xlu0.b32.cont [12/16] 0.0, 128
    %1393 = vxpose.xlu0.b32.cont [13/16] 0.0, 128
    %1394 = vxpose.xlu0.b32.cont [14/16] 0.0, 128
    %1395 = vxpose.xlu0.b32.cont [15/16] 0.0, 128
    %1396 = vxpose.xlu0.b32.end [16/16] 0.0, 128
    %v1397 = vpop.trf.xlu0
    %v1398 = vpop.trf.xlu0
    %v1399 = vpop.trf.xlu0
    %v1400 = vpop.trf.xlu0
    %v1401 = vpop.trf.xlu0
    %v1402 = vpop.trf.xlu0
    %v1403 = vpop.trf.xlu0
    %v1404 = vpop.trf.xlu0
    %v1405 = vpop.trf.xlu0
    %v1406 = vpop.trf.xlu0
    %v1407 = vpop.trf.xlu0
    %v1408 = vpop.trf.xlu0
    %v1409 = vpop.trf.xlu0
    %v1410 = vpop.trf.xlu0
    %v1411 = vpop.trf.xlu0
    %v1412 = vpop.trf.xlu0
    %v1413 = vpack.c.bf16 %v1398, %v1397
    %v1414 = vpack.c.bf16 %v1400, %v1399
    %v1415 = vlaneseq
    %v1416 = vand.u32 %v1415, 127
    %vm1417 = vcmp.eq.s32.totalorder %v1416, 1
    %v1418 = vsel %vm1417, 1, 0
    %v1419 = vcvt.s32.f32 %v1418
    %v1420 = vpack.c.bf16 %v1347, %v1347
    %v1422 = vrot.slane %v1347, 6
    %v1424 = vsel %vm148, %v1419, %v1422
    %v1425 = vpack.c.bf16 %v1424, %v1424
    %v1434 = vunpack.c.l.b16 %v80
    %v1435 = vunpack.c.l.b16 %v81
    %v1436 = vunpack.c.l.b16 %v82
    %v1437 = vunpack.c.l.b16 %v83
    %v1438 = vunpack.c.l.b16 %v84
    %v1439 = vunpack.c.l.b16 %v85
    %v1440 = vunpack.c.l.b16 %v86
    %v1441 = vunpack.c.l.b16 %v87
    %v1442 = vpack.c.b16 %v1435, %v1434
    %v1443 = vpack.c.b16 %v1437, %v1436
    %v1444 = vpack.c.b16 %v1439, %v1438
    %v1445 = vpack.c.b16 %v1441, %v1440
    %vm1450 = vcmask 523264
    %v1452 = vsel %vm1450, %v1425, 0
    %1454 = vmatpush.bf16.msra.mxu0 0
    %1455 = vmatpush.bf16.msra.mxu0 0
    %1456 = vmatpush.bf16.msra.mxu0 0
    %1457 = vmatpush.bf16.msra.mxu0 0
    %1458 = vmatpush.bf16.msra.mxu0 %v1445
    %1459 = vmatpush.bf16.msra.mxu0 %v1444
    %1460 = vmatpush.bf16.msra.mxu0 %v1443
    %1461 = vmatpush.bf16.msra.mxu0 %v1442
    %1462 = vmatmul.bf16.gmra.mxu0 %v1452
    %v1463 = vpop.f32.mrf.mxu0
    %v1464 = vadd.f32 %v96, %v1463
    %v1465 = vpop.f32.mrf.mxu0
    %1466 = vdwg.mxu0
    %v1467 = vxor.u32 %v1464, 2147483648
    %v1468 = vmul.f32 %v1467, 1.442695
    %v1469 = vpow.pop %v1468
    %v1470 = vadd.f32 %v1469, 1.0
    %v1471 = vrcp.pop %v1470
    %v1472 = vmul.f32 %v1470, %v1471
    %v1473 = vsub.f32 1.0, %v1472
    %v1474 = vmul.f32 %v1471, %v1473
    %v1475 = vadd.f32 %v1471, %v1474
    %vm1476 = vweird.f32 %v1470
    %vm1477 = vweird.f32 %v1471
    %vm1478 = vmor %vm1476, %vm1477
    %v1479 = vsel %vm1478, %v1471, %v1475
    %v1480 = vand.u32 2147483647, %v1470
    %vm1481 = vcmp.eq.f32.partialorder %v1480, 8.507059e+37
    %v1482 = vand.u32 %v1470, 2147483648
    %v1483 = vor.u32 1.1754944e-38, %v1482
    %v1484 = vsel %vm1481, %v1483, %v1479
    %v1485 = vmul.f32 1.0, %v1484
    %v1486 = vpack.c.bf16 %v1419, %v1419
    %v1491 = vunpack.c.l.b16 %v88
    %v1492 = vunpack.c.l.b16 %v89
    %v1493 = vunpack.c.l.b16 %v90
    %v1494 = vunpack.c.l.b16 %v91
    %v1495 = vpack.c.b16 %v1492, %v1491
    %v1496 = vpack.c.b16 %v1494, %v1493
    %v1500 = vsel %vm148, %v1486, 0
    %1502 = vmatpush.bf16.msra.mxu0 0
    %1503 = vmatpush.bf16.msra.mxu0 0
    %1504 = vmatpush.bf16.msra.mxu0 0
    %1505 = vmatpush.bf16.msra.mxu0 0
    %1506 = vmatpush.bf16.msra.mxu0 0
    %1507 = vmatpush.bf16.msra.mxu0 0
    %1508 = vmatpush.bf16.msra.mxu0 %v1496
    %1509 = vmatpush.bf16.msra.mxu0 %v1495
    %1510 = vmatmul.bf16.gmra.mxu0 %v1500
    %v1511 = vpop.f32.mrf.mxu0
    %v1512 = vadd.f32 %v97, %v1511
    %v1513 = vpop.f32.mrf.mxu0
    %1514 = vdwg.mxu0
    %v1516 = vrot.slane %v1420, 3
    %1517 = vrot.lane.b32.xlu0 %v1516, 96
    %v1518 = vpop.permute.xlu0 %1517
    %v1523 = vunpack.c.l.b16 %v92
    %v1524 = vunpack.c.l.b16 %v93
    %v1525 = vunpack.c.l.b16 %v94
    %v1526 = vunpack.c.l.b16 %v95
    %v1527 = vpack.c.b16 %v1524, %v1523
    %v1528 = vpack.c.b16 %v1526, %v1525
    %v1532 = vsel %vm148, %v1518, 0
    %1534 = vmatpush.bf16.msra.mxu0 0
    %1535 = vmatpush.bf16.msra.mxu0 0
    %1536 = vmatpush.bf16.msra.mxu0 0
    %1537 = vmatpush.bf16.msra.mxu0 0
    %1538 = vmatpush.bf16.msra.mxu0 0
    %1539 = vmatpush.bf16.msra.mxu0 0
    %1540 = vmatpush.bf16.msra.mxu0 %v1528
    %1541 = vmatpush.bf16.msra.mxu0 %v1527
    %1542 = vmatmul.bf16.gmra.mxu0 %v1532
    %v1543 = vpop.f32.mrf.mxu0
    %v1544 = vadd.f32 %v98, %v1543
    %v1545 = vpop.f32.mrf.mxu0
    %1546 = vdwg.mxu0
    %v1547 = vmul.f32 %v1485, %v1544
    %v1548 = vadd.f32 %v1512, %v1547
    %v1549 = vtanh.pop %v1548
    %v1550 = vsub.f32 1.0, %v1485
    %1552 = vrot.lane.b32.xlu0 %v1549, 32
    %v1553 = vpop.permute.xlu0 %1552
    %v1555 = vmul.f32 %v1550, %v1553
    %v1556 = vmul.f32 %v1485, %v1422
    %v1557 = vadd.f32 %v1555, %v1556
    %v1558 = vpack.c.bf16 %v1557, %v1557
    %1560 = vrot.lane.b32.xlu0 %v1558, 96
    %v1561 = vpop.permute.xlu0 %1560
    %v1563 = vsel %vm148, %v1561, 0
    %1565 = vmatpush.bf16.msra.mxu0 0
    %1566 = vmatpush.bf16.msra.mxu0 0
    %1567 = vmatpush.bf16.msra.mxu0 0
    %1568 = vmatpush.bf16.msra.mxu0 0
    %1569 = vmatpush.bf16.msra.mxu0 0
    %1570 = vmatpush.bf16.msra.mxu0 0
    %1571 = vmatpush.bf16.msra.mxu0 %v1414
    %1572 = vmatpush.bf16.msra.mxu0 %v1413
    %1573 = vmatmul.bf16.gmra.mxu0 %v1563
    %v1574 = vpop.f32.mrf.mxu0
    %v1575 = vadd.f32 %v113, %v1574
    %v1576 = vpop.f32.mrf.mxu0
    %1577 = vdwg.mxu0
    %vm1578 = vcmask 254976
    %v1579 = vsel %vm1578, %v1575, -inf
    %1580 = vmax.xlane.f32.xlu0 %v1579
    %v1581 = vpop.xlane.xlu0 %1580
    %v1582 = vsub.f32 %v1575, %v1581
    %v1583 = vmul.f32 %v1582, 1.442695
    %v1584 = vpow.pop %v1583
    %v1585 = vsel %vm1578, %v1584, 0.0
    %1586 = vadd.xlane.f32.xlu0 %v1585
    %v1587 = vpop.xlane.xlu0 %1586
    %v1588 = vrcp.pop %v1587
    %v1589 = vmul.f32 %v1584, %v1588
    %v1590 = vpack.c.bf16 %v1589, %v1589
    %1593 = vrot.lane.b32.xlu0 %v1363, 96
    %v1594 = vpop.permute.xlu0 %1593
    %1595 = vrot.lane.b32.xlu0 %v1364, 96
    %v1596 = vpop.permute.xlu0 %1595
    %v1600 = vsel %vm148, %v1590, 0
    %1602 = vmatpush.bf16.msra.mxu0 0
    %1603 = vmatpush.bf16.msra.mxu0 0
    %1604 = vmatpush.bf16.msra.mxu0 0
    %1605 = vmatpush.bf16.msra.mxu0 0
    %1606 = vmatpush.bf16.msra.mxu0 0
    %1607 = vmatpush.bf16.msra.mxu0 0
    %1608 = vmatpush.bf16.msra.mxu0 %v1596
    %1609 = vmatpush.bf16.msra.mxu0 %v1594
    %1610 = vmatmul.bf16.gmra.mxu0 %v1600
    %v1611 = vpop.f32.mrf.mxu0
    %v1612 = vadd.f32 0.0, %v1611
    %v1613 = vpop.f32.mrf.mxu0
    %1614 = vdwg.mxu0
    %v1615 = vpack.c.bf16 %v1612, %v1612
    %v1620 = vunpack.c.l.b16 %v103
    %v1621 = vunpack.c.l.b16 %v104
    %v1622 = vunpack.c.l.b16 %v105
    %v1623 = vunpack.c.l.b16 %v106
    %v1624 = vpack.c.b16 %v1621, %v1620
    %v1625 = vpack.c.b16 %v1623, %v1622
    %1628 = vmatpush.bf16.msra.mxu0 0
    %1629 = vmatpush.bf16.msra.mxu0 0
    %1630 = vmatpush.bf16.msra.mxu0 0
    %1631 = vmatpush.bf16.msra.mxu0 0
    %1632 = vmatpush.bf16.msra.mxu0 0
    %1633 = vmatpush.bf16.msra.mxu0 0
    %1634 = vmatpush.bf16.msra.mxu0 %v1625
    %1635 = vmatpush.bf16.msra.mxu0 %v1624
    %1636 = vmatmul.bf16.gmra.mxu0 %v1563
    %v1637 = vpop.f32.mrf.mxu0
    %v1638 = vadd.f32 0.0, %v1637
    %v1639 = vpop.f32.mrf.mxu0
    %1640 = vdwg.mxu0
    %v1645 = vunpack.c.l.b16 %v99
    %v1646 = vunpack.c.l.b16 %v100
    %v1647 = vunpack.c.l.b16 %v101
    %v1648 = vunpack.c.l.b16 %v102
    %v1649 = vpack.c.b16 %v1646, %v1645
    %v1650 = vpack.c.b16 %v1648, %v1647
    %v1654 = vsel %vm148, %v1615, 0
    %1656 = vmatpush.bf16.msra.mxu0 0
    %1657 = vmatpush.bf16.msra.mxu0 0
    %1658 = vmatpush.bf16.msra.mxu0 0
    %1659 = vmatpush.bf16.msra.mxu0 0
    %1660 = vmatpush.bf16.msra.mxu0 0
    %1661 = vmatpush.bf16.msra.mxu0 0
    %1662 = vmatpush.bf16.msra.mxu0 %v1650
    %1663 = vmatpush.bf16.msra.mxu0 %v1649
    %1664 = vmatmul.bf16.gmra.mxu0 %v1654
    %v1665 = vpop.f32.mrf.mxu0
    %v1666 = vadd.f32 %v1638, %v1665
    %v1667 = vpop.f32.mrf.mxu0
    %1668 = vdwg.mxu0
    %v1669 = vadd.f32 %v1666, %v107
    %v1670 = vtanh.pop %v1669
    %v1671 = vpack.c.bf16 %v1670, %v1670
    %v1676 = vunpack.c.l.b16 %v108
    %v1677 = vunpack.c.l.b16 %v109
    %v1678 = vunpack.c.l.b16 %v110
    %v1679 = vunpack.c.l.b16 %v111
    %v1680 = vpack.c.b16 %v1677, %v1676
    %v1681 = vpack.c.b16 %v1679, %v1678
    %v1685 = vsel %vm148, %v1671, 0
    %1687 = vmatpush.bf16.msra.mxu0 0
    %1688 = vmatpush.bf16.msra.mxu0 0
    %1689 = vmatpush.bf16.msra.mxu0 0
    %1690 = vmatpush.bf16.msra.mxu0 0
    %1691 = vmatpush.bf16.msra.mxu0 0
    %1692 = vmatpush.bf16.msra.mxu0 0
    %1693 = vmatpush.bf16.msra.mxu0 %v1681
    %1694 = vmatpush.bf16.msra.mxu0 %v1680
    %1695 = vmatmul.bf16.gmra.mxu0 %v1685
    %v1696 = vpop.f32.mrf.mxu0
    %v1697 = vadd.f32 %v112, %v1696
    %v1698 = vpop.f32.mrf.mxu0
    %1699 = vdwg.mxu0
    %v1700 = vsel %vm1578, %v1697, -inf
    %1701 = vmax.xlane.f32.xlu0 %v1700
    %v1702 = vpop.xlane.xlu0 %1701
    %vm1703 = vcmp.ge.f32.partialorder %v1697, %v1702
    %v1704 = vsel %vm1703, %v1416, 32
    %v1705 = vsel %vm1578, %v1704, 2147483647
    %v1706 = vand.u32 %v1705, 65535
    %v1707 = vshra.s32 %v1705, 16
    %v1708 = vcvt.s32.f32 %v1706
    %v1709 = vcvt.s32.f32 %v1707
    %1710 = vmin.xlane.f32.xlu0 %v1709
    %v1711 = vpop.xlane.xlu0 %1710
    %vm1712 = vcmp.eq.f32.partialorder %v1709, %v1711
    %v1713 = vsel %vm1712, %v1708, inf
    %1714 = vmin.xlane.f32.xlu0 %v1713
    %v1715 = vpop.xlane.xlu0 %1714
    %v1716 = vcvt.f32.s32 %v1715
    %v1717 = vcvt.f32.s32 %v1711
    %v1718 = vshll.u32 %v1717, 16
    %v1719 = vadd.s32 %v1718, %v1716
    %v1720 = vsub.f32 %v1697, %v1702
    %v1721 = vmul.f32 %v1720, 1.442695
    %v1722 = vpow.pop %v1721
    %v1723 = vsel %vm1578, %v1722, 0.0
    %1724 = vadd.xlane.f32.xlu0 %v1723
    %v1725 = vpop.xlane.xlu0 %1724
    %v1726 = vlog2.pop %v1725
    %v1727 = vmul.f32 %v1726, 0.6931472
    %v1728 = vadd.f32 %v1727, %v1702
    %v1729 = vsub.f32 %v1697, %v1728
    %vm1730 = vcmp.eq.s32.totalorder %v1416, %v1719
    %v1731 = vsel %vm1730, 1, 0
    %v1732 = vcvt.s32.f32 %v1731
    %v1733 = vsel %vm148, %v1732, %v1557
    %v1734 = vpack.c.bf16 %v1733, %v1733
    %v1736 = vsel %vm1450, %v1734, 0
    %1738 = vmatpush.bf16.msra.mxu0 0
    %1739 = vmatpush.bf16.msra.mxu0 0
    %1740 = vmatpush.bf16.msra.mxu0 0
    %1741 = vmatpush.bf16.msra.mxu0 0
    %1742 = vmatpush.bf16.msra.mxu0 %v1445
    %1743 = vmatpush.bf16.msra.mxu0 %v1444
    %1744 = vmatpush.bf16.msra.mxu0 %v1443
    %1745 = vmatpush.bf16.msra.mxu0 %v1442
    %1746 = vmatmul.bf16.gmra.mxu0 %v1736
    %v1747 = vpop.f32.mrf.mxu0
    %v1748 = vadd.f32 %v96, %v1747
    %v1749 = vpop.f32.mrf.mxu0
    %1750 = vdwg.mxu0
    %v1751 = vxor.u32 %v1748, 2147483648
    %v1752 = vmul.f32 %v1751, 1.442695
    %v1753 = vpow.pop %v1752
    %v1754 = vadd.f32 %v1753, 1.0
    %v1755 = vrcp.pop %v1754
    %v1756 = vmul.f32 %v1754, %v1755
    %v1757 = vsub.f32 1.0, %v1756
    %v1758 = vmul.f32 %v1755, %v1757
    %v1759 = vadd.f32 %v1755, %v1758
    %vm1760 = vweird.f32 %v1754
    %vm1761 = vweird.f32 %v1755
    %vm1762 = vmor %vm1760, %vm1761
    %v1763 = vsel %vm1762, %v1755, %v1759
    %v1764 = vand.u32 2147483647, %v1754
    %vm1765 = vcmp.eq.f32.partialorder %v1764, 8.507059e+37
    %v1766 = vand.u32 %v1754, 2147483648
    %v1767 = vor.u32 1.1754944e-38, %v1766
    %v1768 = vsel %vm1765, %v1767, %v1763
    %v1769 = vmul.f32 1.0, %v1768
    %v1770 = vpack.c.bf16 %v1732, %v1732
    %v1772 = vsel %vm148, %v1770, 0
    %1774 = vmatpush.bf16.msra.mxu0 0
    %1775 = vmatpush.bf16.msra.mxu0 0
    %1776 = vmatpush.bf16.msra.mxu0 0
    %1777 = vmatpush.bf16.msra.mxu0 0
    %1778 = vmatpush.bf16.msra.mxu0 0
    %1779 = vmatpush.bf16.msra.mxu0 0
    %1780 = vmatpush.bf16.msra.mxu0 %v1496
    %1781 = vmatpush.bf16.msra.mxu0 %v1495
    %1782 = vmatmul.bf16.gmra.mxu0 %v1772
    %v1783 = vpop.f32.mrf.mxu0
    %v1784 = vadd.f32 %v97, %v1783
    %v1785 = vpop.f32.mrf.mxu0
    %1786 = vdwg.mxu0
    %1787 = vmatpush.bf16.msra.mxu0 0
    %1788 = vmatpush.bf16.msra.mxu0 0
    %1789 = vmatpush.bf16.msra.mxu0 0
    %1790 = vmatpush.bf16.msra.mxu0 0
    %1791 = vmatpush.bf16.msra.mxu0 0
    %1792 = vmatpush.bf16.msra.mxu0 0
    %1793 = vmatpush.bf16.msra.mxu0 %v1528
    %1794 = vmatpush.bf16.msra.mxu0 %v1527
    %1795 = vmatmul.bf16.gmra.mxu0 %v1563
    %v1796 = vpop.f32.mrf.mxu0
    %v1797 = vadd.f32 %v98, %v1796
    %v1798 = vpop.f32.mrf.mxu0
    %1799 = vdwg.mxu0
    %v1800 = vmul.f32 %v1769, %v1797
    %v1801 = vadd.f32 %v1784, %v1800
    %v1802 = vtanh.pop %v1801
    %v1803 = vsub.f32 1.0, %v1769
    %1805 = vrot.lane.b32.xlu0 %v1802, 32
    %v1806 = vpop.permute.xlu0 %1805
    %v1808 = vmul.f32 %v1803, %v1806
    %v1809 = vmul.f32 %v1769, %v1557
    %v1810 = vadd.f32 %v1808, %v1809
    %v1811 = vpack.c.bf16 %v1810, %v1810
    %1813 = vrot.lane.b32.xlu0 %v1811, 96
    %v1814 = vpop.permute.xlu0 %1813
    %v1816 = vsel %vm148, %v1814, 0
    %1818 = vmatpush.bf16.msra.mxu0 0
    %1819 = vmatpush.bf16.msra.mxu0 0
    %1820 = vmatpush.bf16.msra.mxu0 0
    %1821 = vmatpush.bf16.msra.mxu0 0
    %1822 = vmatpush.bf16.msra.mxu0 0
    %1823 = vmatpush.bf16.msra.mxu0 0
    %1824 = vmatpush.bf16.msra.mxu0 %v1414
    %1825 = vmatpush.bf16.msra.mxu0 %v1413
    %1826 = vmatmul.bf16.gmra.mxu0 %v1816
    %v1827 = vpop.f32.mrf.mxu0
    %v1828 = vadd.f32 %v113, %v1827
    %v1829 = vpop.f32.mrf.mxu0
    %1830 = vdwg.mxu0
    %v1831 = vsel %vm1578, %v1828, -inf
    %1832 = vmax.xlane.f32.xlu0 %v1831
    %v1833 = vpop.xlane.xlu0 %1832
    %v1834 = vsub.f32 %v1828, %v1833
    %v1835 = vmul.f32 %v1834, 1.442695
    %v1836 = vpow.pop %v1835
    %v1837 = vsel %vm1578, %v1836, 0.0
    %1838 = vadd.xlane.f32.xlu0 %v1837
    %v1839 = vpop.xlane.xlu0 %1838
    %v1840 = vrcp.pop %v1839
    %v1841 = vmul.f32 %v1836, %v1840
    %v1842 = vpack.c.bf16 %v1841, %v1841
    %v1844 = vsel %vm148, %v1842, 0
    %1846 = vmatpush.bf16.msra.mxu0 0
    %1847 = vmatpush.bf16.msra.mxu0 0
    %1848 = vmatpush.bf16.msra.mxu0 0
    %1849 = vmatpush.bf16.msra.mxu0 0
    %1850 = vmatpush.bf16.msra.mxu0 0
    %1851 = vmatpush.bf16.msra.mxu0 0
    %1852 = vmatpush.bf16.msra.mxu0 %v1596
    %1853 = vmatpush.bf16.msra.mxu0 %v1594
    %1854 = vmatmul.bf16.gmra.mxu0 %v1844
    %v1855 = vpop.f32.mrf.mxu0
    %v1856 = vadd.f32 0.0, %v1855
    %v1857 = vpop.f32.mrf.mxu0
    %1858 = vdwg.mxu0
    %v1859 = vpack.c.bf16 %v1856, %v1856
    %1860 = vmatpush.bf16.msra.mxu0 0
    %1861 = vmatpush.bf16.msra.mxu0 0
    %1862 = vmatpush.bf16.msra.mxu0 0
    %1863 = vmatpush.bf16.msra.mxu0 0
    %1864 = vmatpush.bf16.msra.mxu0 0
    %1865 = vmatpush.bf16.msra.mxu0 0
    %1866 = vmatpush.bf16.msra.mxu0 %v1625
    %1867 = vmatpush.bf16.msra.mxu0 %v1624
    %1868 = vmatmul.bf16.gmra.mxu0 %v1816
    %v1869 = vpop.f32.mrf.mxu0
    %v1870 = vadd.f32 0.0, %v1869
    %v1871 = vpop.f32.mrf.mxu0
    %1872 = vdwg.mxu0
    %v1874 = vsel %vm148, %v1859, 0
    %1876 = vmatpush.bf16.msra.mxu0 0
    %1877 = vmatpush.bf16.msra.mxu0 0
    %1878 = vmatpush.bf16.msra.mxu0 0
    %1879 = vmatpush.bf16.msra.mxu0 0
    %1880 = vmatpush.bf16.msra.mxu0 0
    %1881 = vmatpush.bf16.msra.mxu0 0
    %1882 = vmatpush.bf16.msra.mxu0 %v1650
    %1883 = vmatpush.bf16.msra.mxu0 %v1649
    %1884 = vmatmul.bf16.gmra.mxu0 %v1874
    %v1885 = vpop.f32.mrf.mxu0
    %v1886 = vadd.f32 %v1870, %v1885
    %v1887 = vpop.f32.mrf.mxu0
    %1888 = vdwg.mxu0
    %v1889 = vadd.f32 %v1886, %v107
    %v1890 = vtanh.pop %v1889
    %v1891 = vpack.c.bf16 %v1890, %v1890
    %v1893 = vsel %vm148, %v1891, 0
    %1895 = vmatpush.bf16.msra.mxu0 0
    %1896 = vmatpush.bf16.msra.mxu0 0
    %1897 = vmatpush.bf16.msra.mxu0 0
    %1898 = vmatpush.bf16.msra.mxu0 0
    %1899 = vmatpush.bf16.msra.mxu0 0
    %1900 = vmatpush.bf16.msra.mxu0 0
    %1901 = vmatpush.bf16.msra.mxu0 %v1681
    %1902 = vmatpush.bf16.msra.mxu0 %v1680
    %1903 = vmatmul.bf16.gmra.mxu0 %v1893
    %v1904 = vpop.f32.mrf.mxu0
    %v1905 = vadd.f32 %v112, %v1904
    %v1906 = vpop.f32.mrf.mxu0
    %1907 = vdwg.mxu0
    %v1908 = vsel %vm1578, %v1905, -inf
    %1909 = vmax.xlane.f32.xlu0 %v1908
    %v1910 = vpop.xlane.xlu0 %1909
    %vm1911 = vcmp.ge.f32.partialorder %v1905, %v1910
    %v1912 = vsel %vm1911, %v1416, 32
    %v1913 = vsel %vm1578, %v1912, 2147483647
    %v1914 = vand.u32 %v1913, 65535
    %v1915 = vshra.s32 %v1913, 16
    %v1916 = vcvt.s32.f32 %v1914
    %v1917 = vcvt.s32.f32 %v1915
    %1918 = vmin.xlane.f32.xlu0 %v1917
    %v1919 = vpop.xlane.xlu0 %1918
    %vm1920 = vcmp.eq.f32.partialorder %v1917, %v1919
    %v1921 = vsel %vm1920, %v1916, inf
    %1922 = vmin.xlane.f32.xlu0 %v1921
    %v1923 = vpop.xlane.xlu0 %1922
    %v1924 = vcvt.f32.s32 %v1923
    %v1925 = vcvt.f32.s32 %v1919
    %v1926 = vshll.u32 %v1925, 16
    %v1927 = vadd.s32 %v1926, %v1924
    %v1928 = vsub.f32 %v1905, %v1910
    %v1929 = vmul.f32 %v1928, 1.442695
    %v1930 = vpow.pop %v1929
    %v1931 = vsel %vm1578, %v1930, 0.0
    %1932 = vadd.xlane.f32.xlu0 %v1931
    %v1933 = vpop.xlane.xlu0 %1932
    %v1934 = vlog2.pop %v1933
    %v1935 = vmul.f32 %v1934, 0.6931472
    %v1936 = vadd.f32 %v1935, %v1910
    %v1937 = vsub.f32 %v1905, %v1936
    %vm1938 = vcmp.eq.s32.totalorder %v1416, %v1927
    %v1939 = vsel %vm1938, 1, 0
    %v1940 = vcvt.s32.f32 %v1939
    %v1941 = vsel %vm148, %v1940, %v1810
    %v1942 = vpack.c.bf16 %v1941, %v1941
    %v1944 = vsel %vm1450, %v1942, 0
    %1946 = vmatpush.bf16.msra.mxu0 0
    %1947 = vmatpush.bf16.msra.mxu0 0
    %1948 = vmatpush.bf16.msra.mxu0 0
    %1949 = vmatpush.bf16.msra.mxu0 0
    %1950 = vmatpush.bf16.msra.mxu0 %v1445
    %1951 = vmatpush.bf16.msra.mxu0 %v1444
    %1952 = vmatpush.bf16.msra.mxu0 %v1443
    %1953 = vmatpush.bf16.msra.mxu0 %v1442
    %1954 = vmatmul.bf16.gmra.mxu0 %v1944
    %v1955 = vpop.f32.mrf.mxu0
    %v1956 = vadd.f32 %v96, %v1955
    %v1957 = vpop.f32.mrf.mxu0
    %1958 = vdwg.mxu0
    %v1959 = vxor.u32 %v1956, 2147483648
    %v1960 = vmul.f32 %v1959, 1.442695
    %v1961 = vpow.pop %v1960
    %v1962 = vadd.f32 %v1961, 1.0
    %v1963 = vrcp.pop %v1962
    %v1964 = vmul.f32 %v1962, %v1963
    %v1965 = vsub.f32 1.0, %v1964
    %v1966 = vmul.f32 %v1963, %v1965
    %v1967 = vadd.f32 %v1963, %v1966
    %vm1968 = vweird.f32 %v1962
    %vm1969 = vweird.f32 %v1963
    %vm1970 = vmor %vm1968, %vm1969
    %v1971 = vsel %vm1970, %v1963, %v1967
    %v1972 = vand.u32 2147483647, %v1962
    %vm1973 = vcmp.eq.f32.partialorder %v1972, 8.507059e+37
    %v1974 = vand.u32 %v1962, 2147483648
    %v1975 = vor.u32 1.1754944e-38, %v1974
    %v1976 = vsel %vm1973, %v1975, %v1971
    %v1977 = vmul.f32 1.0, %v1976
    %v1978 = vpack.c.bf16 %v1940, %v1940
    %v1980 = vsel %vm148, %v1978, 0
    %1982 = vmatpush.bf16.msra.mxu0 0
    %1983 = vmatpush.bf16.msra.mxu0 0
    %1984 = vmatpush.bf16.msra.mxu0 0
    %1985 = vmatpush.bf16.msra.mxu0 0
    %1986 = vmatpush.bf16.msra.mxu0 0
    %1987 = vmatpush.bf16.msra.mxu0 0
    %1988 = vmatpush.bf16.msra.mxu0 %v1496
    %1989 = vmatpush.bf16.msra.mxu0 %v1495
    %1990 = vmatmul.bf16.gmra.mxu0 %v1980
    %v1991 = vpop.f32.mrf.mxu0
    %v1992 = vadd.f32 %v97, %v1991
    %v1993 = vpop.f32.mrf.mxu0
    %1994 = vdwg.mxu0
    %1995 = vmatpush.bf16.msra.mxu0 0
    %1996 = vmatpush.bf16.msra.mxu0 0
    %1997 = vmatpush.bf16.msra.mxu0 0
    %1998 = vmatpush.bf16.msra.mxu0 0
    %1999 = vmatpush.bf16.msra.mxu0 0
    %2000 = vmatpush.bf16.msra.mxu0 0
    %2001 = vmatpush.bf16.msra.mxu0 %v1528
    %2002 = vmatpush.bf16.msra.mxu0 %v1527
    %2003 = vmatmul.bf16.gmra.mxu0 %v1816
    %v2004 = vpop.f32.mrf.mxu0
    %v2005 = vadd.f32 %v98, %v2004
    %v2006 = vpop.f32.mrf.mxu0
    %2007 = vdwg.mxu0
    %v2008 = vmul.f32 %v1977, %v2005
    %v2009 = vadd.f32 %v1992, %v2008
    %v2010 = vtanh.pop %v2009
    %v2011 = vsub.f32 1.0, %v1977
    %2013 = vrot.lane.b32.xlu0 %v2010, 32
    %v2014 = vpop.permute.xlu0 %2013
    %v2016 = vmul.f32 %v2011, %v2014
    %v2017 = vmul.f32 %v1977, %v1810
    %v2018 = vadd.f32 %v2016, %v2017
    %v2019 = vpack.c.bf16 %v2018, %v2018
    %2021 = vrot.lane.b32.xlu0 %v2019, 96
    %v2022 = vpop.permute.xlu0 %2021
    %v2024 = vsel %vm148, %v2022, 0
    %2026 = vmatpush.bf16.msra.mxu0 0
    %2027 = vmatpush.bf16.msra.mxu0 0
    %2028 = vmatpush.bf16.msra.mxu0 0
    %2029 = vmatpush.bf16.msra.mxu0 0
    %2030 = vmatpush.bf16.msra.mxu0 0
    %2031 = vmatpush.bf16.msra.mxu0 0
    %2032 = vmatpush.bf16.msra.mxu0 %v1414
    %2033 = vmatpush.bf16.msra.mxu0 %v1413
    %2034 = vmatmul.bf16.gmra.mxu0 %v2024
    %v2035 = vpop.f32.mrf.mxu0
    %v2036 = vadd.f32 %v113, %v2035
    %v2037 = vpop.f32.mrf.mxu0
    %2038 = vdwg.mxu0
    %v2039 = vsel %vm1578, %v2036, -inf
    %2040 = vmax.xlane.f32.xlu0 %v2039
    %v2041 = vpop.xlane.xlu0 %2040
    %v2042 = vsub.f32 %v2036, %v2041
    %v2043 = vmul.f32 %v2042, 1.442695
    %v2044 = vpow.pop %v2043
    %v2045 = vsel %vm1578, %v2044, 0.0
    %2046 = vadd.xlane.f32.xlu0 %v2045
    %v2047 = vpop.xlane.xlu0 %2046
    %v2048 = vrcp.pop %v2047
    %v2049 = vmul.f32 %v2044, %v2048
    %v2050 = vpack.c.bf16 %v2049, %v2049
    %v2052 = vsel %vm148, %v2050, 0
    %2054 = vmatpush.bf16.msra.mxu0 0
    %2055 = vmatpush.bf16.msra.mxu0 0
    %2056 = vmatpush.bf16.msra.mxu0 0
    %2057 = vmatpush.bf16.msra.mxu0 0
    %2058 = vmatpush.bf16.msra.mxu0 0
    %2059 = vmatpush.bf16.msra.mxu0 0
    %2060 = vmatpush.bf16.msra.mxu0 %v1596
    %2061 = vmatpush.bf16.msra.mxu0 %v1594
    %2062 = vmatmul.bf16.gmra.mxu0 %v2052
    %v2063 = vpop.f32.mrf.mxu0
    %v2064 = vadd.f32 0.0, %v2063
    %v2065 = vpop.f32.mrf.mxu0
    %2066 = vdwg.mxu0
    %v2067 = vpack.c.bf16 %v2064, %v2064
    %2068 = vmatpush.bf16.msra.mxu0 0
    %2069 = vmatpush.bf16.msra.mxu0 0
    %2070 = vmatpush.bf16.msra.mxu0 0
    %2071 = vmatpush.bf16.msra.mxu0 0
    %2072 = vmatpush.bf16.msra.mxu0 0
    %2073 = vmatpush.bf16.msra.mxu0 0
    %2074 = vmatpush.bf16.msra.mxu0 %v1625
    %2075 = vmatpush.bf16.msra.mxu0 %v1624
    %2076 = vmatmul.bf16.gmra.mxu0 %v2024
    %v2077 = vpop.f32.mrf.mxu0
    %v2078 = vadd.f32 0.0, %v2077
    %v2079 = vpop.f32.mrf.mxu0
    %2080 = vdwg.mxu0
    %v2082 = vsel %vm148, %v2067, 0
    %2084 = vmatpush.bf16.msra.mxu0 0
    %2085 = vmatpush.bf16.msra.mxu0 0
    %2086 = vmatpush.bf16.msra.mxu0 0
    %2087 = vmatpush.bf16.msra.mxu0 0
    %2088 = vmatpush.bf16.msra.mxu0 0
    %2089 = vmatpush.bf16.msra.mxu0 0
    %2090 = vmatpush.bf16.msra.mxu0 %v1650
    %2091 = vmatpush.bf16.msra.mxu0 %v1649
    %2092 = vmatmul.bf16.gmra.mxu0 %v2082
    %v2093 = vpop.f32.mrf.mxu0
    %v2094 = vadd.f32 %v2078, %v2093
    %v2095 = vpop.f32.mrf.mxu0
    %2096 = vdwg.mxu0
    %v2097 = vadd.f32 %v2094, %v107
    %v2098 = vtanh.pop %v2097
    %v2099 = vpack.c.bf16 %v2098, %v2098
    %v2101 = vsel %vm148, %v2099, 0
    %2103 = vmatpush.bf16.msra.mxu0 0
    %2104 = vmatpush.bf16.msra.mxu0 0
    %2105 = vmatpush.bf16.msra.mxu0 0
    %2106 = vmatpush.bf16.msra.mxu0 0
    %2107 = vmatpush.bf16.msra.mxu0 0
    %2108 = vmatpush.bf16.msra.mxu0 0
    %2109 = vmatpush.bf16.msra.mxu0 %v1681
    %2110 = vmatpush.bf16.msra.mxu0 %v1680
    %2111 = vmatmul.bf16.gmra.mxu0 %v2101
    %v2112 = vpop.f32.mrf.mxu0
    %v2113 = vadd.f32 %v112, %v2112
    %v2114 = vpop.f32.mrf.mxu0
    %2115 = vdwg.mxu0
    %v2116 = vsel %vm1578, %v2113, -inf
    %2117 = vmax.xlane.f32.xlu0 %v2116
    %v2118 = vpop.xlane.xlu0 %2117
    %vm2119 = vcmp.ge.f32.partialorder %v2113, %v2118
    %v2120 = vsel %vm2119, %v1416, 32
    %v2121 = vsel %vm1578, %v2120, 2147483647
    %v2122 = vand.u32 %v2121, 65535
    %v2123 = vshra.s32 %v2121, 16
    %v2124 = vcvt.s32.f32 %v2122
    %v2125 = vcvt.s32.f32 %v2123
    %2126 = vmin.xlane.f32.xlu0 %v2125
    %v2127 = vpop.xlane.xlu0 %2126
    %vm2128 = vcmp.eq.f32.partialorder %v2125, %v2127
    %v2129 = vsel %vm2128, %v2124, inf
    %2130 = vmin.xlane.f32.xlu0 %v2129
    %v2131 = vpop.xlane.xlu0 %2130
    %v2132 = vcvt.f32.s32 %v2131
    %v2133 = vcvt.f32.s32 %v2127
    %v2134 = vshll.u32 %v2133, 16
    %v2135 = vadd.s32 %v2134, %v2132
    %v2136 = vsub.f32 %v2113, %v2118
    %v2137 = vmul.f32 %v2136, 1.442695
    %v2138 = vpow.pop %v2137
    %v2139 = vsel %vm1578, %v2138, 0.0
    %2140 = vadd.xlane.f32.xlu0 %v2139
    %v2141 = vpop.xlane.xlu0 %2140
    %v2142 = vlog2.pop %v2141
    %v2143 = vmul.f32 %v2142, 0.6931472
    %v2144 = vadd.f32 %v2143, %v2118
    %v2145 = vsub.f32 %v2113, %v2144
    %vm2146 = vcmp.eq.s32.totalorder %v1416, %v2135
    %v2147 = vsel %vm2146, 1, 0
    %v2148 = vcvt.s32.f32 %v2147
    %v2149 = vsel %vm148, %v2148, %v2018
    %v2150 = vpack.c.bf16 %v2149, %v2149
    %v2152 = vsel %vm1450, %v2150, 0
    %2154 = vmatpush.bf16.msra.mxu0 0
    %2155 = vmatpush.bf16.msra.mxu0 0
    %2156 = vmatpush.bf16.msra.mxu0 0
    %2157 = vmatpush.bf16.msra.mxu0 0
    %2158 = vmatpush.bf16.msra.mxu0 %v1445
    %2159 = vmatpush.bf16.msra.mxu0 %v1444
    %2160 = vmatpush.bf16.msra.mxu0 %v1443
    %2161 = vmatpush.bf16.msra.mxu0 %v1442
    %2162 = vmatmul.bf16.gmra.mxu0 %v2152
    %v2163 = vpop.f32.mrf.mxu0
    %v2164 = vadd.f32 %v96, %v2163
    %v2165 = vpop.f32.mrf.mxu0
    %2166 = vdwg.mxu0
    %v2167 = vxor.u32 %v2164, 2147483648
    %v2168 = vmul.f32 %v2167, 1.442695
    %v2169 = vpow.pop %v2168
    %v2170 = vadd.f32 %v2169, 1.0
    %v2171 = vrcp.pop %v2170
    %v2172 = vmul.f32 %v2170, %v2171
    %v2173 = vsub.f32 1.0, %v2172
    %v2174 = vmul.f32 %v2171, %v2173
    %v2175 = vadd.f32 %v2171, %v2174
    %vm2176 = vweird.f32 %v2170
    %vm2177 = vweird.f32 %v2171
    %vm2178 = vmor %vm2176, %vm2177
    %v2179 = vsel %vm2178, %v2171, %v2175
    %v2180 = vand.u32 2147483647, %v2170
    %vm2181 = vcmp.eq.f32.partialorder %v2180, 8.507059e+37
    %v2182 = vand.u32 %v2170, 2147483648
    %v2183 = vor.u32 1.1754944e-38, %v2182
    %v2184 = vsel %vm2181, %v2183, %v2179
    %v2185 = vmul.f32 1.0, %v2184
    %v2186 = vpack.c.bf16 %v2148, %v2148
    %v2188 = vsel %vm148, %v2186, 0
    %2190 = vmatpush.bf16.msra.mxu0 0
    %2191 = vmatpush.bf16.msra.mxu0 0
    %2192 = vmatpush.bf16.msra.mxu0 0
    %2193 = vmatpush.bf16.msra.mxu0 0
    %2194 = vmatpush.bf16.msra.mxu0 0
    %2195 = vmatpush.bf16.msra.mxu0 0
    %2196 = vmatpush.bf16.msra.mxu0 %v1496
    %2197 = vmatpush.bf16.msra.mxu0 %v1495
    %2198 = vmatmul.bf16.gmra.mxu0 %v2188
    %v2199 = vpop.f32.mrf.mxu0
    %v2200 = vadd.f32 %v97, %v2199
    %v2201 = vpop.f32.mrf.mxu0
    %2202 = vdwg.mxu0
    %2203 = vmatpush.bf16.msra.mxu0 0
    %2204 = vmatpush.bf16.msra.mxu0 0
    %2205 = vmatpush.bf16.msra.mxu0 0
    %2206 = vmatpush.bf16.msra.mxu0 0
    %2207 = vmatpush.bf16.msra.mxu0 0
    %2208 = vmatpush.bf16.msra.mxu0 0
    %2209 = vmatpush.bf16.msra.mxu0 %v1528
    %2210 = vmatpush.bf16.msra.mxu0 %v1527
    %2211 = vmatmul.bf16.gmra.mxu0 %v2024
    %v2212 = vpop.f32.mrf.mxu0
    %v2213 = vadd.f32 %v98, %v2212
    %v2214 = vpop.f32.mrf.mxu0
    %2215 = vdwg.mxu0
    %v2216 = vmul.f32 %v2185, %v2213
    %v2217 = vadd.f32 %v2200, %v2216
    %v2218 = vtanh.pop %v2217
    %v2219 = vsub.f32 1.0, %v2185
    %2221 = vrot.lane.b32.xlu0 %v2218, 32
    %v2222 = vpop.permute.xlu0 %2221
    %v2224 = vmul.f32 %v2219, %v2222
    %v2225 = vmul.f32 %v2185, %v2018
    %v2226 = vadd.f32 %v2224, %v2225
    %v2227 = vpack.c.bf16 %v2226, %v2226
    %2229 = vrot.lane.b32.xlu0 %v2227, 96
    %v2230 = vpop.permute.xlu0 %2229
    %v2232 = vsel %vm148, %v2230, 0
    %2234 = vmatpush.bf16.msra.mxu0 0
    %2235 = vmatpush.bf16.msra.mxu0 0
    %2236 = vmatpush.bf16.msra.mxu0 0
    %2237 = vmatpush.bf16.msra.mxu0 0
    %2238 = vmatpush.bf16.msra.mxu0 0
    %2239 = vmatpush.bf16.msra.mxu0 0
    %2240 = vmatpush.bf16.msra.mxu0 %v1414
    %2241 = vmatpush.bf16.msra.mxu0 %v1413
    %2242 = vmatmul.bf16.gmra.mxu0 %v2232
    %v2243 = vpop.f32.mrf.mxu0
    %v2244 = vadd.f32 %v113, %v2243
    %v2245 = vpop.f32.mrf.mxu0
    %2246 = vdwg.mxu0
    %v2247 = vsel %vm1578, %v2244, -inf
    %2248 = vmax.xlane.f32.xlu0 %v2247
    %v2249 = vpop.xlane.xlu0 %2248
    %v2250 = vsub.f32 %v2244, %v2249
    %v2251 = vmul.f32 %v2250, 1.442695
    %v2252 = vpow.pop %v2251
    %v2253 = vsel %vm1578, %v2252, 0.0
    %2254 = vadd.xlane.f32.xlu0 %v2253
    %v2255 = vpop.xlane.xlu0 %2254
    %v2256 = vrcp.pop %v2255
    %v2257 = vmul.f32 %v2252, %v2256
    %v2258 = vpack.c.bf16 %v2257, %v2257
    %v2260 = vsel %vm148, %v2258, 0
    %2262 = vmatpush.bf16.msra.mxu0 0
    %2263 = vmatpush.bf16.msra.mxu0 0
    %2264 = vmatpush.bf16.msra.mxu0 0
    %2265 = vmatpush.bf16.msra.mxu0 0
    %2266 = vmatpush.bf16.msra.mxu0 0
    %2267 = vmatpush.bf16.msra.mxu0 0
    %2268 = vmatpush.bf16.msra.mxu0 %v1596
    %2269 = vmatpush.bf16.msra.mxu0 %v1594
    %2270 = vmatmul.bf16.gmra.mxu0 %v2260
    %v2271 = vpop.f32.mrf.mxu0
    %v2272 = vadd.f32 0.0, %v2271
    %v2273 = vpop.f32.mrf.mxu0
    %2274 = vdwg.mxu0
    %v2275 = vpack.c.bf16 %v2272, %v2272
    %2276 = vmatpush.bf16.msra.mxu0 0
    %2277 = vmatpush.bf16.msra.mxu0 0
    %2278 = vmatpush.bf16.msra.mxu0 0
    %2279 = vmatpush.bf16.msra.mxu0 0
    %2280 = vmatpush.bf16.msra.mxu0 0
    %2281 = vmatpush.bf16.msra.mxu0 0
    %2282 = vmatpush.bf16.msra.mxu0 %v1625
    %2283 = vmatpush.bf16.msra.mxu0 %v1624
    %2284 = vmatmul.bf16.gmra.mxu0 %v2232
    %v2285 = vpop.f32.mrf.mxu0
    %v2286 = vadd.f32 0.0, %v2285
    %v2287 = vpop.f32.mrf.mxu0
    %2288 = vdwg.mxu0
    %v2290 = vsel %vm148, %v2275, 0
    %2292 = vmatpush.bf16.msra.mxu0 0
    %2293 = vmatpush.bf16.msra.mxu0 0
    %2294 = vmatpush.bf16.msra.mxu0 0
    %2295 = vmatpush.bf16.msra.mxu0 0
    %2296 = vmatpush.bf16.msra.mxu0 0
    %2297 = vmatpush.bf16.msra.mxu0 0
    %2298 = vmatpush.bf16.msra.mxu0 %v1650
    %2299 = vmatpush.bf16.msra.mxu0 %v1649
    %2300 = vmatmul.bf16.gmra.mxu0 %v2290
    %v2301 = vpop.f32.mrf.mxu0
    %v2302 = vadd.f32 %v2286, %v2301
    %v2303 = vpop.f32.mrf.mxu0
    %2304 = vdwg.mxu0
    %v2305 = vadd.f32 %v2302, %v107
    %v2306 = vtanh.pop %v2305
    %v2307 = vpack.c.bf16 %v2306, %v2306
    %v2309 = vsel %vm148, %v2307, 0
    %2311 = vmatpush.bf16.msra.mxu0 0
    %2312 = vmatpush.bf16.msra.mxu0 0
    %2313 = vmatpush.bf16.msra.mxu0 0
    %2314 = vmatpush.bf16.msra.mxu0 0
    %2315 = vmatpush.bf16.msra.mxu0 0
    %2316 = vmatpush.bf16.msra.mxu0 0
    %2317 = vmatpush.bf16.msra.mxu0 %v1681
    %2318 = vmatpush.bf16.msra.mxu0 %v1680
    %2319 = vmatmul.bf16.gmra.mxu0 %v2309
    %v2320 = vpop.f32.mrf.mxu0
    %v2321 = vadd.f32 %v112, %v2320
    %v2322 = vpop.f32.mrf.mxu0
    %2323 = vdwg.mxu0
    %v2324 = vsel %vm1578, %v2321, -inf
    %2325 = vmax.xlane.f32.xlu0 %v2324
    %v2326 = vpop.xlane.xlu0 %2325
    %vm2327 = vcmp.ge.f32.partialorder %v2321, %v2326
    %v2328 = vsel %vm2327, %v1416, 32
    %v2329 = vsel %vm1578, %v2328, 2147483647
    %v2330 = vand.u32 %v2329, 65535
    %v2331 = vshra.s32 %v2329, 16
    %v2332 = vcvt.s32.f32 %v2330
    %v2333 = vcvt.s32.f32 %v2331
    %2334 = vmin.xlane.f32.xlu0 %v2333
    %v2335 = vpop.xlane.xlu0 %2334
    %vm2336 = vcmp.eq.f32.partialorder %v2333, %v2335
    %v2337 = vsel %vm2336, %v2332, inf
    %2338 = vmin.xlane.f32.xlu0 %v2337
    %v2339 = vpop.xlane.xlu0 %2338
    %v2340 = vcvt.f32.s32 %v2339
    %v2341 = vcvt.f32.s32 %v2335
    %v2342 = vshll.u32 %v2341, 16
    %v2343 = vadd.s32 %v2342, %v2340
    %v2344 = vsub.f32 %v2321, %v2326
    %v2345 = vmul.f32 %v2344, 1.442695
    %v2346 = vpow.pop %v2345
    %v2347 = vsel %vm1578, %v2346, 0.0
    %2348 = vadd.xlane.f32.xlu0 %v2347
    %v2349 = vpop.xlane.xlu0 %2348
    %v2350 = vlog2.pop %v2349
    %v2351 = vmul.f32 %v2350, 0.6931472
    %v2352 = vadd.f32 %v2351, %v2326
    %v2353 = vsub.f32 %v2321, %v2352
    %vm2354 = vcmp.eq.s32.totalorder %v1416, %v2343
    %v2355 = vsel %vm2354, 1, 0
    %v2356 = vcvt.s32.f32 %v2355
    %v2357 = vsel %vm148, %v2356, %v2226
    %v2358 = vpack.c.bf16 %v2357, %v2357
    %v2360 = vsel %vm1450, %v2358, 0
    %2362 = vmatpush.bf16.msra.mxu0 0
    %2363 = vmatpush.bf16.msra.mxu0 0
    %2364 = vmatpush.bf16.msra.mxu0 0
    %2365 = vmatpush.bf16.msra.mxu0 0
    %2366 = vmatpush.bf16.msra.mxu0 %v1445
    %2367 = vmatpush.bf16.msra.mxu0 %v1444
    %2368 = vmatpush.bf16.msra.mxu0 %v1443
    %2369 = vmatpush.bf16.msra.mxu0 %v1442
    %2370 = vmatmul.bf16.gmra.mxu0 %v2360
    %v2371 = vpop.f32.mrf.mxu0
    %v2372 = vadd.f32 %v96, %v2371
    %v2373 = vpop.f32.mrf.mxu0
    %2374 = vdwg.mxu0
    %v2375 = vxor.u32 %v2372, 2147483648
    %v2376 = vmul.f32 %v2375, 1.442695
    %v2377 = vpow.pop %v2376
    %v2378 = vadd.f32 %v2377, 1.0
    %v2379 = vrcp.pop %v2378
    %v2380 = vmul.f32 %v2378, %v2379
    %v2381 = vsub.f32 1.0, %v2380
    %v2382 = vmul.f32 %v2379, %v2381
    %v2383 = vadd.f32 %v2379, %v2382
    %vm2384 = vweird.f32 %v2378
    %vm2385 = vweird.f32 %v2379
    %vm2386 = vmor %vm2384, %vm2385
    %v2387 = vsel %vm2386, %v2379, %v2383
    %v2388 = vand.u32 2147483647, %v2378
    %vm2389 = vcmp.eq.f32.partialorder %v2388, 8.507059e+37
    %v2390 = vand.u32 %v2378, 2147483648
    %v2391 = vor.u32 1.1754944e-38, %v2390
    %v2392 = vsel %vm2389, %v2391, %v2387
    %v2393 = vmul.f32 1.0, %v2392
    %v2394 = vpack.c.bf16 %v2356, %v2356
    %v2396 = vsel %vm148, %v2394, 0
    %2398 = vmatpush.bf16.msra.mxu0 0
    %2399 = vmatpush.bf16.msra.mxu0 0
    %2400 = vmatpush.bf16.msra.mxu0 0
    %2401 = vmatpush.bf16.msra.mxu0 0
    %2402 = vmatpush.bf16.msra.mxu0 0
    %2403 = vmatpush.bf16.msra.mxu0 0
    %2404 = vmatpush.bf16.msra.mxu0 %v1496
    %2405 = vmatpush.bf16.msra.mxu0 %v1495
    %2406 = vmatmul.bf16.gmra.mxu0 %v2396
    %v2407 = vpop.f32.mrf.mxu0
    %v2408 = vadd.f32 %v97, %v2407
    %v2409 = vpop.f32.mrf.mxu0
    %2410 = vdwg.mxu0
    %2411 = vmatpush.bf16.msra.mxu0 0
    %2412 = vmatpush.bf16.msra.mxu0 0
    %2413 = vmatpush.bf16.msra.mxu0 0
    %2414 = vmatpush.bf16.msra.mxu0 0
    %2415 = vmatpush.bf16.msra.mxu0 0
    %2416 = vmatpush.bf16.msra.mxu0 0
    %2417 = vmatpush.bf16.msra.mxu0 %v1528
    %2418 = vmatpush.bf16.msra.mxu0 %v1527
    %2419 = vmatmul.bf16.gmra.mxu0 %v2232
    %v2420 = vpop.f32.mrf.mxu0
    %v2421 = vadd.f32 %v98, %v2420
    %v2422 = vpop.f32.mrf.mxu0
    %2423 = vdwg.mxu0
    %v2424 = vmul.f32 %v2393, %v2421
    %v2425 = vadd.f32 %v2408, %v2424
    %v2426 = vtanh.pop %v2425
    %v2427 = vsub.f32 1.0, %v2393
    %2429 = vrot.lane.b32.xlu0 %v2426, 32
    %v2430 = vpop.permute.xlu0 %2429
    %v2432 = vmul.f32 %v2427, %v2430
    %v2433 = vmul.f32 %v2393, %v2226
    %v2434 = vadd.f32 %v2432, %v2433
    %v2435 = vpack.c.bf16 %v2434, %v2434
    %2437 = vrot.lane.b32.xlu0 %v2435, 96
    %v2438 = vpop.permute.xlu0 %2437
    %v2440 = vsel %vm148, %v2438, 0
    %2442 = vmatpush.bf16.msra.mxu0 0
    %2443 = vmatpush.bf16.msra.mxu0 0
    %2444 = vmatpush.bf16.msra.mxu0 0
    %2445 = vmatpush.bf16.msra.mxu0 0
    %2446 = vmatpush.bf16.msra.mxu0 0
    %2447 = vmatpush.bf16.msra.mxu0 0
    %2448 = vmatpush.bf16.msra.mxu0 %v1414
    %2449 = vmatpush.bf16.msra.mxu0 %v1413
    %2450 = vmatmul.bf16.gmra.mxu0 %v2440
    %v2451 = vpop.f32.mrf.mxu0
    %v2452 = vadd.f32 %v113, %v2451
    %v2453 = vpop.f32.mrf.mxu0
    %2454 = vdwg.mxu0
    %v2455 = vsel %vm1578, %v2452, -inf
    %2456 = vmax.xlane.f32.xlu0 %v2455
    %v2457 = vpop.xlane.xlu0 %2456
    %v2458 = vsub.f32 %v2452, %v2457
    %v2459 = vmul.f32 %v2458, 1.442695
    %v2460 = vpow.pop %v2459
    %v2461 = vsel %vm1578, %v2460, 0.0
    %2462 = vadd.xlane.f32.xlu0 %v2461
    %v2463 = vpop.xlane.xlu0 %2462
    %v2464 = vrcp.pop %v2463
    %v2465 = vmul.f32 %v2460, %v2464
    %v2466 = vpack.c.bf16 %v2465, %v2465
    %v2468 = vsel %vm148, %v2466, 0
    %2470 = vmatpush.bf16.msra.mxu0 0
    %2471 = vmatpush.bf16.msra.mxu0 0
    %2472 = vmatpush.bf16.msra.mxu0 0
    %2473 = vmatpush.bf16.msra.mxu0 0
    %2474 = vmatpush.bf16.msra.mxu0 0
    %2475 = vmatpush.bf16.msra.mxu0 0
    %2476 = vmatpush.bf16.msra.mxu0 %v1596
    %2477 = vmatpush.bf16.msra.mxu0 %v1594
    %2478 = vmatmul.bf16.gmra.mxu0 %v2468
    %v2479 = vpop.f32.mrf.mxu0
    %v2480 = vadd.f32 0.0, %v2479
    %v2481 = vpop.f32.mrf.mxu0
    %2482 = vdwg.mxu0
    %v2483 = vpack.c.bf16 %v2480, %v2480
    %2484 = vmatpush.bf16.msra.mxu0 0
    %2485 = vmatpush.bf16.msra.mxu0 0
    %2486 = vmatpush.bf16.msra.mxu0 0
    %2487 = vmatpush.bf16.msra.mxu0 0
    %2488 = vmatpush.bf16.msra.mxu0 0
    %2489 = vmatpush.bf16.msra.mxu0 0
    %2490 = vmatpush.bf16.msra.mxu0 %v1625
    %2491 = vmatpush.bf16.msra.mxu0 %v1624
    %2492 = vmatmul.bf16.gmra.mxu0 %v2440
    %v2493 = vpop.f32.mrf.mxu0
    %v2494 = vadd.f32 0.0, %v2493
    %v2495 = vpop.f32.mrf.mxu0
    %2496 = vdwg.mxu0
    %v2498 = vsel %vm148, %v2483, 0
    %2500 = vmatpush.bf16.msra.mxu0 0
    %2501 = vmatpush.bf16.msra.mxu0 0
    %2502 = vmatpush.bf16.msra.mxu0 0
    %2503 = vmatpush.bf16.msra.mxu0 0
    %2504 = vmatpush.bf16.msra.mxu0 0
    %2505 = vmatpush.bf16.msra.mxu0 0
    %2506 = vmatpush.bf16.msra.mxu0 %v1650
    %2507 = vmatpush.bf16.msra.mxu0 %v1649
    %2508 = vmatmul.bf16.gmra.mxu0 %v2498
    %v2509 = vpop.f32.mrf.mxu0
    %v2510 = vadd.f32 %v2494, %v2509
    %v2511 = vpop.f32.mrf.mxu0
    %2512 = vdwg.mxu0
    %v2513 = vadd.f32 %v2510, %v107
    %v2514 = vtanh.pop %v2513
    %v2515 = vpack.c.bf16 %v2514, %v2514
    %v2517 = vsel %vm148, %v2515, 0
    %2519 = vmatpush.bf16.msra.mxu0 0
    %2520 = vmatpush.bf16.msra.mxu0 0
    %2521 = vmatpush.bf16.msra.mxu0 0
    %2522 = vmatpush.bf16.msra.mxu0 0
    %2523 = vmatpush.bf16.msra.mxu0 0
    %2524 = vmatpush.bf16.msra.mxu0 0
    %2525 = vmatpush.bf16.msra.mxu0 %v1681
    %2526 = vmatpush.bf16.msra.mxu0 %v1680
    %2527 = vmatmul.bf16.gmra.mxu0 %v2517
    %v2528 = vpop.f32.mrf.mxu0
    %v2529 = vadd.f32 %v112, %v2528
    %v2530 = vpop.f32.mrf.mxu0
    %2531 = vdwg.mxu0
    %v2532 = vsel %vm1578, %v2529, -inf
    %2533 = vmax.xlane.f32.xlu0 %v2532
    %v2534 = vpop.xlane.xlu0 %2533
    %vm2535 = vcmp.ge.f32.partialorder %v2529, %v2534
    %v2536 = vsel %vm2535, %v1416, 32
    %v2537 = vsel %vm1578, %v2536, 2147483647
    %v2538 = vand.u32 %v2537, 65535
    %v2539 = vshra.s32 %v2537, 16
    %v2540 = vcvt.s32.f32 %v2538
    %v2541 = vcvt.s32.f32 %v2539
    %2542 = vmin.xlane.f32.xlu0 %v2541
    %v2543 = vpop.xlane.xlu0 %2542
    %vm2544 = vcmp.eq.f32.partialorder %v2541, %v2543
    %v2545 = vsel %vm2544, %v2540, inf
    %2546 = vmin.xlane.f32.xlu0 %v2545
    %v2547 = vpop.xlane.xlu0 %2546
    %v2548 = vcvt.f32.s32 %v2547
    %v2549 = vcvt.f32.s32 %v2543
    %v2550 = vshll.u32 %v2549, 16
    %v2551 = vadd.s32 %v2550, %v2548
    %v2552 = vsub.f32 %v2529, %v2534
    %v2553 = vmul.f32 %v2552, 1.442695
    %v2554 = vpow.pop %v2553
    %v2555 = vsel %vm1578, %v2554, 0.0
    %2556 = vadd.xlane.f32.xlu0 %v2555
    %v2557 = vpop.xlane.xlu0 %2556
    %v2558 = vlog2.pop %v2557
    %v2559 = vmul.f32 %v2558, 0.6931472
    %v2560 = vadd.f32 %v2559, %v2534
    %v2561 = vsub.f32 %v2529, %v2560
    %vm2562 = vcmp.eq.s32.totalorder %v1416, %v2551
    %v2563 = vsel %vm2562, 1, 0
    %v2564 = vcvt.s32.f32 %v2563
    %v2565 = vsel %vm148, %v2564, %v2434
    %v2566 = vpack.c.bf16 %v2565, %v2565
    %v2568 = vsel %vm1450, %v2566, 0
    %2570 = vmatpush.bf16.msra.mxu0 0
    %2571 = vmatpush.bf16.msra.mxu0 0
    %2572 = vmatpush.bf16.msra.mxu0 0
    %2573 = vmatpush.bf16.msra.mxu0 0
    %2574 = vmatpush.bf16.msra.mxu0 %v1445
    %2575 = vmatpush.bf16.msra.mxu0 %v1444
    %2576 = vmatpush.bf16.msra.mxu0 %v1443
    %2577 = vmatpush.bf16.msra.mxu0 %v1442
    %2578 = vmatmul.bf16.gmra.mxu0 %v2568
    %v2579 = vpop.f32.mrf.mxu0
    %v2580 = vadd.f32 %v96, %v2579
    %v2581 = vpop.f32.mrf.mxu0
    %2582 = vdwg.mxu0
    %v2583 = vxor.u32 %v2580, 2147483648
    %v2584 = vmul.f32 %v2583, 1.442695
    %v2585 = vpow.pop %v2584
    %v2586 = vadd.f32 %v2585, 1.0
    %v2587 = vrcp.pop %v2586
    %v2588 = vmul.f32 %v2586, %v2587
    %v2589 = vsub.f32 1.0, %v2588
    %v2590 = vmul.f32 %v2587, %v2589
    %v2591 = vadd.f32 %v2587, %v2590
    %vm2592 = vweird.f32 %v2586
    %vm2593 = vweird.f32 %v2587
    %vm2594 = vmor %vm2592, %vm2593
    %v2595 = vsel %vm2594, %v2587, %v2591
    %v2596 = vand.u32 2147483647, %v2586
    %vm2597 = vcmp.eq.f32.partialorder %v2596, 8.507059e+37
    %v2598 = vand.u32 %v2586, 2147483648
    %v2599 = vor.u32 1.1754944e-38, %v2598
    %v2600 = vsel %vm2597, %v2599, %v2595
    %v2601 = vmul.f32 1.0, %v2600
    %v2602 = vpack.c.bf16 %v2564, %v2564
    %v2604 = vsel %vm148, %v2602, 0
    %2606 = vmatpush.bf16.msra.mxu0 0
    %2607 = vmatpush.bf16.msra.mxu0 0
    %2608 = vmatpush.bf16.msra.mxu0 0
    %2609 = vmatpush.bf16.msra.mxu0 0
    %2610 = vmatpush.bf16.msra.mxu0 0
    %2611 = vmatpush.bf16.msra.mxu0 0
    %2612 = vmatpush.bf16.msra.mxu0 %v1496
    %2613 = vmatpush.bf16.msra.mxu0 %v1495
    %2614 = vmatmul.bf16.gmra.mxu0 %v2604
    %v2615 = vpop.f32.mrf.mxu0
    %v2616 = vadd.f32 %v97, %v2615
    %v2617 = vpop.f32.mrf.mxu0
    %2618 = vdwg.mxu0
    %2619 = vmatpush.bf16.msra.mxu0 0
    %2620 = vmatpush.bf16.msra.mxu0 0
    %2621 = vmatpush.bf16.msra.mxu0 0
    %2622 = vmatpush.bf16.msra.mxu0 0
    %2623 = vmatpush.bf16.msra.mxu0 0
    %2624 = vmatpush.bf16.msra.mxu0 0
    %2625 = vmatpush.bf16.msra.mxu0 %v1528
    %2626 = vmatpush.bf16.msra.mxu0 %v1527
    %2627 = vmatmul.bf16.gmra.mxu0 %v2440
    %v2628 = vpop.f32.mrf.mxu0
    %v2629 = vadd.f32 %v98, %v2628
    %v2630 = vpop.f32.mrf.mxu0
    %2631 = vdwg.mxu0
    %v2632 = vmul.f32 %v2601, %v2629
    %v2633 = vadd.f32 %v2616, %v2632
    %v2634 = vtanh.pop %v2633
    %v2635 = vsub.f32 1.0, %v2601
    %2637 = vrot.lane.b32.xlu0 %v2634, 32
    %v2638 = vpop.permute.xlu0 %2637
    %v2640 = vmul.f32 %v2635, %v2638
    %v2641 = vmul.f32 %v2601, %v2434
    %v2642 = vadd.f32 %v2640, %v2641
    %v2643 = vpack.c.bf16 %v2642, %v2642
    %2645 = vrot.lane.b32.xlu0 %v2643, 96
    %v2646 = vpop.permute.xlu0 %2645
    %v2648 = vsel %vm148, %v2646, 0
    %2650 = vmatpush.bf16.msra.mxu0 0
    %2651 = vmatpush.bf16.msra.mxu0 0
    %2652 = vmatpush.bf16.msra.mxu0 0
    %2653 = vmatpush.bf16.msra.mxu0 0
    %2654 = vmatpush.bf16.msra.mxu0 0
    %2655 = vmatpush.bf16.msra.mxu0 0
    %2656 = vmatpush.bf16.msra.mxu0 %v1414
    %2657 = vmatpush.bf16.msra.mxu0 %v1413
    %2658 = vmatmul.bf16.gmra.mxu0 %v2648
    %v2659 = vpop.f32.mrf.mxu0
    %v2660 = vadd.f32 %v113, %v2659
    %v2661 = vpop.f32.mrf.mxu0
    %2662 = vdwg.mxu0
    %v2663 = vsel %vm1578, %v2660, -inf
    %2664 = vmax.xlane.f32.xlu0 %v2663
    %v2665 = vpop.xlane.xlu0 %2664
    %v2666 = vsub.f32 %v2660, %v2665
    %v2667 = vmul.f32 %v2666, 1.442695
    %v2668 = vpow.pop %v2667
    %v2669 = vsel %vm1578, %v2668, 0.0
    %2670 = vadd.xlane.f32.xlu0 %v2669
    %v2671 = vpop.xlane.xlu0 %2670
    %v2672 = vrcp.pop %v2671
    %v2673 = vmul.f32 %v2668, %v2672
    %v2674 = vpack.c.bf16 %v2673, %v2673
    %v2676 = vsel %vm148, %v2674, 0
    %2678 = vmatpush.bf16.msra.mxu0 0
    %2679 = vmatpush.bf16.msra.mxu0 0
    %2680 = vmatpush.bf16.msra.mxu0 0
    %2681 = vmatpush.bf16.msra.mxu0 0
    %2682 = vmatpush.bf16.msra.mxu0 0
    %2683 = vmatpush.bf16.msra.mxu0 0
    %2684 = vmatpush.bf16.msra.mxu0 %v1596
    %2685 = vmatpush.bf16.msra.mxu0 %v1594
    %2686 = vmatmul.bf16.gmra.mxu0 %v2676
    %v2687 = vpop.f32.mrf.mxu0
    %v2688 = vadd.f32 0.0, %v2687
    %v2689 = vpop.f32.mrf.mxu0
    %2690 = vdwg.mxu0
    %v2691 = vpack.c.bf16 %v2688, %v2688
    %2692 = vmatpush.bf16.msra.mxu0 0
    %2693 = vmatpush.bf16.msra.mxu0 0
    %2694 = vmatpush.bf16.msra.mxu0 0
    %2695 = vmatpush.bf16.msra.mxu0 0
    %2696 = vmatpush.bf16.msra.mxu0 0
    %2697 = vmatpush.bf16.msra.mxu0 0
    %2698 = vmatpush.bf16.msra.mxu0 %v1625
    %2699 = vmatpush.bf16.msra.mxu0 %v1624
    %2700 = vmatmul.bf16.gmra.mxu0 %v2648
    %v2701 = vpop.f32.mrf.mxu0
    %v2702 = vadd.f32 0.0, %v2701
    %v2703 = vpop.f32.mrf.mxu0
    %2704 = vdwg.mxu0
    %v2706 = vsel %vm148, %v2691, 0
    %2708 = vmatpush.bf16.msra.mxu0 0
    %2709 = vmatpush.bf16.msra.mxu0 0
    %2710 = vmatpush.bf16.msra.mxu0 0
    %2711 = vmatpush.bf16.msra.mxu0 0
    %2712 = vmatpush.bf16.msra.mxu0 0
    %2713 = vmatpush.bf16.msra.mxu0 0
    %2714 = vmatpush.bf16.msra.mxu0 %v1650
    %2715 = vmatpush.bf16.msra.mxu0 %v1649
    %2716 = vmatmul.bf16.gmra.mxu0 %v2706
    %v2717 = vpop.f32.mrf.mxu0
    %v2718 = vadd.f32 %v2702, %v2717
    %v2719 = vpop.f32.mrf.mxu0
    %2720 = vdwg.mxu0
    %v2721 = vadd.f32 %v2718, %v107
    %v2722 = vtanh.pop %v2721
    %v2723 = vpack.c.bf16 %v2722, %v2722
    %v2725 = vsel %vm148, %v2723, 0
    %2727 = vmatpush.bf16.msra.mxu0 0
    %2728 = vmatpush.bf16.msra.mxu0 0
    %2729 = vmatpush.bf16.msra.mxu0 0
    %2730 = vmatpush.bf16.msra.mxu0 0
    %2731 = vmatpush.bf16.msra.mxu0 0
    %2732 = vmatpush.bf16.msra.mxu0 0
    %2733 = vmatpush.bf16.msra.mxu0 %v1681
    %2734 = vmatpush.bf16.msra.mxu0 %v1680
    %2735 = vmatmul.bf16.gmra.mxu0 %v2725
    %v2736 = vpop.f32.mrf.mxu0
    %v2737 = vadd.f32 %v112, %v2736
    %v2738 = vpop.f32.mrf.mxu0
    %2739 = vdwg.mxu0
    %v2740 = vsel %vm1578, %v2737, -inf
    %2741 = vmax.xlane.f32.xlu0 %v2740
    %v2742 = vpop.xlane.xlu0 %2741
    %vm2743 = vcmp.ge.f32.partialorder %v2737, %v2742
    %v2744 = vsel %vm2743, %v1416, 32
    %v2745 = vsel %vm1578, %v2744, 2147483647
    %v2746 = vand.u32 %v2745, 65535
    %v2747 = vshra.s32 %v2745, 16
    %v2748 = vcvt.s32.f32 %v2746
    %v2749 = vcvt.s32.f32 %v2747
    %2750 = vmin.xlane.f32.xlu0 %v2749
    %v2751 = vpop.xlane.xlu0 %2750
    %vm2752 = vcmp.eq.f32.partialorder %v2749, %v2751
    %v2753 = vsel %vm2752, %v2748, inf
    %2754 = vmin.xlane.f32.xlu0 %v2753
    %v2755 = vpop.xlane.xlu0 %2754
    %v2756 = vcvt.f32.s32 %v2755
    %v2757 = vcvt.f32.s32 %v2751
    %v2758 = vshll.u32 %v2757, 16
    %v2759 = vadd.s32 %v2758, %v2756
    %v2760 = vsub.f32 %v2737, %v2742
    %v2761 = vmul.f32 %v2760, 1.442695
    %v2762 = vpow.pop %v2761
    %v2763 = vsel %vm1578, %v2762, 0.0
    %2764 = vadd.xlane.f32.xlu0 %v2763
    %v2765 = vpop.xlane.xlu0 %2764
    %v2766 = vlog2.pop %v2765
    %v2767 = vmul.f32 %v2766, 0.6931472
    %v2768 = vadd.f32 %v2767, %v2742
    %v2769 = vsub.f32 %v2737, %v2768
    %vm2770 = vcmp.eq.s32.totalorder %v1416, %v2759
    %v2771 = vsel %vm2770, 1, 0
    %v2772 = vcvt.s32.f32 %v2771
    %v2773 = vsel %vm148, %v2772, %v2642
    %v2774 = vpack.c.bf16 %v2773, %v2773
    %v2776 = vsel %vm1450, %v2774, 0
    %2778 = vmatpush.bf16.msra.mxu0 0
    %2779 = vmatpush.bf16.msra.mxu0 0
    %2780 = vmatpush.bf16.msra.mxu0 0
    %2781 = vmatpush.bf16.msra.mxu0 0
    %2782 = vmatpush.bf16.msra.mxu0 %v1445
    %2783 = vmatpush.bf16.msra.mxu0 %v1444
    %2784 = vmatpush.bf16.msra.mxu0 %v1443
    %2785 = vmatpush.bf16.msra.mxu0 %v1442
    %2786 = vmatmul.bf16.gmra.mxu0 %v2776
    %v2787 = vpop.f32.mrf.mxu0
    %v2788 = vadd.f32 %v96, %v2787
    %v2789 = vpop.f32.mrf.mxu0
    %2790 = vdwg.mxu0
    %v2791 = vxor.u32 %v2788, 2147483648
    %v2792 = vmul.f32 %v2791, 1.442695
    %v2793 = vpow.pop %v2792
    %v2794 = vadd.f32 %v2793, 1.0
    %v2795 = vrcp.pop %v2794
    %v2796 = vmul.f32 %v2794, %v2795
    %v2797 = vsub.f32 1.0, %v2796
    %v2798 = vmul.f32 %v2795, %v2797
    %v2799 = vadd.f32 %v2795, %v2798
    %vm2800 = vweird.f32 %v2794
    %vm2801 = vweird.f32 %v2795
    %vm2802 = vmor %vm2800, %vm2801
    %v2803 = vsel %vm2802, %v2795, %v2799
    %v2804 = vand.u32 2147483647, %v2794
    %vm2805 = vcmp.eq.f32.partialorder %v2804, 8.507059e+37
    %v2806 = vand.u32 %v2794, 2147483648
    %v2807 = vor.u32 1.1754944e-38, %v2806
    %v2808 = vsel %vm2805, %v2807, %v2803
    %v2809 = vmul.f32 1.0, %v2808
    %v2810 = vpack.c.bf16 %v2772, %v2772
    %v2812 = vsel %vm148, %v2810, 0
    %2814 = vmatpush.bf16.msra.mxu0 0
    %2815 = vmatpush.bf16.msra.mxu0 0
    %2816 = vmatpush.bf16.msra.mxu0 0
    %2817 = vmatpush.bf16.msra.mxu0 0
    %2818 = vmatpush.bf16.msra.mxu0 0
    %2819 = vmatpush.bf16.msra.mxu0 0
    %2820 = vmatpush.bf16.msra.mxu0 %v1496
    %2821 = vmatpush.bf16.msra.mxu0 %v1495
    %2822 = vmatmul.bf16.gmra.mxu0 %v2812
    %v2823 = vpop.f32.mrf.mxu0
    %v2824 = vadd.f32 %v97, %v2823
    %v2825 = vpop.f32.mrf.mxu0
    %2826 = vdwg.mxu0
    %2827 = vmatpush.bf16.msra.mxu0 0
    %2828 = vmatpush.bf16.msra.mxu0 0
    %2829 = vmatpush.bf16.msra.mxu0 0
    %2830 = vmatpush.bf16.msra.mxu0 0
    %2831 = vmatpush.bf16.msra.mxu0 0
    %2832 = vmatpush.bf16.msra.mxu0 0
    %2833 = vmatpush.bf16.msra.mxu0 %v1528
    %2834 = vmatpush.bf16.msra.mxu0 %v1527
    %2835 = vmatmul.bf16.gmra.mxu0 %v2648
    %v2836 = vpop.f32.mrf.mxu0
    %v2837 = vadd.f32 %v98, %v2836
    %v2838 = vpop.f32.mrf.mxu0
    %2839 = vdwg.mxu0
    %v2840 = vmul.f32 %v2809, %v2837
    %v2841 = vadd.f32 %v2824, %v2840
    %v2842 = vtanh.pop %v2841
    %v2843 = vsub.f32 1.0, %v2809
    %2845 = vrot.lane.b32.xlu0 %v2842, 32
    %v2846 = vpop.permute.xlu0 %2845
    %v2848 = vmul.f32 %v2843, %v2846
    %v2849 = vmul.f32 %v2809, %v2642
    %v2850 = vadd.f32 %v2848, %v2849
    %v2851 = vpack.c.bf16 %v2850, %v2850
    %2853 = vrot.lane.b32.xlu0 %v2851, 96
    %v2854 = vpop.permute.xlu0 %2853
    %v2856 = vsel %vm148, %v2854, 0
    %2858 = vmatpush.bf16.msra.mxu0 0
    %2859 = vmatpush.bf16.msra.mxu0 0
    %2860 = vmatpush.bf16.msra.mxu0 0
    %2861 = vmatpush.bf16.msra.mxu0 0
    %2862 = vmatpush.bf16.msra.mxu0 0
    %2863 = vmatpush.bf16.msra.mxu0 0
    %2864 = vmatpush.bf16.msra.mxu0 %v1414
    %2865 = vmatpush.bf16.msra.mxu0 %v1413
    %2866 = vmatmul.bf16.gmra.mxu0 %v2856
    %v2867 = vpop.f32.mrf.mxu0
    %v2868 = vadd.f32 %v113, %v2867
    %v2869 = vpop.f32.mrf.mxu0
    %2870 = vdwg.mxu0
    %v2871 = vsel %vm1578, %v2868, -inf
    %2872 = vmax.xlane.f32.xlu0 %v2871
    %v2873 = vpop.xlane.xlu0 %2872
    %v2874 = vsub.f32 %v2868, %v2873
    %v2875 = vmul.f32 %v2874, 1.442695
    %v2876 = vpow.pop %v2875
    %v2877 = vsel %vm1578, %v2876, 0.0
    %2878 = vadd.xlane.f32.xlu0 %v2877
    %v2879 = vpop.xlane.xlu0 %2878
    %v2880 = vrcp.pop %v2879
    %v2881 = vmul.f32 %v2876, %v2880
    %v2882 = vpack.c.bf16 %v2881, %v2881
    %v2884 = vsel %vm148, %v2882, 0
    %2886 = vmatpush.bf16.msra.mxu0 0
    %2887 = vmatpush.bf16.msra.mxu0 0
    %2888 = vmatpush.bf16.msra.mxu0 0
    %2889 = vmatpush.bf16.msra.mxu0 0
    %2890 = vmatpush.bf16.msra.mxu0 0
    %2891 = vmatpush.bf16.msra.mxu0 0
    %2892 = vmatpush.bf16.msra.mxu0 %v1596
    %2893 = vmatpush.bf16.msra.mxu0 %v1594
    %2894 = vmatmul.bf16.gmra.mxu0 %v2884
    %v2895 = vpop.f32.mrf.mxu0
    %v2896 = vadd.f32 0.0, %v2895
    %v2897 = vpop.f32.mrf.mxu0
    %2898 = vdwg.mxu0
    %v2899 = vpack.c.bf16 %v2896, %v2896
    %2900 = vmatpush.bf16.msra.mxu0 0
    %2901 = vmatpush.bf16.msra.mxu0 0
    %2902 = vmatpush.bf16.msra.mxu0 0
    %2903 = vmatpush.bf16.msra.mxu0 0
    %2904 = vmatpush.bf16.msra.mxu0 0
    %2905 = vmatpush.bf16.msra.mxu0 0
    %2906 = vmatpush.bf16.msra.mxu0 %v1625
    %2907 = vmatpush.bf16.msra.mxu0 %v1624
    %2908 = vmatmul.bf16.gmra.mxu0 %v2856
    %v2909 = vpop.f32.mrf.mxu0
    %v2910 = vadd.f32 0.0, %v2909
    %v2911 = vpop.f32.mrf.mxu0
    %2912 = vdwg.mxu0
    %v2914 = vsel %vm148, %v2899, 0
    %2916 = vmatpush.bf16.msra.mxu0 0
    %2917 = vmatpush.bf16.msra.mxu0 0
    %2918 = vmatpush.bf16.msra.mxu0 0
    %2919 = vmatpush.bf16.msra.mxu0 0
    %2920 = vmatpush.bf16.msra.mxu0 0
    %2921 = vmatpush.bf16.msra.mxu0 0
    %2922 = vmatpush.bf16.msra.mxu0 %v1650
    %2923 = vmatpush.bf16.msra.mxu0 %v1649
    %2924 = vmatmul.bf16.gmra.mxu0 %v2914
    %v2925 = vpop.f32.mrf.mxu0
    %v2926 = vadd.f32 %v2910, %v2925
    %v2927 = vpop.f32.mrf.mxu0
    %2928 = vdwg.mxu0
    %v2929 = vadd.f32 %v2926, %v107
    %v2930 = vtanh.pop %v2929
    %v2931 = vpack.c.bf16 %v2930, %v2930
    %v2933 = vsel %vm148, %v2931, 0
    %2935 = vmatpush.bf16.msra.mxu0 0
    %2936 = vmatpush.bf16.msra.mxu0 0
    %2937 = vmatpush.bf16.msra.mxu0 0
    %2938 = vmatpush.bf16.msra.mxu0 0
    %2939 = vmatpush.bf16.msra.mxu0 0
    %2940 = vmatpush.bf16.msra.mxu0 0
    %2941 = vmatpush.bf16.msra.mxu0 %v1681
    %2942 = vmatpush.bf16.msra.mxu0 %v1680
    %2943 = vmatmul.bf16.gmra.mxu0 %v2933
    %v2944 = vpop.f32.mrf.mxu0
    %v2945 = vadd.f32 %v112, %v2944
    %v2946 = vpop.f32.mrf.mxu0
    %2947 = vdwg.mxu0
    %v2948 = vsel %vm1578, %v2945, -inf
    %2949 = vmax.xlane.f32.xlu0 %v2948
    %v2950 = vpop.xlane.xlu0 %2949
    %vm2951 = vcmp.ge.f32.partialorder %v2945, %v2950
    %v2952 = vsel %vm2951, %v1416, 32
    %v2953 = vsel %vm1578, %v2952, 2147483647
    %v2954 = vand.u32 %v2953, 65535
    %v2955 = vshra.s32 %v2953, 16
    %v2956 = vcvt.s32.f32 %v2954
    %v2957 = vcvt.s32.f32 %v2955
    %2958 = vmin.xlane.f32.xlu0 %v2957
    %v2959 = vpop.xlane.xlu0 %2958
    %vm2960 = vcmp.eq.f32.partialorder %v2957, %v2959
    %v2961 = vsel %vm2960, %v2956, inf
    %2962 = vmin.xlane.f32.xlu0 %v2961
    %v2963 = vpop.xlane.xlu0 %2962
    %v2964 = vcvt.f32.s32 %v2963
    %v2965 = vcvt.f32.s32 %v2959
    %v2966 = vshll.u32 %v2965, 16
    %v2967 = vadd.s32 %v2966, %v2964
    %v2968 = vsub.f32 %v2945, %v2950
    %v2969 = vmul.f32 %v2968, 1.442695
    %v2970 = vpow.pop %v2969
    %v2971 = vsel %vm1578, %v2970, 0.0
    %2972 = vadd.xlane.f32.xlu0 %v2971
    %v2973 = vpop.xlane.xlu0 %2972
    %v2974 = vlog2.pop %v2973
    %v2975 = vmul.f32 %v2974, 0.6931472
    %v2976 = vadd.f32 %v2975, %v2950
    %v2977 = vsub.f32 %v2945, %v2976
    %vm2978 = vcmp.eq.s32.totalorder %v1416, %v2967
    %v2979 = vsel %vm2978, 1, 0
    %v2980 = vcvt.s32.f32 %v2979
    %v2981 = vsel %vm148, %v2980, %v2850
    %v2982 = vpack.c.bf16 %v2981, %v2981
    %v2984 = vsel %vm1450, %v2982, 0
    %2986 = vmatpush.bf16.msra.mxu0 0
    %2987 = vmatpush.bf16.msra.mxu0 0
    %2988 = vmatpush.bf16.msra.mxu0 0
    %2989 = vmatpush.bf16.msra.mxu0 0
    %2990 = vmatpush.bf16.msra.mxu0 %v1445
    %2991 = vmatpush.bf16.msra.mxu0 %v1444
    %2992 = vmatpush.bf16.msra.mxu0 %v1443
    %2993 = vmatpush.bf16.msra.mxu0 %v1442
    %2994 = vmatmul.bf16.gmra.mxu0 %v2984
    %v2995 = vpop.f32.mrf.mxu0
    %v2996 = vadd.f32 %v96, %v2995
    %v2997 = vpop.f32.mrf.mxu0
    %2998 = vdwg.mxu0
    %v2999 = vxor.u32 %v2996, 2147483648
    %v3000 = vmul.f32 %v2999, 1.442695
    %v3001 = vpow.pop %v3000
    %v3002 = vadd.f32 %v3001, 1.0
    %v3003 = vrcp.pop %v3002
    %v3004 = vmul.f32 %v3002, %v3003
    %v3005 = vsub.f32 1.0, %v3004
    %v3006 = vmul.f32 %v3003, %v3005
    %v3007 = vadd.f32 %v3003, %v3006
    %vm3008 = vweird.f32 %v3002
    %vm3009 = vweird.f32 %v3003
    %vm3010 = vmor %vm3008, %vm3009
    %v3011 = vsel %vm3010, %v3003, %v3007
    %v3012 = vand.u32 2147483647, %v3002
    %vm3013 = vcmp.eq.f32.partialorder %v3012, 8.507059e+37
    %v3014 = vand.u32 %v3002, 2147483648
    %v3015 = vor.u32 1.1754944e-38, %v3014
    %v3016 = vsel %vm3013, %v3015, %v3011
    %v3017 = vmul.f32 1.0, %v3016
    %v3018 = vpack.c.bf16 %v2980, %v2980
    %v3020 = vsel %vm148, %v3018, 0
    %3022 = vmatpush.bf16.msra.mxu0 0
    %3023 = vmatpush.bf16.msra.mxu0 0
    %3024 = vmatpush.bf16.msra.mxu0 0
    %3025 = vmatpush.bf16.msra.mxu0 0
    %3026 = vmatpush.bf16.msra.mxu0 0
    %3027 = vmatpush.bf16.msra.mxu0 0
    %3028 = vmatpush.bf16.msra.mxu0 %v1496
    %3029 = vmatpush.bf16.msra.mxu0 %v1495
    %3030 = vmatmul.bf16.gmra.mxu0 %v3020
    %v3031 = vpop.f32.mrf.mxu0
    %v3032 = vadd.f32 %v97, %v3031
    %v3033 = vpop.f32.mrf.mxu0
    %3034 = vdwg.mxu0
    %3035 = vmatpush.bf16.msra.mxu0 0
    %3036 = vmatpush.bf16.msra.mxu0 0
    %3037 = vmatpush.bf16.msra.mxu0 0
    %3038 = vmatpush.bf16.msra.mxu0 0
    %3039 = vmatpush.bf16.msra.mxu0 0
    %3040 = vmatpush.bf16.msra.mxu0 0
    %3041 = vmatpush.bf16.msra.mxu0 %v1528
    %3042 = vmatpush.bf16.msra.mxu0 %v1527
    %3043 = vmatmul.bf16.gmra.mxu0 %v2856
    %v3044 = vpop.f32.mrf.mxu0
    %v3045 = vadd.f32 %v98, %v3044
    %v3046 = vpop.f32.mrf.mxu0
    %3047 = vdwg.mxu0
    %v3048 = vmul.f32 %v3017, %v3045
    %v3049 = vadd.f32 %v3032, %v3048
    %v3050 = vtanh.pop %v3049
    %v3051 = vsub.f32 1.0, %v3017
    %3053 = vrot.lane.b32.xlu0 %v3050, 32
    %v3054 = vpop.permute.xlu0 %3053
    %v3056 = vmul.f32 %v3051, %v3054
    %v3057 = vmul.f32 %v3017, %v2850
    %v3058 = vadd.f32 %v3056, %v3057
    %v3059 = vpack.c.bf16 %v3058, %v3058
    %3061 = vrot.lane.b32.xlu0 %v3059, 96
    %v3062 = vpop.permute.xlu0 %3061
    %v3064 = vsel %vm148, %v3062, 0
    %3066 = vmatpush.bf16.msra.mxu0 0
    %3067 = vmatpush.bf16.msra.mxu0 0
    %3068 = vmatpush.bf16.msra.mxu0 0
    %3069 = vmatpush.bf16.msra.mxu0 0
    %3070 = vmatpush.bf16.msra.mxu0 0
    %3071 = vmatpush.bf16.msra.mxu0 0
    %3072 = vmatpush.bf16.msra.mxu0 %v1414
    %3073 = vmatpush.bf16.msra.mxu0 %v1413
    %3074 = vmatmul.bf16.gmra.mxu0 %v3064
    %v3075 = vpop.f32.mrf.mxu0
    %v3076 = vadd.f32 %v113, %v3075
    %v3077 = vpop.f32.mrf.mxu0
    %3078 = vdwg.mxu0
    %v3079 = vsel %vm1578, %v3076, -inf
    %3080 = vmax.xlane.f32.xlu0 %v3079
    %v3081 = vpop.xlane.xlu0 %3080
    %v3082 = vsub.f32 %v3076, %v3081
    %v3083 = vmul.f32 %v3082, 1.442695
    %v3084 = vpow.pop %v3083
    %v3085 = vsel %vm1578, %v3084, 0.0
    %3086 = vadd.xlane.f32.xlu0 %v3085
    %v3087 = vpop.xlane.xlu0 %3086
    %v3088 = vrcp.pop %v3087
    %v3089 = vmul.f32 %v3084, %v3088
    %v3090 = vpack.c.bf16 %v3089, %v3089
    %v3092 = vsel %vm148, %v3090, 0
    %3094 = vmatpush.bf16.msra.mxu0 0
    %3095 = vmatpush.bf16.msra.mxu0 0
    %3096 = vmatpush.bf16.msra.mxu0 0
    %3097 = vmatpush.bf16.msra.mxu0 0
    %3098 = vmatpush.bf16.msra.mxu0 0
    %3099 = vmatpush.bf16.msra.mxu0 0
    %3100 = vmatpush.bf16.msra.mxu0 %v1596
    %3101 = vmatpush.bf16.msra.mxu0 %v1594
    %3102 = vmatmul.bf16.gmra.mxu0 %v3092
    %v3103 = vpop.f32.mrf.mxu0
    %v3104 = vadd.f32 0.0, %v3103
    %v3105 = vpop.f32.mrf.mxu0
    %3106 = vdwg.mxu0
    %v3107 = vpack.c.bf16 %v3104, %v3104
    %3108 = vmatpush.bf16.msra.mxu0 0
    %3109 = vmatpush.bf16.msra.mxu0 0
    %3110 = vmatpush.bf16.msra.mxu0 0
    %3111 = vmatpush.bf16.msra.mxu0 0
    %3112 = vmatpush.bf16.msra.mxu0 0
    %3113 = vmatpush.bf16.msra.mxu0 0
    %3114 = vmatpush.bf16.msra.mxu0 %v1625
    %3115 = vmatpush.bf16.msra.mxu0 %v1624
    %3116 = vmatmul.bf16.gmra.mxu0 %v3064
    %v3117 = vpop.f32.mrf.mxu0
    %v3118 = vadd.f32 0.0, %v3117
    %v3119 = vpop.f32.mrf.mxu0
    %3120 = vdwg.mxu0
    %v3122 = vsel %vm148, %v3107, 0
    %3124 = vmatpush.bf16.msra.mxu0 0
    %3125 = vmatpush.bf16.msra.mxu0 0
    %3126 = vmatpush.bf16.msra.mxu0 0
    %3127 = vmatpush.bf16.msra.mxu0 0
    %3128 = vmatpush.bf16.msra.mxu0 0
    %3129 = vmatpush.bf16.msra.mxu0 0
    %3130 = vmatpush.bf16.msra.mxu0 %v1650
    %3131 = vmatpush.bf16.msra.mxu0 %v1649
    %3132 = vmatmul.bf16.gmra.mxu0 %v3122
    %v3133 = vpop.f32.mrf.mxu0
    %v3134 = vadd.f32 %v3118, %v3133
    %v3135 = vpop.f32.mrf.mxu0
    %3136 = vdwg.mxu0
    %v3137 = vadd.f32 %v3134, %v107
    %v3138 = vtanh.pop %v3137
    %v3139 = vpack.c.bf16 %v3138, %v3138
    %v3141 = vsel %vm148, %v3139, 0
    %3143 = vmatpush.bf16.msra.mxu0 0
    %3144 = vmatpush.bf16.msra.mxu0 0
    %3145 = vmatpush.bf16.msra.mxu0 0
    %3146 = vmatpush.bf16.msra.mxu0 0
    %3147 = vmatpush.bf16.msra.mxu0 0
    %3148 = vmatpush.bf16.msra.mxu0 0
    %3149 = vmatpush.bf16.msra.mxu0 %v1681
    %3150 = vmatpush.bf16.msra.mxu0 %v1680
    %3151 = vmatmul.bf16.gmra.mxu0 %v3141
    %v3152 = vpop.f32.mrf.mxu0
    %v3153 = vadd.f32 %v112, %v3152
    %v3154 = vpop.f32.mrf.mxu0
    %3155 = vdwg.mxu0
    %v3156 = vsel %vm1578, %v3153, -inf
    %3157 = vmax.xlane.f32.xlu0 %v3156
    %v3158 = vpop.xlane.xlu0 %3157
    %vm3159 = vcmp.ge.f32.partialorder %v3153, %v3158
    %v3160 = vsel %vm3159, %v1416, 32
    %v3161 = vsel %vm1578, %v3160, 2147483647
    %v3162 = vand.u32 %v3161, 65535
    %v3163 = vshra.s32 %v3161, 16
    %v3164 = vcvt.s32.f32 %v3162
    %v3165 = vcvt.s32.f32 %v3163
    %3166 = vmin.xlane.f32.xlu0 %v3165
    %v3167 = vpop.xlane.xlu0 %3166
    %vm3168 = vcmp.eq.f32.partialorder %v3165, %v3167
    %v3169 = vsel %vm3168, %v3164, inf
    %3170 = vmin.xlane.f32.xlu0 %v3169
    %v3171 = vpop.xlane.xlu0 %3170
    %v3172 = vcvt.f32.s32 %v3171
    %v3173 = vcvt.f32.s32 %v3167
    %v3174 = vshll.u32 %v3173, 16
    %v3175 = vadd.s32 %v3174, %v3172
    %v3176 = vsub.f32 %v3153, %v3158
    %v3177 = vmul.f32 %v3176, 1.442695
    %v3178 = vpow.pop %v3177
    %v3179 = vsel %vm1578, %v3178, 0.0
    %3180 = vadd.xlane.f32.xlu0 %v3179
    %v3181 = vpop.xlane.xlu0 %3180
    %v3182 = vlog2.pop %v3181
    %v3183 = vmul.f32 %v3182, 0.6931472
    %v3184 = vadd.f32 %v3183, %v3158
    %v3185 = vsub.f32 %v3153, %v3184
    %3186 = vst.msk [vmem:[#allocation2] sm:$0x3] %vm1578, %v1729
    %3187 = vst.msk [vmem:[#allocation2 + $0x2] sm:$0x3] %vm1578, %v1937
    %3188 = vst.msk [vmem:[#allocation2 + $0x4] sm:$0x3] %vm1578, %v2145
    %3189 = vst.msk [vmem:[#allocation2 + $0x6] sm:$0x3] %vm1578, %v2353
    %3190 = vst.msk [vmem:[#allocation2 + $0x8] sm:$0x3] %vm1578, %v2561
    %3191 = vst.msk [vmem:[#allocation2 + $0xa] sm:$0x3] %vm1578, %v2769
    %3192 = vst.msk [vmem:[#allocation2 + $0xc] sm:$0x3] %vm1578, %v2977
    %3193 = vst.msk [vmem:[#allocation2 + $0xe] sm:$0x3] %vm1578, %v3185
    %vm3194 = vcmask 1024
    %3195 = vst.msk [vmem:[%s22] sm:$0x3] %vm3194, %v1719
    %3196 = vst.msk [vmem:[%s22 + $0x2] sm:$0x3] %vm3194, %v1927
    %3197 = vst.msk [vmem:[%s22 + $0x4] sm:$0x3] %vm3194, %v2135
    %3198 = vst.msk [vmem:[%s22 + $0x6] sm:$0x3] %vm3194, %v2343
    %3199 = vst.msk [vmem:[%s22 + $0x8] sm:$0x3] %vm3194, %v2551
    %3200 = vst.msk [vmem:[%s22 + $0xa] sm:$0x3] %vm3194, %v2759
    %3201 = vst.msk [vmem:[%s22 + $0xc] sm:$0x3] %vm3194, %v2967
    %3202 = vst.msk [vmem:[%s22 + $0xe] sm:$0x3] %vm3194, %v3175
    %3204 = vrot.lane.b32.xlu0 %v3058, 96
    %v3205 = vpop.permute.xlu0 %3204
    %3207 = vst.msk [vmem:[#allocation4] sm:$0x3] %vm1578, %v3205
    // Predicated region
    $region82: #{seq2seq_forward.1} parent=1 // pred_check
      _
    $region83: #{seq2seq_forward.1} parent=1 // pred_check_branch
      %3209 = sbr.rel (0) target = $region85
    $region84: #{seq2seq_forward.1} parent=1 // pred_region
      %3211 = vsyncadd [#allocation3], 0
      %s3212 = sshll.u32 [#allocation2], 4
      %s3213 = int_to_ptr.vmem [resolvable:$true] %s3212
      %s3214 = sshll.u32 %s20, 4
      %s3215 = int_to_ptr.hbm [resolvable:$true] %s3214
      %3220 = dma.vmem_to_hbm [thread:$0]  %s3213, 256, %s3215, [#allocation3], 32, 32, 2
    $region85: #{seq2seq_forward.1} parent=1 // pred_fallthru
      _
    // Predicated region
    $region86: #{seq2seq_forward.1} parent=1 // pred_check
      _
    $region87: #{seq2seq_forward.1} parent=1 // pred_check_branch
      %3222 = sbr.rel (0) target = $region89
    $region88: #{seq2seq_forward.1} parent=1 // pred_region
      %3224 = vsyncadd [#allocation5], 0
      %s3226 = sshll.u32 [#allocation4], 4
      %s3227 = int_to_ptr.vmem [resolvable:$true] %s3226
      %s3228 = sshll.u32 %s21, 4
      %s3229 = int_to_ptr.hbm [resolvable:$true] %s3228
      %3231 = dma.vmem_to_hbm [thread:$0]  %s3227, 32, %s3229, [#allocation5]
    $region89: #{seq2seq_forward.1} parent=1 // pred_fallthru
      _
    // Predicated region
    $region90: #{seq2seq_forward.1} parent=1 // pred_check
      _
    $region91: #{seq2seq_forward.1} parent=1 // pred_check_branch
      %3233 = sbr.rel (0) target = $region93
    $region92: #{seq2seq_forward.1} parent=1 // pred_region
      _
    $region93: #{seq2seq_forward.1} parent=1 // pred_fallthru
      _
    // Predicated region
    $region94: #{seq2seq_forward.1} parent=1 // pred_check
      _
    $region95: #{seq2seq_forward.1} parent=1 // pred_check_branch
      %3235 = sbr.rel (0) target = $region97
    $region96: #{seq2seq_forward.1} parent=1 // pred_region
      %3237 = dma.done [#allocation3], 256
    $region97: #{seq2seq_forward.1} parent=1 // pred_fallthru
      _
    // Predicated region
    $region98: #{seq2seq_forward.1} parent=1 // pred_check
      _
    $region99: #{seq2seq_forward.1} parent=1 // pred_check_branch
      %3239 = sbr.rel (0) target = $region101
    $region100: #{seq2seq_forward.1} parent=1 // pred_region
      %3241 = dma.done [#allocation5], 32
    $region101: #{seq2seq_forward.1} parent=1 // pred_fallthru
      _
    // Predicated region
    $region102: #{seq2seq_forward.1} parent=1 // pred_check
      _
    $region103: #{seq2seq_forward.1} parent=1 // pred_check_branch
      %3243 = sbr.rel (0) target = $region105
    $region104: #{seq2seq_forward.1} parent=1 // pred_region
      _
    $region105: #{seq2seq_forward.1} parent=1 // pred_fallthru
      _
    %3244 = vsyncpa [#allocation3], 1
    %3245 = vsyncpa [#allocation5], 1

</llo_original>
